<compile_context>
chip_gen: v5e
topology: v5e:2x2
jax: 0.10.0
libtpu: 0.0.40
codegen_flags: <defaults>
</compile_context>

<pallas_src>
import jax
import jax.numpy as jnp
from jax.experimental import pallas as pl
from jax.experimental.pallas import tpu as pltpu


def _round_up(x, m):
    return ((x + m - 1) // m) * m


def _vmem_capacity_bytes():
    try:
        cap = getattr(pltpu.get_tpu_info(), "vmem_capacity_bytes", None)
        if cap:
            return int(cap)
    except Exception:
        pass
    return None


def _vmem_limit_bytes():
    # 3/4 of physical capacity; 48 MiB fallback is safe on every generation
    # (v7x has 64 MiB per TensorCore).
    cap = _vmem_capacity_bytes()
    if cap:
        return cap * 3 // 4
    return 48 << 20


def _default_max_tile():
    # v5e/v6e (128 MiB VMEM): bigger tiles amortize per-step overhead and keep
    # the MXU fed.  v7x (64 MiB) or unknown: stay at 256 to leave VMEM headroom.
    cap = _vmem_capacity_bytes()
    if cap and cap >= (100 << 20):
        return 512
    return 256


# --------------------------------------------------------------------------- #
# Kernels
# --------------------------------------------------------------------------- #
def decoder_kernel_streamed(x_ref,
                            w1_hbm, w2_hbm, w3_hbm, w4_hbm,
                            b1_ref, b2_ref, b3_ref, b4_ref,
                            o_ref,
                            w1_v, w2_v, w3_v, w4_v, sem):
    """Single-grid-step path: weights live in HBM (pl.ANY) and are streamed in.

    All four weight DMAs are issued immediately; each layer waits only on its
    own weight, so layer-k compute hides the layer-(k+1) weight transfer and
    each weight is resident exactly once in VMEM (no double buffering).
    """
    copies = [
        pltpu.make_async_copy(w1_hbm, w1_v, sem.at[0]),
        pltpu.make_async_copy(w2_hbm, w2_v, sem.at[1]),
        pltpu.make_async_copy(w3_hbm, w3_v, sem.at[2]),
        pltpu.make_async_copy(w4_hbm, w4_v, sem.at[3]),
    ]
    for cp in copies:
        cp.start()

    # Layer 1: Linear(feature_dim, 2000) + ReLU (bf16 operands, f32 MXU acc).
    copies[0].wait()
    h = jnp.dot(x_ref[...], w1_v[...], preferred_element_type=jnp.float32)
    h = jnp.maximum(h + b1_ref[...], 0.0).astype(jnp.bfloat16)

    # Layer 2: Linear(2000, 500) + ReLU.
    copies[1].wait()
    h = jnp.dot(h, w2_v[...], preferred_element_type=jnp.float32)
    h = jnp.maximum(h + b2_ref[...], 0.0).astype(jnp.bfloat16)

    # Layer 3: Linear(500, 500) + ReLU.
    copies[2].wait()
    h = jnp.dot(h, w3_v[...], preferred_element_type=jnp.float32)
    h = jnp.maximum(h + b3_ref[...], 0.0).astype(jnp.bfloat16)

    # Layer 4: Linear(500, input_dim)  (no activation).
    copies[3].wait()
    out = jnp.dot(h, w4_v[...], preferred_element_type=jnp.float32) + b4_ref[...]
    o_ref[...] = out.astype(o_ref.dtype)


def decoder_kernel_tiled(x_ref,
                         w1_ref, b1_ref,
                         w2_ref, b2_ref,
                         w3_ref, b3_ref,
                         w4_ref, b4_ref,
                         o_ref):
    """Multi-grid-step path: weights auto-pipelined (fetched once, constant maps)."""
    h = jnp.dot(x_ref[...], w1_ref[...], preferred_element_type=jnp.float32)
    h = jnp.maximum(h + b1_ref[...], 0.0).astype(jnp.bfloat16)
    h = jnp.dot(h, w2_ref[...], preferred_element_type=jnp.float32)
    h = jnp.maximum(h + b2_ref[...], 0.0).astype(jnp.bfloat16)
    h = jnp.dot(h, w3_ref[...], preferred_element_type=jnp.float32)
    h = jnp.maximum(h + b3_ref[...], 0.0).astype(jnp.bfloat16)
    out = jnp.dot(h, w4_ref[...], preferred_element_type=jnp.float32) + b4_ref[...]
    o_ref[...] = out.astype(o_ref.dtype)


# --------------------------------------------------------------------------- #
# Parameter packing / wrapper
# --------------------------------------------------------------------------- #
def pack_decoder_params(params):
    """Zero-pad all dims to multiples of 128; weights -> bf16, biases f32 (1, N).

    Call this ONCE and cache the result outside the jitted forward.
    """
    packed = {}
    for idx in range(1, 5):
        w = params[f"w{idx}"]
        b = params[f"b{idx}"].reshape(1, -1)
        kin = _round_up(w.shape[0], 128)
        kout = _round_up(w.shape[1], 128)
        wp = jnp.pad(w, ((0, kin - w.shape[0]), (0, kout - w.shape[1])))
        bp = jnp.pad(b, ((0, 0), (0, kout - b.shape[1])))
        packed[f"w{idx}"] = wp.astype(jnp.bfloat16)
        packed[f"b{idx}"] = bp.astype(jnp.float32)
    return packed


def decoder_forward(x, packed, out_dim, *, max_tile=None):
    """x: (B, feature_dim) f32.  packed: output of pack_decoder_params.

    Returns (B, out_dim) f32.
    """
    if max_tile is None:
        max_tile = _default_max_tile()

    B, feature_dim = x.shape
    w1, b1 = packed["w1"], packed["b1"]
    w2, b2 = packed["w2"], packed["b2"]
    w3, b3 = packed["w3"], packed["b3"]
    w4, b4 = packed["w4"], packed["b4"]
    K1, H1 = w1.shape
    H2, H3, N = w2.shape[1], w3.shape[1], w4.shape[1]

    # Batch tiling: multiples of 16 (bf16 sublane tile), up to max_tile rows.
    tb = min(_round_up(B, 16), max_tile)
    Bp = _round_up(B, tb)
    grid_steps = Bp // tb
    xp = jnp.pad(x, ((0, Bp - B), (0, K1 - feature_dim))).astype(jnp.bfloat16)

    flops = 2 * Bp * (K1 * H1 + H1 * H2 + H2 * H3 + H3 * N)
    weight_bytes = sum(int(packed[f"w{i}"].size) * 2 + int(packed[f"b{i}"].size) * 4
                       for i in range(1, 5))
    cost = pl.CostEstimate(
        flops=flops,
        transcendentals=0,
        bytes_accessed=int(xp.size) * 2 + weight_bytes + Bp * N * 4,
    )

    x_spec = pl.BlockSpec((tb, K1), lambda i: (i, 0))
    o_spec = pl.BlockSpec((tb, N), lambda i: (i, 0))

    def full(arr):  # whole (2-D) array as one block, fetched once
        return pl.BlockSpec(arr.shape, lambda i: (0, 0))

    vmem_limit = _vmem_limit_bytes()

    if grid_steps == 1:
        # Small batch: manual per-layer weight DMA, single-buffered weights.
        out = pl.pallas_call(
            decoder_kernel_streamed,
            out_shape=jax.ShapeDtypeStruct((Bp, N), jnp.float32),
            grid_spec=pltpu.PrefetchScalarGridSpec(
                num_scalar_prefetch=0,
                grid=(1,),
                in_specs=[
                    x_spec,
                    pl.BlockSpec(memory_space=pl.ANY),   # w1 stays in HBM
                    pl.BlockSpec(memory_space=pl.ANY),   # w2
                    pl.BlockSpec(memory_space=pl.ANY),   # w3
                    pl.BlockSpec(memory_space=pl.ANY),   # w4
                    full(b1), full(b2), full(b3), full(b4),
                ],
                out_specs=o_spec,
                scratch_shapes=[
                    pltpu.VMEM(w1.shape, jnp.bfloat16),
                    pltpu.VMEM(w2.shape, jnp.bfloat16),
                    pltpu.VMEM(w3.shape, jnp.bfloat16),
                    pltpu.VMEM(w4.shape, jnp.bfloat16),
                    pltpu.SemaphoreType.DMA((4,)),
                ]),
            compiler_params=pltpu.CompilerParams(
                dimension_semantics=("arbitrary",),
                vmem_limit_bytes=vmem_limit,
            ),
            cost_estimate=cost,
        )(xp, w1, w2, w3, w4, b1, b2, b3, b4)
    else:
        # Large batch: >=2 "parallel" grid steps (v7x megacore); weights are
        # auto-pipelined with constant index maps (fetched once).
        out = pl.pallas_call(
            decoder_kernel_tiled,
            out_shape=jax.ShapeDtypeStruct((Bp, N), jnp.float32),
            grid_spec=pltpu.PrefetchScalarGridSpec(
                num_scalar_prefetch=0,
                grid=(grid_steps,),
                in_specs=[
                    x_spec,
                    full(w1), full(b1),
                    full(w2), full(b2),
                    full(w3), full(b3),
                    full(w4), full(b4),
                ],
                out_specs=o_spec,
            ),
            compiler_params=pltpu.CompilerParams(
                dimension_semantics=("parallel",),
                vmem_limit_bytes=vmem_limit,
            ),
            cost_estimate=cost,
        )(xp, w1, b1, w2, b2, w3, b3, w4, b4)

    return out[:B, :out_dim]


# --------------------------------------------------------------------------- #
# Init / reference
# --------------------------------------------------------------------------- #
def init_decoder_params(key, input_dim, feature_dim):
    """PyTorch nn.Linear-like init (U[-1/sqrt(fan_in), 1/sqrt(fan_in)]), f32."""
    dims = [(feature_dim, 2000), (2000, 500), (500, 500), (500, input_dim)]
    params = {}
    for idx, (fan_in, fan_out) in enumerate(dims, start=1):
        key, kw, kb = jax.random.split(key, 3)
        bound = 1.0 / jnp.sqrt(float(fan_in))
        params[f"w{idx}"] = jax.random.uniform(
            kw, (fan_in, fan_out), jnp.float32, minval=-bound, maxval=bound)
        params[f"b{idx}"] = jax.random.uniform(
            kb, (1, fan_out), jnp.float32, minval=-bound, maxval=bound)
    return params


def decoder_reference(x, params):
    """Reference with math matched to the kernel: bf16 operands, f32 accumulation."""
    def lin(h, w, b):
        return jnp.dot(h.astype(jnp.bfloat16), w.astype(jnp.bfloat16),
                       preferred_element_type=jnp.float32) + b
    h = jnp.maximum(lin(x, params["w1"], params["b1"]), 0.0)
    h = jnp.maximum(lin(h, params["w2"], params["b2"]), 0.0)
    h = jnp.maximum(lin(h, params["w3"], params["b3"]), 0.0)
    return lin(h, params["w4"], params["b4"])


if __name__ == "__main__":
    key = jax.random.PRNGKey(0)
    kx1, kx2, kp = jax.random.split(key, 3)

    batch, feature_dim, input_dim = 16, 32, 64
    params = init_decoder_params(kp, input_dim=input_dim, feature_dim=feature_dim)
    packed = pack_decoder_params(params)   # pack ONCE, outside the jitted forward

    fwd = jax.jit(decoder_forward, static_argnames=("out_dim", "max_tile"))

    # Small batch -> grid=(1,): streamed-weight kernel (per-layer DMA overlap,
    # single-buffered weights).
    x_small = jax.random.normal(kx1, (batch, feature_dim), jnp.float32)
    out_small = jax.block_until_ready(fwd(x_small, packed, out_dim=input_dim))
    ref_small = decoder_reference(x_small, params)
    assert out_small.shape == (batch, input_dim)
    assert jnp.allclose(out_small, ref_small, atol=2e-2, rtol=2e-2), \
        "small-batch mismatch vs reference"

    # Larger ragged batch with a small max_tile -> multi-step "parallel" grid
    # (exercises the auto-pipelined tiled path + batch padding).
    big_batch = 208
    x_big = jax.random.normal(kx2, (big_batch, feature_dim), jnp.float32)
    out_big = jax.block_until_ready(
        fwd(x_big, packed, out_dim=input_dim, max_tile=64))
    ref_big = decoder_reference(x_big, params)
    assert out_big.shape == (big_batch, input_dim)
    assert jnp.allclose(out_big, ref_big, atol=2e-2, rtol=2e-2), \
        "large-batch mismatch vs reference"

    print("KERNEL_OK")
</pallas_src>

<mosaic_0001>
module attributes {stable_mosaic.version = 11 : i64} {
  func.func @decoder_kernel_streamed(%arg0: i32, %arg1: memref<16x128xbf16, #tpu.memory_space<vmem>>, %arg2: memref<128x2048xbf16, #tpu.memory_space<any>>, %arg3: memref<2048x512xbf16, #tpu.memory_space<any>>, %arg4: memref<512x512xbf16, #tpu.memory_space<any>>, %arg5: memref<512x128xbf16, #tpu.memory_space<any>>, %arg6: memref<1x2048xf32, #tpu.memory_space<vmem>>, %arg7: memref<1x512xf32, #tpu.memory_space<vmem>>, %arg8: memref<1x512xf32, #tpu.memory_space<vmem>>, %arg9: memref<1x128xf32, #tpu.memory_space<vmem>>, %arg10: memref<16x128xf32, #tpu.memory_space<vmem>>, %arg11: memref<128x2048xbf16, #tpu.memory_space<vmem>>, %arg12: memref<2048x512xbf16, #tpu.memory_space<vmem>>, %arg13: memref<512x512xbf16, #tpu.memory_space<vmem>>, %arg14: memref<512x128xbf16, #tpu.memory_space<vmem>>, %arg15: memref<4x!tpu.dma_semaphore, #tpu.memory_space<semaphore_mem>>) attributes {dimension_semantics = [#tpu.dimension_semantics<arbitrary>], iteration_bounds = array<i64: 1>, scalar_prefetch = 0 : i64, scratch_operands = 5 : i64, tpu.core_type = #tpu.core_type<tc>, window_params = [{transform_indices = @transform_0, window_bounds = array<i64: 16, 128>}, {}, {}, {}, {}, {pipeline_mode = #tpu.pipeline_mode<synchronous>, transform_indices = @transform_5, window_bounds = array<i64: 1, 2048>}, {pipeline_mode = #tpu.pipeline_mode<synchronous>, transform_indices = @transform_6, window_bounds = array<i64: 1, 512>}, {pipeline_mode = #tpu.pipeline_mode<synchronous>, transform_indices = @transform_7, window_bounds = array<i64: 1, 512>}, {pipeline_mode = #tpu.pipeline_mode<synchronous>, transform_indices = @transform_8, window_bounds = array<i64: 1, 128>}, {transform_indices = @transform_9, window_bounds = array<i64: 16, 128>}]} {
    %c0_i32 = arith.constant 0 : i32
    %0 = tpu.memref_slice %arg15[%c0_i32] : memref<4x!tpu.dma_semaphore, #tpu.memory_space<semaphore_mem>> -> memref<1x!tpu.dma_semaphore, #tpu.memory_space<semaphore_mem>>
    %1 = tpu.memref_squeeze %0 : memref<1x!tpu.dma_semaphore, #tpu.memory_space<semaphore_mem>> -> memref<!tpu.dma_semaphore, #tpu.memory_space<semaphore_mem>>
    tpu.enqueue_dma source(%arg2 : memref<128x2048xbf16, #tpu.memory_space<any>>) target(%arg11 : memref<128x2048xbf16, #tpu.memory_space<vmem>>) target_semaphore(%1 : memref<!tpu.dma_semaphore, #tpu.memory_space<semaphore_mem>>)
    %c1_i32 = arith.constant 1 : i32
    %2 = tpu.memref_slice %arg15[%c1_i32] : memref<4x!tpu.dma_semaphore, #tpu.memory_space<semaphore_mem>> -> memref<1x!tpu.dma_semaphore, #tpu.memory_space<semaphore_mem>>
    %3 = tpu.memref_squeeze %2 : memref<1x!tpu.dma_semaphore, #tpu.memory_space<semaphore_mem>> -> memref<!tpu.dma_semaphore, #tpu.memory_space<semaphore_mem>>
    tpu.enqueue_dma source(%arg3 : memref<2048x512xbf16, #tpu.memory_space<any>>) target(%arg12 : memref<2048x512xbf16, #tpu.memory_space<vmem>>) target_semaphore(%3 : memref<!tpu.dma_semaphore, #tpu.memory_space<semaphore_mem>>)
    %c2_i32 = arith.constant 2 : i32
    %4 = tpu.memref_slice %arg15[%c2_i32] : memref<4x!tpu.dma_semaphore, #tpu.memory_space<semaphore_mem>> -> memref<1x!tpu.dma_semaphore, #tpu.memory_space<semaphore_mem>>
    %5 = tpu.memref_squeeze %4 : memref<1x!tpu.dma_semaphore, #tpu.memory_space<semaphore_mem>> -> memref<!tpu.dma_semaphore, #tpu.memory_space<semaphore_mem>>
    tpu.enqueue_dma source(%arg4 : memref<512x512xbf16, #tpu.memory_space<any>>) target(%arg13 : memref<512x512xbf16, #tpu.memory_space<vmem>>) target_semaphore(%5 : memref<!tpu.dma_semaphore, #tpu.memory_space<semaphore_mem>>)
    %c3_i32 = arith.constant 3 : i32
    %6 = tpu.memref_slice %arg15[%c3_i32] : memref<4x!tpu.dma_semaphore, #tpu.memory_space<semaphore_mem>> -> memref<1x!tpu.dma_semaphore, #tpu.memory_space<semaphore_mem>>
    %7 = tpu.memref_squeeze %6 : memref<1x!tpu.dma_semaphore, #tpu.memory_space<semaphore_mem>> -> memref<!tpu.dma_semaphore, #tpu.memory_space<semaphore_mem>>
    tpu.enqueue_dma source(%arg5 : memref<512x128xbf16, #tpu.memory_space<any>>) target(%arg14 : memref<512x128xbf16, #tpu.memory_space<vmem>>) target_semaphore(%7 : memref<!tpu.dma_semaphore, #tpu.memory_space<semaphore_mem>>)
    %c0_i32_0 = arith.constant 0 : i32
    %8 = tpu.memref_slice %arg15[%c0_i32_0] : memref<4x!tpu.dma_semaphore, #tpu.memory_space<semaphore_mem>> -> memref<1x!tpu.dma_semaphore, #tpu.memory_space<semaphore_mem>>
    %9 = tpu.memref_squeeze %8 : memref<1x!tpu.dma_semaphore, #tpu.memory_space<semaphore_mem>> -> memref<!tpu.dma_semaphore, #tpu.memory_space<semaphore_mem>>
    tpu.wait_dma2 semaphore(%9 : memref<!tpu.dma_semaphore, #tpu.memory_space<semaphore_mem>>) src(%arg2 : memref<128x2048xbf16, #tpu.memory_space<any>>) dst(%arg11 : memref<128x2048xbf16, #tpu.memory_space<vmem>>)
    %c0 = arith.constant 0 : index
    %c0_1 = arith.constant 0 : index
    %10 = vector.load %arg1[%c0, %c0_1] : memref<16x128xbf16, #tpu.memory_space<vmem>>, vector<16x128xbf16>
    %c0_2 = arith.constant 0 : index
    %c0_3 = arith.constant 0 : index
    %11 = vector.load %arg11[%c0_2, %c0_3] : memref<128x2048xbf16, #tpu.memory_space<vmem>>, vector<128x2048xbf16>
    %cst = arith.constant dense<0.000000e+00> : vector<16x2048xf32>
    %12 = tpu.matmul %10, %11, %cst {dimension_numbers = #tpu.dot_dimension_numbers<[1], [0], [0], [1], [0, 0, 1, 1], [], []>} : vector<16x128xbf16>, vector<128x2048xbf16>, vector<16x2048xf32> -> vector<16x2048xf32>
    %c0_4 = arith.constant 0 : index
    %c0_5 = arith.constant 0 : index
    %13 = vector.load %arg6[%c0_4, %c0_5] : memref<1x2048xf32, #tpu.memory_space<vmem>>, vector<1x2048xf32>
    %14 = vector.broadcast %13 : vector<1x2048xf32> to vector<16x2048xf32>
    %15 = arith.addf %12, %14 : vector<16x2048xf32>
    %cst_6 = arith.constant 0.000000e+00 : f32
    %16 = vector.broadcast %cst_6 : f32 to vector<16x2048xf32>
    %17 = arith.maximumf %15, %16 : vector<16x2048xf32>
    %18 = arith.truncf %17 : vector<16x2048xf32> to vector<16x2048xbf16>
    %c1_i32_7 = arith.constant 1 : i32
    %19 = tpu.memref_slice %arg15[%c1_i32_7] : memref<4x!tpu.dma_semaphore, #tpu.memory_space<semaphore_mem>> -> memref<1x!tpu.dma_semaphore, #tpu.memory_space<semaphore_mem>>
    %20 = tpu.memref_squeeze %19 : memref<1x!tpu.dma_semaphore, #tpu.memory_space<semaphore_mem>> -> memref<!tpu.dma_semaphore, #tpu.memory_space<semaphore_mem>>
    tpu.wait_dma2 semaphore(%20 : memref<!tpu.dma_semaphore, #tpu.memory_space<semaphore_mem>>) src(%arg3 : memref<2048x512xbf16, #tpu.memory_space<any>>) dst(%arg12 : memref<2048x512xbf16, #tpu.memory_space<vmem>>)
    %c0_8 = arith.constant 0 : index
    %c0_9 = arith.constant 0 : index
    %21 = vector.load %arg12[%c0_8, %c0_9] : memref<2048x512xbf16, #tpu.memory_space<vmem>>, vector<2048x512xbf16>
    %cst_10 = arith.constant dense<0.000000e+00> : vector<16x512xf32>
    %22 = tpu.matmul %18, %21, %cst_10 {dimension_numbers = #tpu.dot_dimension_numbers<[1], [0], [0], [1], [0, 0, 1, 1], [], []>} : vector<16x2048xbf16>, vector<2048x512xbf16>, vector<16x512xf32> -> vector<16x512xf32>
    %c0_11 = arith.constant 0 : index
    %c0_12 = arith.constant 0 : index
    %23 = vector.load %arg7[%c0_11, %c0_12] : memref<1x512xf32, #tpu.memory_space<vmem>>, vector<1x512xf32>
    %24 = vector.broadcast %23 : vector<1x512xf32> to vector<16x512xf32>
    %25 = arith.addf %22, %24 : vector<16x512xf32>
    %cst_13 = arith.constant 0.000000e+00 : f32
    %26 = vector.broadcast %cst_13 : f32 to vector<16x512xf32>
    %27 = arith.maximumf %25, %26 : vector<16x512xf32>
    %28 = arith.truncf %27 : vector<16x512xf32> to vector<16x512xbf16>
    %c2_i32_14 = arith.constant 2 : i32
    %29 = tpu.memref_slice %arg15[%c2_i32_14] : memref<4x!tpu.dma_semaphore, #tpu.memory_space<semaphore_mem>> -> memref<1x!tpu.dma_semaphore, #tpu.memory_space<semaphore_mem>>
    %30 = tpu.memref_squeeze %29 : memref<1x!tpu.dma_semaphore, #tpu.memory_space<semaphore_mem>> -> memref<!tpu.dma_semaphore, #tpu.memory_space<semaphore_mem>>
    tpu.wait_dma2 semaphore(%30 : memref<!tpu.dma_semaphore, #tpu.memory_space<semaphore_mem>>) src(%arg4 : memref<512x512xbf16, #tpu.memory_space<any>>) dst(%arg13 : memref<512x512xbf16, #tpu.memory_space<vmem>>)
    %c0_15 = arith.constant 0 : index
    %c0_16 = arith.constant 0 : index
    %31 = vector.load %arg13[%c0_15, %c0_16] : memref<512x512xbf16, #tpu.memory_space<vmem>>, vector<512x512xbf16>
    %cst_17 = arith.constant dense<0.000000e+00> : vector<16x512xf32>
    %32 = tpu.matmul %28, %31, %cst_17 {dimension_numbers = #tpu.dot_dimension_numbers<[1], [0], [0], [1], [0, 0, 1, 1], [], []>} : vector<16x512xbf16>, vector<512x512xbf16>, vector<16x512xf32> -> vector<16x512xf32>
    %c0_18 = arith.constant 0 : index
    %c0_19 = arith.constant 0 : index
    %33 = vector.load %arg8[%c0_18, %c0_19] : memref<1x512xf32, #tpu.memory_space<vmem>>, vector<1x512xf32>
    %34 = vector.broadcast %33 : vector<1x512xf32> to vector<16x512xf32>
    %35 = arith.addf %32, %34 : vector<16x512xf32>
    %cst_20 = arith.constant 0.000000e+00 : f32
    %36 = vector.broadcast %cst_20 : f32 to vector<16x512xf32>
    %37 = arith.maximumf %35, %36 : vector<16x512xf32>
    %38 = arith.truncf %37 : vector<16x512xf32> to vector<16x512xbf16>
    %c3_i32_21 = arith.constant 3 : i32
    %39 = tpu.memref_slice %arg15[%c3_i32_21] : memref<4x!tpu.dma_semaphore, #tpu.memory_space<semaphore_mem>> -> memref<1x!tpu.dma_semaphore, #tpu.memory_space<semaphore_mem>>
    %40 = tpu.memref_squeeze %39 : memref<1x!tpu.dma_semaphore, #tpu.memory_space<semaphore_mem>> -> memref<!tpu.dma_semaphore, #tpu.memory_space<semaphore_mem>>
    tpu.wait_dma2 semaphore(%40 : memref<!tpu.dma_semaphore, #tpu.memory_space<semaphore_mem>>) src(%arg5 : memref<512x128xbf16, #tpu.memory_space<any>>) dst(%arg14 : memref<512x128xbf16, #tpu.memory_space<vmem>>)
    %c0_22 = arith.constant 0 : index
    %c0_23 = arith.constant 0 : index
    %41 = vector.load %arg14[%c0_22, %c0_23] : memref<512x128xbf16, #tpu.memory_space<vmem>>, vector<512x128xbf16>
    %cst_24 = arith.constant dense<0.000000e+00> : vector<16x128xf32>
    %42 = tpu.matmul %38, %41, %cst_24 {dimension_numbers = #tpu.dot_dimension_numbers<[1], [0], [0], [1], [0, 0, 1, 1], [], []>} : vector<16x512xbf16>, vector<512x128xbf16>, vector<16x128xf32> -> vector<16x128xf32>
    %c0_25 = arith.constant 0 : index
    %c0_26 = arith.constant 0 : index
    %43 = vector.load %arg9[%c0_25, %c0_26] : memref<1x128xf32, #tpu.memory_space<vmem>>, vector<1x128xf32>
    %44 = vector.broadcast %43 : vector<1x128xf32> to vector<16x128xf32>
    %45 = arith.addf %42, %44 : vector<16x128xf32>
    %c0_27 = arith.constant 0 : index
    %c0_28 = arith.constant 0 : index
    %46 = vector.load %arg10[%c0_27, %c0_28] : memref<16x128xf32, #tpu.memory_space<vmem>>, vector<16x128xf32>
    tpu.vector_store %arg10[%c0_27, %c0_28], %45 {strides = array<i32>} : memref<16x128xf32, #tpu.memory_space<vmem>>, vector<16x128xf32>,
    return
  }
  func.func @transform_0(%arg0: i32) -> (i32, i32) {
    %c0_i32 = arith.constant 0 : i32
    %c0_i32_0 = arith.constant 0 : i32
    return %arg0, %c0_i32 : i32, i32
  }
  func.func @transform_5(%arg0: i32) -> (i32, i32) {
    %c0_i32 = arith.constant 0 : i32
    %c0_i32_0 = arith.constant 0 : i32
    %c0_i32_1 = arith.constant 0 : i32
    return %c0_i32, %c0_i32_0 : i32, i32
  }
  func.func @transform_6(%arg0: i32) -> (i32, i32) {
    %c0_i32 = arith.constant 0 : i32
    %c0_i32_0 = arith.constant 0 : i32
    %c0_i32_1 = arith.constant 0 : i32
    return %c0_i32, %c0_i32_0 : i32, i32
  }
  func.func @transform_7(%arg0: i32) -> (i32, i32) {
    %c0_i32 = arith.constant 0 : i32
    %c0_i32_0 = arith.constant 0 : i32
    %c0_i32_1 = arith.constant 0 : i32
    return %c0_i32, %c0_i32_0 : i32, i32
  }
  func.func @transform_8(%arg0: i32) -> (i32, i32) {
    %c0_i32 = arith.constant 0 : i32
    %c0_i32_0 = arith.constant 0 : i32
    %c0_i32_1 = arith.constant 0 : i32
    return %c0_i32, %c0_i32_0 : i32, i32
  }
  func.func @transform_9(%arg0: i32) -> (i32, i32) {
    %c0_i32 = arith.constant 0 : i32
    %c0_i32_0 = arith.constant 0 : i32
    return %arg0, %c0_i32 : i32, i32
  }
}

</mosaic_0001>

<llo_original>
// kernel: decoder_forward.1
$region0: #{decoder_forward.1}
  #allocation0 [shape = 'u32[]', space=smem, size = 0x4, offset = 0x4, fixed_abs, tag = 'smem constant byte address 0x4 - core index']
  #allocation1 [shape = 'u32[72,128]{1,0:T(1,128)}', space=vmem, size = 0x9000, scoped, tag = 'internal scratch']
  #allocation2 [shape = 'bf16[128,2048]{1,0:T(8,128)(2,1)}', space=vmem, size = 0x80000, scoped, tag = 'scratch operand']
  #allocation3 [shape = 'bf16[2048,512]{1,0:T(8,128)(2,1)}', space=vmem, size = 0x200000, scoped, tag = 'scratch operand']
  #allocation4 [shape = 'bf16[512,512]{1,0:T(8,128)(2,1)}', space=vmem, size = 0x80000, scoped, tag = 'scratch operand']
  #allocation5 [shape = 'bf16[512,128]{1,0:T(8,128)(2,1)}', space=vmem, size = 0x20000, scoped, tag = 'scratch operand']
  #allocation6 [shape = 's32[4]{0}', space=sflag, size = 0x10, scoped, tag = 'scratch operand']
  #allocation16 [shape = 's32[]', space=sflag, size = 0x4, offset = 0, fixed_abs, tag = 'sflag constant byte address 0x0 - dummy sync flag']
  #allocation17 [shape = 's32[]', space=sflag, size = 0x4, offset = 0, fixed_abs, tag = 'sflag constant byte address 0x0 - dummy sync flag']
  #allocation18 [shape = 'u32[]', space=smem, size = 0x4, offset = 0x44, fixed_abs, tag = 'smem constant byte address 0x44 - assertion arg 0']
  #allocation19 [shape = 'u32[]', space=smem, size = 0x4, offset = 0x48, fixed_abs, tag = 'smem constant byte address 0x48 - assertion arg 1']
  #allocation20 [shape = 's32[]', space=sflag, size = 0x4, offset = 0, fixed_abs, tag = 'sflag constant byte address 0x0 - dummy sync flag']
  #allocation21 [shape = 's32[]', space=sflag, size = 0x4, offset = 0, fixed_abs, tag = 'sflag constant byte address 0x0 - dummy sync flag']
  #allocation22 [shape = 's32[]', space=sflag, size = 0x4, offset = 0, fixed_abs, tag = 'sflag constant byte address 0x0 - dummy sync flag']
  #allocation23 [shape = 's32[]', space=sflag, size = 0x4, offset = 0, fixed_abs, tag = 'sflag constant byte address 0x0 - dummy sync flag']
  #allocation24 [shape = 's32[]', space=sflag, size = 0x4, offset = 0, fixed_abs, tag = 'sflag constant byte address 0x0 - dummy sync flag']
  #allocation25 [shape = 's32[]', space=sflag, size = 0x4, offset = 0, fixed_abs, tag = 'sflag constant byte address 0x0 - dummy sync flag']
  %s0 = inlined_call_operand.vmem [shape: bf16[16,128], index: 0, kind: input, shape index: {}]
  %s1 = inlined_call_operand.hbm [shape: bf16[128,2048], index: 1, kind: input, shape index: {}]
  %s2 = inlined_call_operand.hbm [shape: bf16[2048,512], index: 2, kind: input, shape index: {}]
  %s3 = inlined_call_operand.hbm [shape: bf16[512,512], index: 3, kind: input, shape index: {}]
  %s4 = inlined_call_operand.hbm [shape: bf16[512,128], index: 4, kind: input, shape index: {}]
  %s5 = inlined_call_operand.hbm [shape: f32[1,2048], index: 5, kind: input, shape index: {}]
  %s6 = inlined_call_operand.hbm [shape: f32[1,512], index: 6, kind: input, shape index: {}]
  %s7 = inlined_call_operand.hbm [shape: f32[1,512], index: 7, kind: input, shape index: {}]
  %s8 = inlined_call_operand.hbm [shape: f32[1,128], index: 8, kind: input, shape index: {}]
  %s9 = inlined_call_operand.hbm [shape: f32[16,128], index: 9, kind: output, shape index: {}]
  %s10 = sld [smem:[#allocation0]]
  $region62: #{decoder_forward.1} parent=0
    _
  %s12 = ssub.s32 1, %s10
  %s13 = scalar_select 0, %s12, %s10
  $region1: #{decoder_forward.1} parent=0
    #allocation7 [shape = 'u8[8192]{0}', space=vmem, size = 0x2000, scoped, tag = 'input window, operand 5, single buffered']
    #allocation8 [shape = 's32[1]{0}', space=sflag, size = 0x4, scoped, tag = 'scoped memory for decoder_forward.1']
    #allocation9 [shape = 's32[1]{0}', space=sflag, size = 0x4, scoped, tag = 'scoped memory for decoder_forward.1']
    #allocation10 [shape = 'u8[2048]{0}', space=vmem, size = 0x800, scoped, tag = 'input window, operand 6, single buffered']
    #allocation11 [shape = 's32[1]{0}', space=sflag, size = 0x4, scoped, tag = 'scoped memory for decoder_forward.1']
    #allocation12 [shape = 'u8[2048]{0}', space=vmem, size = 0x800, scoped, tag = 'input window, operand 7, single buffered']
    #allocation13 [shape = 'u8[512]{0}', space=vmem, size = 0x400, scoped, tag = 'input window, operand 8, single buffered']
    #allocation14 [shape = 's32[1]{0}', space=sflag, size = 0x4, scoped, tag = 'scoped memory for decoder_forward.1']
    #allocation15 [shape = 'u8[8192]{0}', space=vmem, size = 0x2000, scoped, tag = 'output window, operand 0, single buffered']
    %14 = vsyncpa [#allocation8], 0
    %15 = vsyncpa [#allocation11], 0
    %16 = vsyncpa [#allocation14], 0
    %17 = vsyncpa [#allocation9], 0
    // Predicated region
    $region2: #{decoder_forward.1} parent=1 // pred_check
      _
    $region3: #{decoder_forward.1} parent=1 // pred_check_branch
      %19 = sbr.rel (0) target = $region5
    $region4: #{decoder_forward.1} parent=1 // pred_region
      _
    $region5: #{decoder_forward.1} parent=1 // pred_fallthru
      _
    // Predicated region
    $region6: #{decoder_forward.1} parent=1 // pred_check
      _
    $region7: #{decoder_forward.1} parent=1 // pred_check_branch
      %21 = sbr.rel (0) target = $region9
    $region8: #{decoder_forward.1} parent=1 // pred_region
      %23 = vsyncadd [#allocation8], 0
      %s25 = sshll.u32 %s5, 4
      %s26 = int_to_ptr.hbm [resolvable:$true] %s25
      %s27 = sshll.u32 [#allocation7], 4
      %s28 = int_to_ptr.vmem [resolvable:$true] %s27
      %30 = dma.hbm_to_vmem [thread:$0]  %s26, 256, %s28, [#allocation8]
    $region9: #{decoder_forward.1} parent=1 // pred_fallthru
      _
    // Predicated region
    $region10: #{decoder_forward.1} parent=1 // pred_check
      _
    $region11: #{decoder_forward.1} parent=1 // pred_check_branch
      %32 = sbr.rel (0) target = $region13
    $region12: #{decoder_forward.1} parent=1 // pred_region
      %34 = vsyncadd [#allocation11], 0
      %s36 = sshll.u32 %s6, 4
      %s37 = int_to_ptr.hbm [resolvable:$true] %s36
      %s38 = sshll.u32 [#allocation10], 4
      %s39 = int_to_ptr.vmem [resolvable:$true] %s38
      %41 = dma.hbm_to_vmem [thread:$0]  %s37, 64, %s39, [#allocation11]
    $region13: #{decoder_forward.1} parent=1 // pred_fallthru
      _
    // Predicated region
    $region14: #{decoder_forward.1} parent=1 // pred_check
      _
    $region15: #{decoder_forward.1} parent=1 // pred_check_branch
      %43 = sbr.rel (0) target = $region17
    $region16: #{decoder_forward.1} parent=1 // pred_region
      %45 = vsyncadd [#allocation11], 0
      %s47 = sshll.u32 %s7, 4
      %s48 = int_to_ptr.hbm [resolvable:$true] %s47
      %s49 = sshll.u32 [#allocation12], 4
      %s50 = int_to_ptr.vmem [resolvable:$true] %s49
      %52 = dma.hbm_to_vmem [thread:$0]  %s48, 64, %s50, [#allocation11]
    $region17: #{decoder_forward.1} parent=1 // pred_fallthru
      _
    // Predicated region
    $region18: #{decoder_forward.1} parent=1 // pred_check
      _
    $region19: #{decoder_forward.1} parent=1 // pred_check_branch
      %54 = sbr.rel (0) target = $region21
    $region20: #{decoder_forward.1} parent=1 // pred_region
      %56 = vsyncadd [#allocation14], 0
      %s58 = sshll.u32 %s8, 4
      %s59 = int_to_ptr.hbm [resolvable:$true] %s58
      %s60 = sshll.u32 [#allocation13], 4
      %s61 = int_to_ptr.vmem [resolvable:$true] %s60
      %63 = dma.hbm_to_vmem [thread:$0]  %s59, 16, %s61, [#allocation14]
    $region21: #{decoder_forward.1} parent=1 // pred_fallthru
      _
    // Predicated region
    $region22: #{decoder_forward.1} parent=1 // pred_check
      _
    $region23: #{decoder_forward.1} parent=1 // pred_check_branch
      %65 = sbr.rel (0) target = $region25
    $region24: #{decoder_forward.1} parent=1 // pred_region
      %67 = dma.done [#allocation8], 256
    $region25: #{decoder_forward.1} parent=1 // pred_fallthru
      _
    // Predicated region
    $region26: #{decoder_forward.1} parent=1 // pred_check
      _
    $region27: #{decoder_forward.1} parent=1 // pred_check_branch
      %69 = sbr.rel (0) target = $region29
    $region28: #{decoder_forward.1} parent=1 // pred_region
      %71 = dma.done [#allocation11], 64
    $region29: #{decoder_forward.1} parent=1 // pred_fallthru
      _
    // Predicated region
    $region30: #{decoder_forward.1} parent=1 // pred_check
      _
    $region31: #{decoder_forward.1} parent=1 // pred_check_branch
      %73 = sbr.rel (0) target = $region33
    $region32: #{decoder_forward.1} parent=1 // pred_region
      %75 = dma.done [#allocation11], 64
    $region33: #{decoder_forward.1} parent=1 // pred_fallthru
      _
    // Predicated region
    $region34: #{decoder_forward.1} parent=1 // pred_check
      _
    $region35: #{decoder_forward.1} parent=1 // pred_check_branch
      %77 = sbr.rel (0) target = $region37
    $region36: #{decoder_forward.1} parent=1 // pred_region
      %79 = dma.done [#allocation14], 16
    $region37: #{decoder_forward.1} parent=1 // pred_fallthru
      _
    // Predicated region
    $region38: #{decoder_forward.1} parent=1 // pred_check
      _
    $region39: #{decoder_forward.1} parent=1 // pred_check_branch
      %81 = sbr.rel target = $region41
    $region40: #{decoder_forward.1} parent=1 // pred_region
      %82 = sst [smem:[#allocation18]] [#allocation17]
      %83 = sst [smem:[#allocation19]] [#allocation16]
    $region41: #{decoder_forward.1} parent=1 // pred_fallthru
      _
    %85 = shalt.err (0)
    %s87 = sshll.u32 %s1, 4
    %s88 = int_to_ptr.hbm [resolvable:$true] %s87
    %s89 = sshll.u32 [#allocation2], 4
    %s90 = int_to_ptr.vmem [resolvable:$true] %s89
    %92 = dma.hbm_to_vmem [thread:$0]  %s88, 16384, %s90, [#allocation6]
    %s93 = scalar_lea.sflag [#allocation6], 1
    // Predicated region
    $region42: #{decoder_forward.1} parent=1 // pred_check
      _
    $region43: #{decoder_forward.1} parent=1 // pred_check_branch
      %95 = sbr.rel target = $region45
    $region44: #{decoder_forward.1} parent=1 // pred_region
      %96 = sst [smem:[#allocation18]] [#allocation21]
      %97 = sst [smem:[#allocation19]] [#allocation20]
    $region45: #{decoder_forward.1} parent=1 // pred_fallthru
      _
    %99 = shalt.err (0)
    %s101 = sshll.u32 %s2, 4
    %s102 = int_to_ptr.hbm [resolvable:$true] %s101
    %s103 = sshll.u32 [#allocation3], 4
    %s104 = int_to_ptr.vmem [resolvable:$true] %s103
    %106 = dma.hbm_to_vmem [thread:$0]  %s102, 65536, %s104, %s93
    %s107 = scalar_lea.sflag [#allocation6], 2
    // Predicated region
    $region46: #{decoder_forward.1} parent=1 // pred_check
      _
    $region47: #{decoder_forward.1} parent=1 // pred_check_branch
      %109 = sbr.rel target = $region49
    $region48: #{decoder_forward.1} parent=1 // pred_region
      %110 = sst [smem:[#allocation18]] [#allocation23]
      %111 = sst [smem:[#allocation19]] [#allocation22]
    $region49: #{decoder_forward.1} parent=1 // pred_fallthru
      _
    %113 = shalt.err (0)
    %s115 = sshll.u32 %s3, 4
    %s116 = int_to_ptr.hbm [resolvable:$true] %s115
    %s117 = sshll.u32 [#allocation4], 4
    %s118 = int_to_ptr.vmem [resolvable:$true] %s117
    %120 = dma.hbm_to_vmem [thread:$0]  %s116, 16384, %s118, %s107
    %s121 = scalar_lea.sflag [#allocation6], 3
    // Predicated region
    $region50: #{decoder_forward.1} parent=1 // pred_check
      _
    $region51: #{decoder_forward.1} parent=1 // pred_check_branch
      %123 = sbr.rel target = $region53
    $region52: #{decoder_forward.1} parent=1 // pred_region
      %124 = sst [smem:[#allocation18]] [#allocation25]
      %125 = sst [smem:[#allocation19]] [#allocation24]
    $region53: #{decoder_forward.1} parent=1 // pred_fallthru
      _
    %127 = shalt.err (0)
    %s129 = sshll.u32 %s4, 4
    %s130 = int_to_ptr.hbm [resolvable:$true] %s129
    %s131 = sshll.u32 [#allocation5], 4
    %s132 = int_to_ptr.vmem [resolvable:$true] %s131
    %134 = dma.hbm_to_vmem [thread:$0]  %s130, 4096, %s132, %s121
    %s135 = smul.u32 4, 16
    %s136 = smul.u32 %s135, 16
    %s137 = sshll.u32 %s136, 4
    %138 = dma.done [#allocation6], %s137
    %v139 = vld [vmem:[%s0] sm:$0xf]
    %v140 = vld [vmem:[%s0 + $0x4] sm:$0xf]
    %v141 = vld [vmem:[#allocation2] sm:$0xff]
    %v142 = vld [vmem:[#allocation2 + $0x8] sm:$0xff]
    %v143 = vld [vmem:[#allocation2 + $0x10] sm:$0xff]
    %v144 = vld [vmem:[#allocation2 + $0x18] sm:$0xff]
    %v145 = vld [vmem:[#allocation2 + $0x20] sm:$0xff]
    %v146 = vld [vmem:[#allocation2 + $0x28] sm:$0xff]
    %v147 = vld [vmem:[#allocation2 + $0x30] sm:$0xff]
    %v148 = vld [vmem:[#allocation2 + $0x38] sm:$0xff]
    %v149 = vld [vmem:[#allocation2 + $0x40] sm:$0xff]
    %v150 = vld [vmem:[#allocation2 + $0x48] sm:$0xff]
    %v151 = vld [vmem:[#allocation2 + $0x50] sm:$0xff]
    %v152 = vld [vmem:[#allocation2 + $0x58] sm:$0xff]
    %v153 = vld [vmem:[#allocation2 + $0x60] sm:$0xff]
    %v154 = vld [vmem:[#allocation2 + $0x68] sm:$0xff]
    %v155 = vld [vmem:[#allocation2 + $0x70] sm:$0xff]
    %v156 = vld [vmem:[#allocation2 + $0x78] sm:$0xff]
    %v157 = vld [vmem:[#allocation2 + $0x80] sm:$0xff]
    %v158 = vld [vmem:[#allocation2 + $0x88] sm:$0xff]
    %v159 = vld [vmem:[#allocation2 + $0x90] sm:$0xff]
    %v160 = vld [vmem:[#allocation2 + $0x98] sm:$0xff]
    %v161 = vld [vmem:[#allocation2 + $0xa0] sm:$0xff]
    %v162 = vld [vmem:[#allocation2 + $0xa8] sm:$0xff]
    %v163 = vld [vmem:[#allocation2 + $0xb0] sm:$0xff]
    %v164 = vld [vmem:[#allocation2 + $0xb8] sm:$0xff]
    %v165 = vld [vmem:[#allocation2 + $0xc0] sm:$0xff]
    %v166 = vld [vmem:[#allocation2 + $0xc8] sm:$0xff]
    %v167 = vld [vmem:[#allocation2 + $0xd0] sm:$0xff]
    %v168 = vld [vmem:[#allocation2 + $0xd8] sm:$0xff]
    %v169 = vld [vmem:[#allocation2 + $0xe0] sm:$0xff]
    %v170 = vld [vmem:[#allocation2 + $0xe8] sm:$0xff]
    %v171 = vld [vmem:[#allocation2 + $0xf0] sm:$0xff]
    %v172 = vld [vmem:[#allocation2 + $0xf8] sm:$0xff]
    %v173 = vld [vmem:[#allocation2 + $0x100] sm:$0xff]
    %v174 = vld [vmem:[#allocation2 + $0x108] sm:$0xff]
    %v175 = vld [vmem:[#allocation2 + $0x110] sm:$0xff]
    %v176 = vld [vmem:[#allocation2 + $0x118] sm:$0xff]
    %v177 = vld [vmem:[#allocation2 + $0x120] sm:$0xff]
    %v178 = vld [vmem:[#allocation2 + $0x128] sm:$0xff]
    %v179 = vld [vmem:[#allocation2 + $0x130] sm:$0xff]
    %v180 = vld [vmem:[#allocation2 + $0x138] sm:$0xff]
    %v181 = vld [vmem:[#allocation2 + $0x140] sm:$0xff]
    %v182 = vld [vmem:[#allocation2 + $0x148] sm:$0xff]
    %v183 = vld [vmem:[#allocation2 + $0x150] sm:$0xff]
    %v184 = vld [vmem:[#allocation2 + $0x158] sm:$0xff]
    %v185 = vld [vmem:[#allocation2 + $0x160] sm:$0xff]
    %v186 = vld [vmem:[#allocation2 + $0x168] sm:$0xff]
    %v187 = vld [vmem:[#allocation2 + $0x170] sm:$0xff]
    %v188 = vld [vmem:[#allocation2 + $0x178] sm:$0xff]
    %v189 = vld [vmem:[#allocation2 + $0x180] sm:$0xff]
    %v190 = vld [vmem:[#allocation2 + $0x188] sm:$0xff]
    %v191 = vld [vmem:[#allocation2 + $0x190] sm:$0xff]
    %v192 = vld [vmem:[#allocation2 + $0x198] sm:$0xff]
    %v193 = vld [vmem:[#allocation2 + $0x1a0] sm:$0xff]
    %v194 = vld [vmem:[#allocation2 + $0x1a8] sm:$0xff]
    %v195 = vld [vmem:[#allocation2 + $0x1b0] sm:$0xff]
    %v196 = vld [vmem:[#allocation2 + $0x1b8] sm:$0xff]
    %v197 = vld [vmem:[#allocation2 + $0x1c0] sm:$0xff]
    %v198 = vld [vmem:[#allocation2 + $0x1c8] sm:$0xff]
    %v199 = vld [vmem:[#allocation2 + $0x1d0] sm:$0xff]
    %v200 = vld [vmem:[#allocation2 + $0x1d8] sm:$0xff]
    %v201 = vld [vmem:[#allocation2 + $0x1e0] sm:$0xff]
    %v202 = vld [vmem:[#allocation2 + $0x1e8] sm:$0xff]
    %v203 = vld [vmem:[#allocation2 + $0x1f0] sm:$0xff]
    %v204 = vld [vmem:[#allocation2 + $0x1f8] sm:$0xff]
    %v205 = vld [vmem:[#allocation2 + $0x200] sm:$0xff]
    %v206 = vld [vmem:[#allocation2 + $0x208] sm:$0xff]
    %v207 = vld [vmem:[#allocation2 + $0x210] sm:$0xff]
    %v208 = vld [vmem:[#allocation2 + $0x218] sm:$0xff]
    %v209 = vld [vmem:[#allocation2 + $0x220] sm:$0xff]
    %v210 = vld [vmem:[#allocation2 + $0x228] sm:$0xff]
    %v211 = vld [vmem:[#allocation2 + $0x230] sm:$0xff]
    %v212 = vld [vmem:[#allocation2 + $0x238] sm:$0xff]
    %v213 = vld [vmem:[#allocation2 + $0x240] sm:$0xff]
    %v214 = vld [vmem:[#allocation2 + $0x248] sm:$0xff]
    %v215 = vld [vmem:[#allocation2 + $0x250] sm:$0xff]
    %v216 = vld [vmem:[#allocation2 + $0x258] sm:$0xff]
    %v217 = vld [vmem:[#allocation2 + $0x260] sm:$0xff]
    %v218 = vld [vmem:[#allocation2 + $0x268] sm:$0xff]
    %v219 = vld [vmem:[#allocation2 + $0x270] sm:$0xff]
    %v220 = vld [vmem:[#allocation2 + $0x278] sm:$0xff]
    %v221 = vld [vmem:[#allocation2 + $0x280] sm:$0xff]
    %v222 = vld [vmem:[#allocation2 + $0x288] sm:$0xff]
    %v223 = vld [vmem:[#allocation2 + $0x290] sm:$0xff]
    %v224 = vld [vmem:[#allocation2 + $0x298] sm:$0xff]
    %v225 = vld [vmem:[#allocation2 + $0x2a0] sm:$0xff]
    %v226 = vld [vmem:[#allocation2 + $0x2a8] sm:$0xff]
    %v227 = vld [vmem:[#allocation2 + $0x2b0] sm:$0xff]
    %v228 = vld [vmem:[#allocation2 + $0x2b8] sm:$0xff]
    %v229 = vld [vmem:[#allocation2 + $0x2c0] sm:$0xff]
    %v230 = vld [vmem:[#allocation2 + $0x2c8] sm:$0xff]
    %v231 = vld [vmem:[#allocation2 + $0x2d0] sm:$0xff]
    %v232 = vld [vmem:[#allocation2 + $0x2d8] sm:$0xff]
    %v233 = vld [vmem:[#allocation2 + $0x2e0] sm:$0xff]
    %v234 = vld [vmem:[#allocation2 + $0x2e8] sm:$0xff]
    %v235 = vld [vmem:[#allocation2 + $0x2f0] sm:$0xff]
    %v236 = vld [vmem:[#allocation2 + $0x2f8] sm:$0xff]
    %v237 = vld [vmem:[#allocation2 + $0x300] sm:$0xff]
    %v238 = vld [vmem:[#allocation2 + $0x308] sm:$0xff]
    %v239 = vld [vmem:[#allocation2 + $0x310] sm:$0xff]
    %v240 = vld [vmem:[#allocation2 + $0x318] sm:$0xff]
    %v241 = vld [vmem:[#allocation2 + $0x320] sm:$0xff]
    %v242 = vld [vmem:[#allocation2 + $0x328] sm:$0xff]
    %v243 = vld [vmem:[#allocation2 + $0x330] sm:$0xff]
    %v244 = vld [vmem:[#allocation2 + $0x338] sm:$0xff]
    %v245 = vld [vmem:[#allocation2 + $0x340] sm:$0xff]
    %v246 = vld [vmem:[#allocation2 + $0x348] sm:$0xff]
    %v247 = vld [vmem:[#allocation2 + $0x350] sm:$0xff]
    %v248 = vld [vmem:[#allocation2 + $0x358] sm:$0xff]
    %v249 = vld [vmem:[#allocation2 + $0x360] sm:$0xff]
    %v250 = vld [vmem:[#allocation2 + $0x368] sm:$0xff]
    %v251 = vld [vmem:[#allocation2 + $0x370] sm:$0xff]
    %v252 = vld [vmem:[#allocation2 + $0x378] sm:$0xff]
    %v253 = vld [vmem:[#allocation2 + $0x380] sm:$0xff]
    %v254 = vld [vmem:[#allocation2 + $0x388] sm:$0xff]
    %v255 = vld [vmem:[#allocation2 + $0x390] sm:$0xff]
    %v256 = vld [vmem:[#allocation2 + $0x398] sm:$0xff]
    %v257 = vld [vmem:[#allocation2 + $0x3a0] sm:$0xff]
    %v258 = vld [vmem:[#allocation2 + $0x3a8] sm:$0xff]
    %v259 = vld [vmem:[#allocation2 + $0x3b0] sm:$0xff]
    %v260 = vld [vmem:[#allocation2 + $0x3b8] sm:$0xff]
    %v261 = vld [vmem:[#allocation2 + $0x3c0] sm:$0xff]
    %v262 = vld [vmem:[#allocation2 + $0x3c8] sm:$0xff]
    %v263 = vld [vmem:[#allocation2 + $0x3d0] sm:$0xff]
    %v264 = vld [vmem:[#allocation2 + $0x3d8] sm:$0xff]
    %v265 = vld [vmem:[#allocation2 + $0x3e0] sm:$0xff]
    %v266 = vld [vmem:[#allocation2 + $0x3e8] sm:$0xff]
    %v267 = vld [vmem:[#allocation2 + $0x3f0] sm:$0xff]
    %v268 = vld [vmem:[#allocation2 + $0x3f8] sm:$0xff]
    %v269 = vld [vmem:[#allocation7] sm:$0xff]
    %v270 = vld [vmem:[#allocation7 + $0x8] sm:$0xff]
    %v273 = vperm.slane %v269, 0
    %v274 = vperm.slane %v269, 1
    %v275 = vperm.slane %v269, 2
    %v276 = vperm.slane %v269, 3
    %v277 = vperm.slane %v269, 4
    %v278 = vperm.slane %v269, 5
    %v279 = vperm.slane %v269, 6
    %v280 = vperm.slane %v269, 7
    %v281 = vperm.slane %v270, 0
    %v282 = vperm.slane %v270, 1
    %v283 = vperm.slane %v270, 2
    %v284 = vperm.slane %v270, 3
    %v285 = vperm.slane %v270, 4
    %v286 = vperm.slane %v270, 5
    %v287 = vperm.slane %v270, 6
    %v288 = vperm.slane %v270, 7
    %v307 = vunpack.c.l.b16 %v139
    %v308 = vunpack.c.l.b16 %v140
    %v309 = vpack.c.b16 %v308, %v307
    %v439 = vunpack.c.l.b16 %v141
    %v440 = vunpack.c.h.b16 %v141
    %v441 = vunpack.c.l.b16 %v142
    %v442 = vunpack.c.h.b16 %v142
    %v443 = vunpack.c.l.b16 %v143
    %v444 = vunpack.c.h.b16 %v143
    %v445 = vunpack.c.l.b16 %v144
    %v446 = vunpack.c.h.b16 %v144
    %v447 = vunpack.c.l.b16 %v145
    %v448 = vunpack.c.h.b16 %v145
    %v449 = vunpack.c.l.b16 %v146
    %v450 = vunpack.c.h.b16 %v146
    %v451 = vunpack.c.l.b16 %v147
    %v452 = vunpack.c.h.b16 %v147
    %v453 = vunpack.c.l.b16 %v148
    %v454 = vunpack.c.h.b16 %v148
    %v455 = vunpack.c.l.b16 %v149
    %v456 = vunpack.c.h.b16 %v149
    %v457 = vunpack.c.l.b16 %v150
    %v458 = vunpack.c.h.b16 %v150
    %v459 = vunpack.c.l.b16 %v151
    %v460 = vunpack.c.h.b16 %v151
    %v461 = vunpack.c.l.b16 %v152
    %v462 = vunpack.c.h.b16 %v152
    %v463 = vunpack.c.l.b16 %v153
    %v464 = vunpack.c.h.b16 %v153
    %v465 = vunpack.c.l.b16 %v154
    %v466 = vunpack.c.h.b16 %v154
    %v467 = vunpack.c.l.b16 %v155
    %v468 = vunpack.c.h.b16 %v155
    %v469 = vunpack.c.l.b16 %v156
    %v470 = vunpack.c.h.b16 %v156
    %v471 = vunpack.c.l.b16 %v157
    %v472 = vunpack.c.h.b16 %v157
    %v473 = vunpack.c.l.b16 %v158
    %v474 = vunpack.c.h.b16 %v158
    %v475 = vunpack.c.l.b16 %v159
    %v476 = vunpack.c.h.b16 %v159
    %v477 = vunpack.c.l.b16 %v160
    %v478 = vunpack.c.h.b16 %v160
    %v479 = vunpack.c.l.b16 %v161
    %v480 = vunpack.c.h.b16 %v161
    %v481 = vunpack.c.l.b16 %v162
    %v482 = vunpack.c.h.b16 %v162
    %v483 = vunpack.c.l.b16 %v163
    %v484 = vunpack.c.h.b16 %v163
    %v485 = vunpack.c.l.b16 %v164
    %v486 = vunpack.c.h.b16 %v164
    %v487 = vunpack.c.l.b16 %v165
    %v488 = vunpack.c.h.b16 %v165
    %v489 = vunpack.c.l.b16 %v166
    %v490 = vunpack.c.h.b16 %v166
    %v491 = vunpack.c.l.b16 %v167
    %v492 = vunpack.c.h.b16 %v167
    %v493 = vunpack.c.l.b16 %v168
    %v494 = vunpack.c.h.b16 %v168
    %v495 = vunpack.c.l.b16 %v169
    %v496 = vunpack.c.h.b16 %v169
    %v497 = vunpack.c.l.b16 %v170
    %v498 = vunpack.c.h.b16 %v170
    %v499 = vunpack.c.l.b16 %v171
    %v500 = vunpack.c.h.b16 %v171
    %v501 = vunpack.c.l.b16 %v172
    %v502 = vunpack.c.h.b16 %v172
    %v503 = vunpack.c.l.b16 %v173
    %v504 = vunpack.c.h.b16 %v173
    %v505 = vunpack.c.l.b16 %v174
    %v506 = vunpack.c.h.b16 %v174
    %v507 = vunpack.c.l.b16 %v175
    %v508 = vunpack.c.h.b16 %v175
    %v509 = vunpack.c.l.b16 %v176
    %v510 = vunpack.c.h.b16 %v176
    %v511 = vunpack.c.l.b16 %v177
    %v512 = vunpack.c.h.b16 %v177
    %v513 = vunpack.c.l.b16 %v178
    %v514 = vunpack.c.h.b16 %v178
    %v515 = vunpack.c.l.b16 %v179
    %v516 = vunpack.c.h.b16 %v179
    %v517 = vunpack.c.l.b16 %v180
    %v518 = vunpack.c.h.b16 %v180
    %v519 = vunpack.c.l.b16 %v181
    %v520 = vunpack.c.h.b16 %v181
    %v521 = vunpack.c.l.b16 %v182
    %v522 = vunpack.c.h.b16 %v182
    %v523 = vunpack.c.l.b16 %v183
    %v524 = vunpack.c.h.b16 %v183
    %v525 = vunpack.c.l.b16 %v184
    %v526 = vunpack.c.h.b16 %v184
    %v527 = vunpack.c.l.b16 %v185
    %v528 = vunpack.c.h.b16 %v185
    %v529 = vunpack.c.l.b16 %v186
    %v530 = vunpack.c.h.b16 %v186
    %v531 = vunpack.c.l.b16 %v187
    %v532 = vunpack.c.h.b16 %v187
    %v533 = vunpack.c.l.b16 %v188
    %v534 = vunpack.c.h.b16 %v188
    %v535 = vunpack.c.l.b16 %v189
    %v536 = vunpack.c.h.b16 %v189
    %v537 = vunpack.c.l.b16 %v190
    %v538 = vunpack.c.h.b16 %v190
    %v539 = vunpack.c.l.b16 %v191
    %v540 = vunpack.c.h.b16 %v191
    %v541 = vunpack.c.l.b16 %v192
    %v542 = vunpack.c.h.b16 %v192
    %v543 = vunpack.c.l.b16 %v193
    %v544 = vunpack.c.h.b16 %v193
    %v545 = vunpack.c.l.b16 %v194
    %v546 = vunpack.c.h.b16 %v194
    %v547 = vunpack.c.l.b16 %v195
    %v548 = vunpack.c.h.b16 %v195
    %v549 = vunpack.c.l.b16 %v196
    %v550 = vunpack.c.h.b16 %v196
    %v551 = vunpack.c.l.b16 %v197
    %v552 = vunpack.c.h.b16 %v197
    %v553 = vunpack.c.l.b16 %v198
    %v554 = vunpack.c.h.b16 %v198
    %v555 = vunpack.c.l.b16 %v199
    %v556 = vunpack.c.h.b16 %v199
    %v557 = vunpack.c.l.b16 %v200
    %v558 = vunpack.c.h.b16 %v200
    %v559 = vunpack.c.l.b16 %v201
    %v560 = vunpack.c.h.b16 %v201
    %v561 = vunpack.c.l.b16 %v202
    %v562 = vunpack.c.h.b16 %v202
    %v563 = vunpack.c.l.b16 %v203
    %v564 = vunpack.c.h.b16 %v203
    %v565 = vunpack.c.l.b16 %v204
    %v566 = vunpack.c.h.b16 %v204
    %v567 = vunpack.c.l.b16 %v205
    %v568 = vunpack.c.h.b16 %v205
    %v569 = vunpack.c.l.b16 %v206
    %v570 = vunpack.c.h.b16 %v206
    %v571 = vunpack.c.l.b16 %v207
    %v572 = vunpack.c.h.b16 %v207
    %v573 = vunpack.c.l.b16 %v208
    %v574 = vunpack.c.h.b16 %v208
    %v575 = vunpack.c.l.b16 %v209
    %v576 = vunpack.c.h.b16 %v209
    %v577 = vunpack.c.l.b16 %v210
    %v578 = vunpack.c.h.b16 %v210
    %v579 = vunpack.c.l.b16 %v211
    %v580 = vunpack.c.h.b16 %v211
    %v581 = vunpack.c.l.b16 %v212
    %v582 = vunpack.c.h.b16 %v212
    %v583 = vunpack.c.l.b16 %v213
    %v584 = vunpack.c.h.b16 %v213
    %v585 = vunpack.c.l.b16 %v214
    %v586 = vunpack.c.h.b16 %v214
    %v587 = vunpack.c.l.b16 %v215
    %v588 = vunpack.c.h.b16 %v215
    %v589 = vunpack.c.l.b16 %v216
    %v590 = vunpack.c.h.b16 %v216
    %v591 = vunpack.c.l.b16 %v217
    %v592 = vunpack.c.h.b16 %v217
    %v593 = vunpack.c.l.b16 %v218
    %v594 = vunpack.c.h.b16 %v218
    %v595 = vunpack.c.l.b16 %v219
    %v596 = vunpack.c.h.b16 %v219
    %v597 = vunpack.c.l.b16 %v220
    %v598 = vunpack.c.h.b16 %v220
    %v599 = vunpack.c.l.b16 %v221
    %v600 = vunpack.c.h.b16 %v221
    %v601 = vunpack.c.l.b16 %v222
    %v602 = vunpack.c.h.b16 %v222
    %v603 = vunpack.c.l.b16 %v223
    %v604 = vunpack.c.h.b16 %v223
    %v605 = vunpack.c.l.b16 %v224
    %v606 = vunpack.c.h.b16 %v224
    %v607 = vunpack.c.l.b16 %v225
    %v608 = vunpack.c.h.b16 %v225
    %v609 = vunpack.c.l.b16 %v226
    %v610 = vunpack.c.h.b16 %v226
    %v611 = vunpack.c.l.b16 %v227
    %v612 = vunpack.c.h.b16 %v227
    %v613 = vunpack.c.l.b16 %v228
    %v614 = vunpack.c.h.b16 %v228
    %v615 = vunpack.c.l.b16 %v229
    %v616 = vunpack.c.h.b16 %v229
    %v617 = vunpack.c.l.b16 %v230
    %v618 = vunpack.c.h.b16 %v230
    %v619 = vunpack.c.l.b16 %v231
    %v620 = vunpack.c.h.b16 %v231
    %v621 = vunpack.c.l.b16 %v232
    %v622 = vunpack.c.h.b16 %v232
    %v623 = vunpack.c.l.b16 %v233
    %v624 = vunpack.c.h.b16 %v233
    %v625 = vunpack.c.l.b16 %v234
    %v626 = vunpack.c.h.b16 %v234
    %v627 = vunpack.c.l.b16 %v235
    %v628 = vunpack.c.h.b16 %v235
    %v629 = vunpack.c.l.b16 %v236
    %v630 = vunpack.c.h.b16 %v236
    %v631 = vunpack.c.l.b16 %v237
    %v632 = vunpack.c.h.b16 %v237
    %v633 = vunpack.c.l.b16 %v238
    %v634 = vunpack.c.h.b16 %v238
    %v635 = vunpack.c.l.b16 %v239
    %v636 = vunpack.c.h.b16 %v239
    %v637 = vunpack.c.l.b16 %v240
    %v638 = vunpack.c.h.b16 %v240
    %v639 = vunpack.c.l.b16 %v241
    %v640 = vunpack.c.h.b16 %v241
    %v641 = vunpack.c.l.b16 %v242
    %v642 = vunpack.c.h.b16 %v242
    %v643 = vunpack.c.l.b16 %v243
    %v644 = vunpack.c.h.b16 %v243
    %v645 = vunpack.c.l.b16 %v244
    %v646 = vunpack.c.h.b16 %v244
    %v647 = vunpack.c.l.b16 %v245
    %v648 = vunpack.c.h.b16 %v245
    %v649 = vunpack.c.l.b16 %v246
    %v650 = vunpack.c.h.b16 %v246
    %v651 = vunpack.c.l.b16 %v247
    %v652 = vunpack.c.h.b16 %v247
    %v653 = vunpack.c.l.b16 %v248
    %v654 = vunpack.c.h.b16 %v248
    %v655 = vunpack.c.l.b16 %v249
    %v656 = vunpack.c.h.b16 %v249
    %v657 = vunpack.c.l.b16 %v250
    %v658 = vunpack.c.h.b16 %v250
    %v659 = vunpack.c.l.b16 %v251
    %v660 = vunpack.c.h.b16 %v251
    %v661 = vunpack.c.l.b16 %v252
    %v662 = vunpack.c.h.b16 %v252
    %v663 = vunpack.c.l.b16 %v253
    %v664 = vunpack.c.h.b16 %v253
    %v665 = vunpack.c.l.b16 %v254
    %v666 = vunpack.c.h.b16 %v254
    %v667 = vunpack.c.l.b16 %v255
    %v668 = vunpack.c.h.b16 %v255
    %v669 = vunpack.c.l.b16 %v256
    %v670 = vunpack.c.h.b16 %v256
    %v671 = vunpack.c.l.b16 %v257
    %v672 = vunpack.c.h.b16 %v257
    %v673 = vunpack.c.l.b16 %v258
    %v674 = vunpack.c.h.b16 %v258
    %v675 = vunpack.c.l.b16 %v259
    %v676 = vunpack.c.h.b16 %v259
    %v677 = vunpack.c.l.b16 %v260
    %v678 = vunpack.c.h.b16 %v260
    %v679 = vunpack.c.l.b16 %v261
    %v680 = vunpack.c.h.b16 %v261
    %v681 = vunpack.c.l.b16 %v262
    %v682 = vunpack.c.h.b16 %v262
    %v683 = vunpack.c.l.b16 %v263
    %v684 = vunpack.c.h.b16 %v263
    %v685 = vunpack.c.l.b16 %v264
    %v686 = vunpack.c.h.b16 %v264
    %v687 = vunpack.c.l.b16 %v265
    %v688 = vunpack.c.h.b16 %v265
    %v689 = vunpack.c.l.b16 %v266
    %v690 = vunpack.c.h.b16 %v266
    %v691 = vunpack.c.l.b16 %v267
    %v692 = vunpack.c.h.b16 %v267
    %v693 = vunpack.c.l.b16 %v268
    %v694 = vunpack.c.h.b16 %v268
    %v695 = vpack.c.b16 %v455, %v439
    %v696 = vpack.c.b16 %v456, %v440
    %v697 = vpack.c.b16 %v457, %v441
    %v698 = vpack.c.b16 %v458, %v442
    %v699 = vpack.c.b16 %v459, %v443
    %v700 = vpack.c.b16 %v460, %v444
    %v701 = vpack.c.b16 %v461, %v445
    %v702 = vpack.c.b16 %v462, %v446
    %v703 = vpack.c.b16 %v463, %v447
    %v704 = vpack.c.b16 %v464, %v448
    %v705 = vpack.c.b16 %v465, %v449
    %v706 = vpack.c.b16 %v466, %v450
    %v707 = vpack.c.b16 %v467, %v451
    %v708 = vpack.c.b16 %v468, %v452
    %v709 = vpack.c.b16 %v469, %v453
    %v710 = vpack.c.b16 %v470, %v454
    %v711 = vpack.c.b16 %v487, %v471
    %v712 = vpack.c.b16 %v488, %v472
    %v713 = vpack.c.b16 %v489, %v473
    %v714 = vpack.c.b16 %v490, %v474
    %v715 = vpack.c.b16 %v491, %v475
    %v716 = vpack.c.b16 %v492, %v476
    %v717 = vpack.c.b16 %v493, %v477
    %v718 = vpack.c.b16 %v494, %v478
    %v719 = vpack.c.b16 %v495, %v479
    %v720 = vpack.c.b16 %v496, %v480
    %v721 = vpack.c.b16 %v497, %v481
    %v722 = vpack.c.b16 %v498, %v482
    %v723 = vpack.c.b16 %v499, %v483
    %v724 = vpack.c.b16 %v500, %v484
    %v725 = vpack.c.b16 %v501, %v485
    %v726 = vpack.c.b16 %v502, %v486
    %v727 = vpack.c.b16 %v519, %v503
    %v728 = vpack.c.b16 %v520, %v504
    %v729 = vpack.c.b16 %v521, %v505
    %v730 = vpack.c.b16 %v522, %v506
    %v731 = vpack.c.b16 %v523, %v507
    %v732 = vpack.c.b16 %v524, %v508
    %v733 = vpack.c.b16 %v525, %v509
    %v734 = vpack.c.b16 %v526, %v510
    %v735 = vpack.c.b16 %v527, %v511
    %v736 = vpack.c.b16 %v528, %v512
    %v737 = vpack.c.b16 %v529, %v513
    %v738 = vpack.c.b16 %v530, %v514
    %v739 = vpack.c.b16 %v531, %v515
    %v740 = vpack.c.b16 %v532, %v516
    %v741 = vpack.c.b16 %v533, %v517
    %v742 = vpack.c.b16 %v534, %v518
    %v743 = vpack.c.b16 %v551, %v535
    %v744 = vpack.c.b16 %v552, %v536
    %v745 = vpack.c.b16 %v553, %v537
    %v746 = vpack.c.b16 %v554, %v538
    %v747 = vpack.c.b16 %v555, %v539
    %v748 = vpack.c.b16 %v556, %v540
    %v749 = vpack.c.b16 %v557, %v541
    %v750 = vpack.c.b16 %v558, %v542
    %v751 = vpack.c.b16 %v559, %v543
    %v752 = vpack.c.b16 %v560, %v544
    %v753 = vpack.c.b16 %v561, %v545
    %v754 = vpack.c.b16 %v562, %v546
    %v755 = vpack.c.b16 %v563, %v547
    %v756 = vpack.c.b16 %v564, %v548
    %v757 = vpack.c.b16 %v565, %v549
    %v758 = vpack.c.b16 %v566, %v550
    %v759 = vpack.c.b16 %v583, %v567
    %v760 = vpack.c.b16 %v584, %v568
    %v761 = vpack.c.b16 %v585, %v569
    %v762 = vpack.c.b16 %v586, %v570
    %v763 = vpack.c.b16 %v587, %v571
    %v764 = vpack.c.b16 %v588, %v572
    %v765 = vpack.c.b16 %v589, %v573
    %v766 = vpack.c.b16 %v590, %v574
    %v767 = vpack.c.b16 %v591, %v575
    %v768 = vpack.c.b16 %v592, %v576
    %v769 = vpack.c.b16 %v593, %v577
    %v770 = vpack.c.b16 %v594, %v578
    %v771 = vpack.c.b16 %v595, %v579
    %v772 = vpack.c.b16 %v596, %v580
    %v773 = vpack.c.b16 %v597, %v581
    %v774 = vpack.c.b16 %v598, %v582
    %v775 = vpack.c.b16 %v615, %v599
    %v776 = vpack.c.b16 %v616, %v600
    %v777 = vpack.c.b16 %v617, %v601
    %v778 = vpack.c.b16 %v618, %v602
    %v779 = vpack.c.b16 %v619, %v603
    %v780 = vpack.c.b16 %v620, %v604
    %v781 = vpack.c.b16 %v621, %v605
    %v782 = vpack.c.b16 %v622, %v606
    %v783 = vpack.c.b16 %v623, %v607
    %v784 = vpack.c.b16 %v624, %v608
    %v785 = vpack.c.b16 %v625, %v609
    %v786 = vpack.c.b16 %v626, %v610
    %v787 = vpack.c.b16 %v627, %v611
    %v788 = vpack.c.b16 %v628, %v612
    %v789 = vpack.c.b16 %v629, %v613
    %v790 = vpack.c.b16 %v630, %v614
    %v791 = vpack.c.b16 %v647, %v631
    %v792 = vpack.c.b16 %v648, %v632
    %v793 = vpack.c.b16 %v649, %v633
    %v794 = vpack.c.b16 %v650, %v634
    %v795 = vpack.c.b16 %v651, %v635
    %v796 = vpack.c.b16 %v652, %v636
    %v797 = vpack.c.b16 %v653, %v637
    %v798 = vpack.c.b16 %v654, %v638
    %v799 = vpack.c.b16 %v655, %v639
    %v800 = vpack.c.b16 %v656, %v640
    %v801 = vpack.c.b16 %v657, %v641
    %v802 = vpack.c.b16 %v658, %v642
    %v803 = vpack.c.b16 %v659, %v643
    %v804 = vpack.c.b16 %v660, %v644
    %v805 = vpack.c.b16 %v661, %v645
    %v806 = vpack.c.b16 %v662, %v646
    %v807 = vpack.c.b16 %v679, %v663
    %v808 = vpack.c.b16 %v680, %v664
    %v809 = vpack.c.b16 %v681, %v665
    %v810 = vpack.c.b16 %v682, %v666
    %v811 = vpack.c.b16 %v683, %v667
    %v812 = vpack.c.b16 %v684, %v668
    %v813 = vpack.c.b16 %v685, %v669
    %v814 = vpack.c.b16 %v686, %v670
    %v815 = vpack.c.b16 %v687, %v671
    %v816 = vpack.c.b16 %v688, %v672
    %v817 = vpack.c.b16 %v689, %v673
    %v818 = vpack.c.b16 %v690, %v674
    %v819 = vpack.c.b16 %v691, %v675
    %v820 = vpack.c.b16 %v692, %v676
    %v821 = vpack.c.b16 %v693, %v677
    %v822 = vpack.c.b16 %v694, %v678
    %951 = vmatpush.bf16.msra.mxu0 %v807
    %952 = vmatpush.bf16.msra.mxu0 %v791
    %953 = vmatpush.bf16.msra.mxu0 %v775
    %954 = vmatpush.bf16.msra.mxu0 %v759
    %955 = vmatpush.bf16.msra.mxu0 %v743
    %956 = vmatpush.bf16.msra.mxu0 %v727
    %957 = vmatpush.bf16.msra.mxu0 %v711
    %958 = vmatpush.bf16.msra.mxu0 %v695
    %959 = vmatmul.bf16.gmra.mxu0 %v309
    %v960 = vpop.f32.mrf.mxu0
    %v961 = vadd.f32 %v273, %v960
    %v962 = vpop.f32.mrf.mxu0
    %v963 = vadd.f32 %v273, %v962
    %964 = vdwg.mxu0
    %965 = vmatpush.bf16.msra.mxu0 %v808
    %966 = vmatpush.bf16.msra.mxu0 %v792
    %967 = vmatpush.bf16.msra.mxu0 %v776
    %968 = vmatpush.bf16.msra.mxu0 %v760
    %969 = vmatpush.bf16.msra.mxu0 %v744
    %970 = vmatpush.bf16.msra.mxu0 %v728
    %971 = vmatpush.bf16.msra.mxu0 %v712
    %972 = vmatpush.bf16.msra.mxu0 %v696
    %973 = vmatmul.bf16.gmra.mxu0 %v309
    %v974 = vpop.f32.mrf.mxu0
    %v975 = vadd.f32 %v274, %v974
    %v976 = vpop.f32.mrf.mxu0
    %v977 = vadd.f32 %v274, %v976
    %978 = vdwg.mxu0
    %979 = vmatpush.bf16.msra.mxu0 %v809
    %980 = vmatpush.bf16.msra.mxu0 %v793
    %981 = vmatpush.bf16.msra.mxu0 %v777
    %982 = vmatpush.bf16.msra.mxu0 %v761
    %983 = vmatpush.bf16.msra.mxu0 %v745
    %984 = vmatpush.bf16.msra.mxu0 %v729
    %985 = vmatpush.bf16.msra.mxu0 %v713
    %986 = vmatpush.bf16.msra.mxu0 %v697
    %987 = vmatmul.bf16.gmra.mxu0 %v309
    %v988 = vpop.f32.mrf.mxu0
    %v989 = vadd.f32 %v275, %v988
    %v990 = vpop.f32.mrf.mxu0
    %v991 = vadd.f32 %v275, %v990
    %992 = vdwg.mxu0
    %993 = vmatpush.bf16.msra.mxu0 %v810
    %994 = vmatpush.bf16.msra.mxu0 %v794
    %995 = vmatpush.bf16.msra.mxu0 %v778
    %996 = vmatpush.bf16.msra.mxu0 %v762
    %997 = vmatpush.bf16.msra.mxu0 %v746
    %998 = vmatpush.bf16.msra.mxu0 %v730
    %999 = vmatpush.bf16.msra.mxu0 %v714
    %1000 = vmatpush.bf16.msra.mxu0 %v698
    %1001 = vmatmul.bf16.gmra.mxu0 %v309
    %v1002 = vpop.f32.mrf.mxu0
    %v1003 = vadd.f32 %v276, %v1002
    %v1004 = vpop.f32.mrf.mxu0
    %v1005 = vadd.f32 %v276, %v1004
    %1006 = vdwg.mxu0
    %1007 = vmatpush.bf16.msra.mxu0 %v811
    %1008 = vmatpush.bf16.msra.mxu0 %v795
    %1009 = vmatpush.bf16.msra.mxu0 %v779
    %1010 = vmatpush.bf16.msra.mxu0 %v763
    %1011 = vmatpush.bf16.msra.mxu0 %v747
    %1012 = vmatpush.bf16.msra.mxu0 %v731
    %1013 = vmatpush.bf16.msra.mxu0 %v715
    %1014 = vmatpush.bf16.msra.mxu0 %v699
    %1015 = vmatmul.bf16.gmra.mxu0 %v309
    %v1016 = vpop.f32.mrf.mxu0
    %v1017 = vadd.f32 %v277, %v1016
    %v1018 = vpop.f32.mrf.mxu0
    %v1019 = vadd.f32 %v277, %v1018
    %1020 = vdwg.mxu0
    %1021 = vmatpush.bf16.msra.mxu0 %v812
    %1022 = vmatpush.bf16.msra.mxu0 %v796
    %1023 = vmatpush.bf16.msra.mxu0 %v780
    %1024 = vmatpush.bf16.msra.mxu0 %v764
    %1025 = vmatpush.bf16.msra.mxu0 %v748
    %1026 = vmatpush.bf16.msra.mxu0 %v732
    %1027 = vmatpush.bf16.msra.mxu0 %v716
    %1028 = vmatpush.bf16.msra.mxu0 %v700
    %1029 = vmatmul.bf16.gmra.mxu0 %v309
    %v1030 = vpop.f32.mrf.mxu0
    %v1031 = vadd.f32 %v278, %v1030
    %v1032 = vpop.f32.mrf.mxu0
    %v1033 = vadd.f32 %v278, %v1032
    %1034 = vdwg.mxu0
    %1035 = vmatpush.bf16.msra.mxu0 %v813
    %1036 = vmatpush.bf16.msra.mxu0 %v797
    %1037 = vmatpush.bf16.msra.mxu0 %v781
    %1038 = vmatpush.bf16.msra.mxu0 %v765
    %1039 = vmatpush.bf16.msra.mxu0 %v749
    %1040 = vmatpush.bf16.msra.mxu0 %v733
    %1041 = vmatpush.bf16.msra.mxu0 %v717
    %1042 = vmatpush.bf16.msra.mxu0 %v701
    %1043 = vmatmul.bf16.gmra.mxu0 %v309
    %v1044 = vpop.f32.mrf.mxu0
    %v1045 = vadd.f32 %v279, %v1044
    %v1046 = vpop.f32.mrf.mxu0
    %v1047 = vadd.f32 %v279, %v1046
    %1048 = vdwg.mxu0
    %1049 = vmatpush.bf16.msra.mxu0 %v814
    %1050 = vmatpush.bf16.msra.mxu0 %v798
    %1051 = vmatpush.bf16.msra.mxu0 %v782
    %1052 = vmatpush.bf16.msra.mxu0 %v766
    %1053 = vmatpush.bf16.msra.mxu0 %v750
    %1054 = vmatpush.bf16.msra.mxu0 %v734
    %1055 = vmatpush.bf16.msra.mxu0 %v718
    %1056 = vmatpush.bf16.msra.mxu0 %v702
    %1057 = vmatmul.bf16.gmra.mxu0 %v309
    %v1058 = vpop.f32.mrf.mxu0
    %v1059 = vadd.f32 %v280, %v1058
    %v1060 = vpop.f32.mrf.mxu0
    %v1061 = vadd.f32 %v280, %v1060
    %1062 = vdwg.mxu0
    %1063 = vmatpush.bf16.msra.mxu0 %v815
    %1064 = vmatpush.bf16.msra.mxu0 %v799
    %1065 = vmatpush.bf16.msra.mxu0 %v783
    %1066 = vmatpush.bf16.msra.mxu0 %v767
    %1067 = vmatpush.bf16.msra.mxu0 %v751
    %1068 = vmatpush.bf16.msra.mxu0 %v735
    %1069 = vmatpush.bf16.msra.mxu0 %v719
    %1070 = vmatpush.bf16.msra.mxu0 %v703
    %1071 = vmatmul.bf16.gmra.mxu0 %v309
    %v1072 = vpop.f32.mrf.mxu0
    %v1073 = vadd.f32 %v281, %v1072
    %v1074 = vpop.f32.mrf.mxu0
    %v1075 = vadd.f32 %v281, %v1074
    %1076 = vdwg.mxu0
    %1077 = vmatpush.bf16.msra.mxu0 %v816
    %1078 = vmatpush.bf16.msra.mxu0 %v800
    %1079 = vmatpush.bf16.msra.mxu0 %v784
    %1080 = vmatpush.bf16.msra.mxu0 %v768
    %1081 = vmatpush.bf16.msra.mxu0 %v752
    %1082 = vmatpush.bf16.msra.mxu0 %v736
    %1083 = vmatpush.bf16.msra.mxu0 %v720
    %1084 = vmatpush.bf16.msra.mxu0 %v704
    %1085 = vmatmul.bf16.gmra.mxu0 %v309
    %v1086 = vpop.f32.mrf.mxu0
    %v1087 = vadd.f32 %v282, %v1086
    %v1088 = vpop.f32.mrf.mxu0
    %v1089 = vadd.f32 %v282, %v1088
    %1090 = vdwg.mxu0
    %1091 = vmatpush.bf16.msra.mxu0 %v817
    %1092 = vmatpush.bf16.msra.mxu0 %v801
    %1093 = vmatpush.bf16.msra.mxu0 %v785
    %1094 = vmatpush.bf16.msra.mxu0 %v769
    %1095 = vmatpush.bf16.msra.mxu0 %v753
    %1096 = vmatpush.bf16.msra.mxu0 %v737
    %1097 = vmatpush.bf16.msra.mxu0 %v721
    %1098 = vmatpush.bf16.msra.mxu0 %v705
    %1099 = vmatmul.bf16.gmra.mxu0 %v309
    %v1100 = vpop.f32.mrf.mxu0
    %v1101 = vadd.f32 %v283, %v1100
    %v1102 = vpop.f32.mrf.mxu0
    %v1103 = vadd.f32 %v283, %v1102
    %1104 = vdwg.mxu0
    %1105 = vmatpush.bf16.msra.mxu0 %v818
    %1106 = vmatpush.bf16.msra.mxu0 %v802
    %1107 = vmatpush.bf16.msra.mxu0 %v786
    %1108 = vmatpush.bf16.msra.mxu0 %v770
    %1109 = vmatpush.bf16.msra.mxu0 %v754
    %1110 = vmatpush.bf16.msra.mxu0 %v738
    %1111 = vmatpush.bf16.msra.mxu0 %v722
    %1112 = vmatpush.bf16.msra.mxu0 %v706
    %1113 = vmatmul.bf16.gmra.mxu0 %v309
    %v1114 = vpop.f32.mrf.mxu0
    %v1115 = vadd.f32 %v284, %v1114
    %v1116 = vpop.f32.mrf.mxu0
    %v1117 = vadd.f32 %v284, %v1116
    %1118 = vdwg.mxu0
    %1119 = vmatpush.bf16.msra.mxu0 %v819
    %1120 = vmatpush.bf16.msra.mxu0 %v803
    %1121 = vmatpush.bf16.msra.mxu0 %v787
    %1122 = vmatpush.bf16.msra.mxu0 %v771
    %1123 = vmatpush.bf16.msra.mxu0 %v755
    %1124 = vmatpush.bf16.msra.mxu0 %v739
    %1125 = vmatpush.bf16.msra.mxu0 %v723
    %1126 = vmatpush.bf16.msra.mxu0 %v707
    %1127 = vmatmul.bf16.gmra.mxu0 %v309
    %v1128 = vpop.f32.mrf.mxu0
    %v1129 = vadd.f32 %v285, %v1128
    %v1130 = vpop.f32.mrf.mxu0
    %v1131 = vadd.f32 %v285, %v1130
    %1132 = vdwg.mxu0
    %1133 = vmatpush.bf16.msra.mxu0 %v820
    %1134 = vmatpush.bf16.msra.mxu0 %v804
    %1135 = vmatpush.bf16.msra.mxu0 %v788
    %1136 = vmatpush.bf16.msra.mxu0 %v772
    %1137 = vmatpush.bf16.msra.mxu0 %v756
    %1138 = vmatpush.bf16.msra.mxu0 %v740
    %1139 = vmatpush.bf16.msra.mxu0 %v724
    %1140 = vmatpush.bf16.msra.mxu0 %v708
    %1141 = vmatmul.bf16.gmra.mxu0 %v309
    %v1142 = vpop.f32.mrf.mxu0
    %v1143 = vadd.f32 %v286, %v1142
    %v1144 = vpop.f32.mrf.mxu0
    %v1145 = vadd.f32 %v286, %v1144
    %1146 = vdwg.mxu0
    %1147 = vmatpush.bf16.msra.mxu0 %v821
    %1148 = vmatpush.bf16.msra.mxu0 %v805
    %1149 = vmatpush.bf16.msra.mxu0 %v789
    %1150 = vmatpush.bf16.msra.mxu0 %v773
    %1151 = vmatpush.bf16.msra.mxu0 %v757
    %1152 = vmatpush.bf16.msra.mxu0 %v741
    %1153 = vmatpush.bf16.msra.mxu0 %v725
    %1154 = vmatpush.bf16.msra.mxu0 %v709
    %1155 = vmatmul.bf16.gmra.mxu0 %v309
    %v1156 = vpop.f32.mrf.mxu0
    %v1157 = vadd.f32 %v287, %v1156
    %v1158 = vpop.f32.mrf.mxu0
    %v1159 = vadd.f32 %v287, %v1158
    %1160 = vdwg.mxu0
    %1161 = vmatpush.bf16.msra.mxu0 %v822
    %1162 = vmatpush.bf16.msra.mxu0 %v806
    %1163 = vmatpush.bf16.msra.mxu0 %v790
    %1164 = vmatpush.bf16.msra.mxu0 %v774
    %1165 = vmatpush.bf16.msra.mxu0 %v758
    %1166 = vmatpush.bf16.msra.mxu0 %v742
    %1167 = vmatpush.bf16.msra.mxu0 %v726
    %1168 = vmatpush.bf16.msra.mxu0 %v710
    %1169 = vmatmul.bf16.gmra.mxu0 %v309
    %v1170 = vpop.f32.mrf.mxu0
    %v1171 = vadd.f32 %v288, %v1170
    %v1172 = vpop.f32.mrf.mxu0
    %v1173 = vadd.f32 %v288, %v1172
    %1174 = vdwg.mxu0
    %v1175 = vmax.f32 %v961, 0.0
    %v1176 = vmax.f32 %v975, 0.0
    %v1177 = vmax.f32 %v989, 0.0
    %v1178 = vmax.f32 %v1003, 0.0
    %v1179 = vmax.f32 %v1017, 0.0
    %v1180 = vmax.f32 %v1031, 0.0
    %v1181 = vmax.f32 %v1045, 0.0
    %v1182 = vmax.f32 %v1059, 0.0
    %v1183 = vmax.f32 %v1073, 0.0
    %v1184 = vmax.f32 %v1087, 0.0
    %v1185 = vmax.f32 %v1101, 0.0
    %v1186 = vmax.f32 %v1115, 0.0
    %v1187 = vmax.f32 %v1129, 0.0
    %v1188 = vmax.f32 %v1143, 0.0
    %v1189 = vmax.f32 %v1157, 0.0
    %v1190 = vmax.f32 %v1171, 0.0
    %v1191 = vmax.f32 %v963, 0.0
    %v1192 = vmax.f32 %v977, 0.0
    %v1193 = vmax.f32 %v991, 0.0
    %v1194 = vmax.f32 %v1005, 0.0
    %v1195 = vmax.f32 %v1019, 0.0
    %v1196 = vmax.f32 %v1033, 0.0
    %v1197 = vmax.f32 %v1047, 0.0
    %v1198 = vmax.f32 %v1061, 0.0
    %v1199 = vmax.f32 %v1075, 0.0
    %v1200 = vmax.f32 %v1089, 0.0
    %v1201 = vmax.f32 %v1103, 0.0
    %v1202 = vmax.f32 %v1117, 0.0
    %v1203 = vmax.f32 %v1131, 0.0
    %v1204 = vmax.f32 %v1145, 0.0
    %v1205 = vmax.f32 %v1159, 0.0
    %v1206 = vmax.f32 %v1173, 0.0
    %v1207 = vpack.c.bf16 %v1191, %v1175
    %v1208 = vpack.c.bf16 %v1192, %v1176
    %v1209 = vpack.c.bf16 %v1193, %v1177
    %v1210 = vpack.c.bf16 %v1194, %v1178
    %v1211 = vpack.c.bf16 %v1195, %v1179
    %v1212 = vpack.c.bf16 %v1196, %v1180
    %v1213 = vpack.c.bf16 %v1197, %v1181
    %v1214 = vpack.c.bf16 %v1198, %v1182
    %v1215 = vpack.c.bf16 %v1199, %v1183
    %v1216 = vpack.c.bf16 %v1200, %v1184
    %v1217 = vpack.c.bf16 %v1201, %v1185
    %v1218 = vpack.c.bf16 %v1202, %v1186
    %v1219 = vpack.c.bf16 %v1203, %v1187
    %v1220 = vpack.c.bf16 %v1204, %v1188
    %v1221 = vpack.c.bf16 %v1205, %v1189
    %v1222 = vpack.c.bf16 %v1206, %v1190
    %s1223 = smul.u32 4, 256
    %s1224 = smul.u32 %s1223, 4
    %s1225 = sshll.u32 %s1224, 4
    %1226 = dma.done %s93, %s1225
    %v1227 = vld [vmem:[#allocation3] sm:$0xff]
    %v1228 = vld [vmem:[#allocation3 + $0x8] sm:$0xff]
    %v1229 = vld [vmem:[#allocation3 + $0x10] sm:$0xff]
    %v1230 = vld [vmem:[#allocation3 + $0x18] sm:$0xff]
    %v1231 = vld [vmem:[#allocation3 + $0x20] sm:$0xff]
    %v1232 = vld [vmem:[#allocation3 + $0x28] sm:$0xff]
    %v1233 = vld [vmem:[#allocation3 + $0x30] sm:$0xff]
    %v1234 = vld [vmem:[#allocation3 + $0x38] sm:$0xff]
    %v1235 = vld [vmem:[#allocation3 + $0x40] sm:$0xff]
    %v1236 = vld [vmem:[#allocation3 + $0x48] sm:$0xff]
    %v1237 = vld [vmem:[#allocation3 + $0x50] sm:$0xff]
    %v1238 = vld [vmem:[#allocation3 + $0x58] sm:$0xff]
    %v1239 = vld [vmem:[#allocation3 + $0x60] sm:$0xff]
    %v1240 = vld [vmem:[#allocation3 + $0x68] sm:$0xff]
    %v1241 = vld [vmem:[#allocation3 + $0x70] sm:$0xff]
    %v1242 = vld [vmem:[#allocation3 + $0x78] sm:$0xff]
    %v1243 = vld [vmem:[#allocation3 + $0x80] sm:$0xff]
    %v1244 = vld [vmem:[#allocation3 + $0x88] sm:$0xff]
    %v1245 = vld [vmem:[#allocation3 + $0x90] sm:$0xff]
    %v1246 = vld [vmem:[#allocation3 + $0x98] sm:$0xff]
    %v1247 = vld [vmem:[#allocation3 + $0xa0] sm:$0xff]
    %v1248 = vld [vmem:[#allocation3 + $0xa8] sm:$0xff]
    %v1249 = vld [vmem:[#allocation3 + $0xb0] sm:$0xff]
    %v1250 = vld [vmem:[#allocation3 + $0xb8] sm:$0xff]
    %v1251 = vld [vmem:[#allocation3 + $0xc0] sm:$0xff]
    %v1252 = vld [vmem:[#allocation3 + $0xc8] sm:$0xff]
    %v1253 = vld [vmem:[#allocation3 + $0xd0] sm:$0xff]
    %v1254 = vld [vmem:[#allocation3 + $0xd8] sm:$0xff]
    %v1255 = vld [vmem:[#allocation3 + $0xe0] sm:$0xff]
    %v1256 = vld [vmem:[#allocation3 + $0xe8] sm:$0xff]
    %v1257 = vld [vmem:[#allocation3 + $0xf0] sm:$0xff]
    %v1258 = vld [vmem:[#allocation3 + $0xf8] sm:$0xff]
    %v1259 = vld [vmem:[#allocation3 + $0x100] sm:$0xff]
    %v1260 = vld [vmem:[#allocation3 + $0x108] sm:$0xff]
    %v1261 = vld [vmem:[#allocation3 + $0x110] sm:$0xff]
    %v1262 = vld [vmem:[#allocation3 + $0x118] sm:$0xff]
    %v1263 = vld [vmem:[#allocation3 + $0x120] sm:$0xff]
    %v1264 = vld [vmem:[#allocation3 + $0x128] sm:$0xff]
    %v1265 = vld [vmem:[#allocation3 + $0x130] sm:$0xff]
    %v1266 = vld [vmem:[#allocation3 + $0x138] sm:$0xff]
    %v1267 = vld [vmem:[#allocation3 + $0x140] sm:$0xff]
    %v1268 = vld [vmem:[#allocation3 + $0x148] sm:$0xff]
    %v1269 = vld [vmem:[#allocation3 + $0x150] sm:$0xff]
    %v1270 = vld [vmem:[#allocation3 + $0x158] sm:$0xff]
    %v1271 = vld [vmem:[#allocation3 + $0x160] sm:$0xff]
    %v1272 = vld [vmem:[#allocation3 + $0x168] sm:$0xff]
    %v1273 = vld [vmem:[#allocation3 + $0x170] sm:$0xff]
    %v1274 = vld [vmem:[#allocation3 + $0x178] sm:$0xff]
    %v1275 = vld [vmem:[#allocation3 + $0x180] sm:$0xff]
    %v1276 = vld [vmem:[#allocation3 + $0x188] sm:$0xff]
    %v1277 = vld [vmem:[#allocation3 + $0x190] sm:$0xff]
    %v1278 = vld [vmem:[#allocation3 + $0x198] sm:$0xff]
    %v1279 = vld [vmem:[#allocation3 + $0x1a0] sm:$0xff]
    %v1280 = vld [vmem:[#allocation3 + $0x1a8] sm:$0xff]
    %v1281 = vld [vmem:[#allocation3 + $0x1b0] sm:$0xff]
    %v1282 = vld [vmem:[#allocation3 + $0x1b8] sm:$0xff]
    %v1283 = vld [vmem:[#allocation3 + $0x1c0] sm:$0xff]
    %v1284 = vld [vmem:[#allocation3 + $0x1c8] sm:$0xff]
    %v1285 = vld [vmem:[#allocation3 + $0x1d0] sm:$0xff]
    %v1286 = vld [vmem:[#allocation3 + $0x1d8] sm:$0xff]
    %v1287 = vld [vmem:[#allocation3 + $0x1e0] sm:$0xff]
    %v1288 = vld [vmem:[#allocation3 + $0x1e8] sm:$0xff]
    %v1289 = vld [vmem:[#allocation3 + $0x1f0] sm:$0xff]
    %v1290 = vld [vmem:[#allocation3 + $0x1f8] sm:$0xff]
    %v1291 = vld [vmem:[#allocation3 + $0x200] sm:$0xff]
    %v1292 = vld [vmem:[#allocation3 + $0x208] sm:$0xff]
    %v1293 = vld [vmem:[#allocation3 + $0x210] sm:$0xff]
    %v1294 = vld [vmem:[#allocation3 + $0x218] sm:$0xff]
    %v1295 = vld [vmem:[#allocation3 + $0x220] sm:$0xff]
    %v1296 = vld [vmem:[#allocation3 + $0x228] sm:$0xff]
    %v1297 = vld [vmem:[#allocation3 + $0x230] sm:$0xff]
    %v1298 = vld [vmem:[#allocation3 + $0x238] sm:$0xff]
    %v1299 = vld [vmem:[#allocation3 + $0x240] sm:$0xff]
    %v1300 = vld [vmem:[#allocation3 + $0x248] sm:$0xff]
    %v1301 = vld [vmem:[#allocation3 + $0x250] sm:$0xff]
    %v1302 = vld [vmem:[#allocation3 + $0x258] sm:$0xff]
    %v1303 = vld [vmem:[#allocation3 + $0x260] sm:$0xff]
    %v1304 = vld [vmem:[#allocation3 + $0x268] sm:$0xff]
    %v1305 = vld [vmem:[#allocation3 + $0x270] sm:$0xff]
    %v1306 = vld [vmem:[#allocation3 + $0x278] sm:$0xff]
    %v1307 = vld [vmem:[#allocation3 + $0x280] sm:$0xff]
    %v1308 = vld [vmem:[#allocation3 + $0x288] sm:$0xff]
    %v1309 = vld [vmem:[#allocation3 + $0x290] sm:$0xff]
    %v1310 = vld [vmem:[#allocation3 + $0x298] sm:$0xff]
    %v1311 = vld [vmem:[#allocation3 + $0x2a0] sm:$0xff]
    %v1312 = vld [vmem:[#allocation3 + $0x2a8] sm:$0xff]
    %v1313 = vld [vmem:[#allocation3 + $0x2b0] sm:$0xff]
    %v1314 = vld [vmem:[#allocation3 + $0x2b8] sm:$0xff]
    %v1315 = vld [vmem:[#allocation3 + $0x2c0] sm:$0xff]
    %v1316 = vld [vmem:[#allocation3 + $0x2c8] sm:$0xff]
    %v1317 = vld [vmem:[#allocation3 + $0x2d0] sm:$0xff]
    %v1318 = vld [vmem:[#allocation3 + $0x2d8] sm:$0xff]
    %v1319 = vld [vmem:[#allocation3 + $0x2e0] sm:$0xff]
    %v1320 = vld [vmem:[#allocation3 + $0x2e8] sm:$0xff]
    %v1321 = vld [vmem:[#allocation3 + $0x2f0] sm:$0xff]
    %v1322 = vld [vmem:[#allocation3 + $0x2f8] sm:$0xff]
    %v1323 = vld [vmem:[#allocation3 + $0x300] sm:$0xff]
    %v1324 = vld [vmem:[#allocation3 + $0x308] sm:$0xff]
    %v1325 = vld [vmem:[#allocation3 + $0x310] sm:$0xff]
    %v1326 = vld [vmem:[#allocation3 + $0x318] sm:$0xff]
    %v1327 = vld [vmem:[#allocation3 + $0x320] sm:$0xff]
    %v1328 = vld [vmem:[#allocation3 + $0x328] sm:$0xff]
    %v1329 = vld [vmem:[#allocation3 + $0x330] sm:$0xff]
    %v1330 = vld [vmem:[#allocation3 + $0x338] sm:$0xff]
    %v1331 = vld [vmem:[#allocation3 + $0x340] sm:$0xff]
    %v1332 = vld [vmem:[#allocation3 + $0x348] sm:$0xff]
    %v1333 = vld [vmem:[#allocation3 + $0x350] sm:$0xff]
    %v1334 = vld [vmem:[#allocation3 + $0x358] sm:$0xff]
    %v1335 = vld [vmem:[#allocation3 + $0x360] sm:$0xff]
    %v1336 = vld [vmem:[#allocation3 + $0x368] sm:$0xff]
    %v1337 = vld [vmem:[#allocation3 + $0x370] sm:$0xff]
    %v1338 = vld [vmem:[#allocation3 + $0x378] sm:$0xff]
    %v1339 = vld [vmem:[#allocation3 + $0x380] sm:$0xff]
    %v1340 = vld [vmem:[#allocation3 + $0x388] sm:$0xff]
    %v1341 = vld [vmem:[#allocation3 + $0x390] sm:$0xff]
    %v1342 = vld [vmem:[#allocation3 + $0x398] sm:$0xff]
    %v1343 = vld [vmem:[#allocation3 + $0x3a0] sm:$0xff]
    %v1344 = vld [vmem:[#allocation3 + $0x3a8] sm:$0xff]
    %v1345 = vld [vmem:[#allocation3 + $0x3b0] sm:$0xff]
    %v1346 = vld [vmem:[#allocation3 + $0x3b8] sm:$0xff]
    %v1347 = vld [vmem:[#allocation3 + $0x3c0] sm:$0xff]
    %v1348 = vld [vmem:[#allocation3 + $0x3c8] sm:$0xff]
    %v1349 = vld [vmem:[#allocation3 + $0x3d0] sm:$0xff]
    %v1350 = vld [vmem:[#allocation3 + $0x3d8] sm:$0xff]
    %v1351 = vld [vmem:[#allocation3 + $0x3e0] sm:$0xff]
    %v1352 = vld [vmem:[#allocation3 + $0x3e8] sm:$0xff]
    %v1353 = vld [vmem:[#allocation3 + $0x3f0] sm:$0xff]
    %v1354 = vld [vmem:[#allocation3 + $0x3f8] sm:$0xff]
    %v1355 = vld [vmem:[#allocation3 + $0x400] sm:$0xff]
    %v1356 = vld [vmem:[#allocation3 + $0x408] sm:$0xff]
    %v1357 = vld [vmem:[#allocation3 + $0x410] sm:$0xff]
    %v1358 = vld [vmem:[#allocation3 + $0x418] sm:$0xff]
    %v1359 = vld [vmem:[#allocation3 + $0x420] sm:$0xff]
    %v1360 = vld [vmem:[#allocation3 + $0x428] sm:$0xff]
    %v1361 = vld [vmem:[#allocation3 + $0x430] sm:$0xff]
    %v1362 = vld [vmem:[#allocation3 + $0x438] sm:$0xff]
    %v1363 = vld [vmem:[#allocation3 + $0x440] sm:$0xff]
    %v1364 = vld [vmem:[#allocation3 + $0x448] sm:$0xff]
    %v1365 = vld [vmem:[#allocation3 + $0x450] sm:$0xff]
    %v1366 = vld [vmem:[#allocation3 + $0x458] sm:$0xff]
    %v1367 = vld [vmem:[#allocation3 + $0x460] sm:$0xff]
    %v1368 = vld [vmem:[#allocation3 + $0x468] sm:$0xff]
    %v1369 = vld [vmem:[#allocation3 + $0x470] sm:$0xff]
    %v1370 = vld [vmem:[#allocation3 + $0x478] sm:$0xff]
    %v1371 = vld [vmem:[#allocation3 + $0x480] sm:$0xff]
    %v1372 = vld [vmem:[#allocation3 + $0x488] sm:$0xff]
    %v1373 = vld [vmem:[#allocation3 + $0x490] sm:$0xff]
    %v1374 = vld [vmem:[#allocation3 + $0x498] sm:$0xff]
    %v1375 = vld [vmem:[#allocation3 + $0x4a0] sm:$0xff]
    %v1376 = vld [vmem:[#allocation3 + $0x4a8] sm:$0xff]
    %v1377 = vld [vmem:[#allocation3 + $0x4b0] sm:$0xff]
    %v1378 = vld [vmem:[#allocation3 + $0x4b8] sm:$0xff]
    %v1379 = vld [vmem:[#allocation3 + $0x4c0] sm:$0xff]
    %v1380 = vld [vmem:[#allocation3 + $0x4c8] sm:$0xff]
    %v1381 = vld [vmem:[#allocation3 + $0x4d0] sm:$0xff]
    %v1382 = vld [vmem:[#allocation3 + $0x4d8] sm:$0xff]
    %v1383 = vld [vmem:[#allocation3 + $0x4e0] sm:$0xff]
    %v1384 = vld [vmem:[#allocation3 + $0x4e8] sm:$0xff]
    %v1385 = vld [vmem:[#allocation3 + $0x4f0] sm:$0xff]
    %v1386 = vld [vmem:[#allocation3 + $0x4f8] sm:$0xff]
    %v1387 = vld [vmem:[#allocation3 + $0x500] sm:$0xff]
    %v1388 = vld [vmem:[#allocation3 + $0x508] sm:$0xff]
    %v1389 = vld [vmem:[#allocation3 + $0x510] sm:$0xff]
    %v1390 = vld [vmem:[#allocation3 + $0x518] sm:$0xff]
    %v1391 = vld [vmem:[#allocation3 + $0x520] sm:$0xff]
    %v1392 = vld [vmem:[#allocation3 + $0x528] sm:$0xff]
    %v1393 = vld [vmem:[#allocation3 + $0x530] sm:$0xff]
    %v1394 = vld [vmem:[#allocation3 + $0x538] sm:$0xff]
    %v1395 = vld [vmem:[#allocation3 + $0x540] sm:$0xff]
    %v1396 = vld [vmem:[#allocation3 + $0x548] sm:$0xff]
    %v1397 = vld [vmem:[#allocation3 + $0x550] sm:$0xff]
    %v1398 = vld [vmem:[#allocation3 + $0x558] sm:$0xff]
    %v1399 = vld [vmem:[#allocation3 + $0x560] sm:$0xff]
    %v1400 = vld [vmem:[#allocation3 + $0x568] sm:$0xff]
    %v1401 = vld [vmem:[#allocation3 + $0x570] sm:$0xff]
    %v1402 = vld [vmem:[#allocation3 + $0x578] sm:$0xff]
    %v1403 = vld [vmem:[#allocation3 + $0x580] sm:$0xff]
    %v1404 = vld [vmem:[#allocation3 + $0x588] sm:$0xff]
    %v1405 = vld [vmem:[#allocation3 + $0x590] sm:$0xff]
    %v1406 = vld [vmem:[#allocation3 + $0x598] sm:$0xff]
    %v1407 = vld [vmem:[#allocation3 + $0x5a0] sm:$0xff]
    %v1408 = vld [vmem:[#allocation3 + $0x5a8] sm:$0xff]
    %v1409 = vld [vmem:[#allocation3 + $0x5b0] sm:$0xff]
    %v1410 = vld [vmem:[#allocation3 + $0x5b8] sm:$0xff]
    %v1411 = vld [vmem:[#allocation3 + $0x5c0] sm:$0xff]
    %v1412 = vld [vmem:[#allocation3 + $0x5c8] sm:$0xff]
    %v1413 = vld [vmem:[#allocation3 + $0x5d0] sm:$0xff]
    %v1414 = vld [vmem:[#allocation3 + $0x5d8] sm:$0xff]
    %v1415 = vld [vmem:[#allocation3 + $0x5e0] sm:$0xff]
    %v1416 = vld [vmem:[#allocation3 + $0x5e8] sm:$0xff]
    %v1417 = vld [vmem:[#allocation3 + $0x5f0] sm:$0xff]
    %v1418 = vld [vmem:[#allocation3 + $0x5f8] sm:$0xff]
    %v1419 = vld [vmem:[#allocation3 + $0x600] sm:$0xff]
    %v1420 = vld [vmem:[#allocation3 + $0x608] sm:$0xff]
    %v1421 = vld [vmem:[#allocation3 + $0x610] sm:$0xff]
    %v1422 = vld [vmem:[#allocation3 + $0x618] sm:$0xff]
    %v1423 = vld [vmem:[#allocation3 + $0x620] sm:$0xff]
    %v1424 = vld [vmem:[#allocation3 + $0x628] sm:$0xff]
    %v1425 = vld [vmem:[#allocation3 + $0x630] sm:$0xff]
    %v1426 = vld [vmem:[#allocation3 + $0x638] sm:$0xff]
    %v1427 = vld [vmem:[#allocation3 + $0x640] sm:$0xff]
    %v1428 = vld [vmem:[#allocation3 + $0x648] sm:$0xff]
    %v1429 = vld [vmem:[#allocation3 + $0x650] sm:$0xff]
    %v1430 = vld [vmem:[#allocation3 + $0x658] sm:$0xff]
    %v1431 = vld [vmem:[#allocation3 + $0x660] sm:$0xff]
    %v1432 = vld [vmem:[#allocation3 + $0x668] sm:$0xff]
    %v1433 = vld [vmem:[#allocation3 + $0x670] sm:$0xff]
    %v1434 = vld [vmem:[#allocation3 + $0x678] sm:$0xff]
    %v1435 = vld [vmem:[#allocation3 + $0x680] sm:$0xff]
    %v1436 = vld [vmem:[#allocation3 + $0x688] sm:$0xff]
    %v1437 = vld [vmem:[#allocation3 + $0x690] sm:$0xff]
    %v1438 = vld [vmem:[#allocation3 + $0x698] sm:$0xff]
    %v1439 = vld [vmem:[#allocation3 + $0x6a0] sm:$0xff]
    %v1440 = vld [vmem:[#allocation3 + $0x6a8] sm:$0xff]
    %v1441 = vld [vmem:[#allocation3 + $0x6b0] sm:$0xff]
    %v1442 = vld [vmem:[#allocation3 + $0x6b8] sm:$0xff]
    %v1443 = vld [vmem:[#allocation3 + $0x6c0] sm:$0xff]
    %v1444 = vld [vmem:[#allocation3 + $0x6c8] sm:$0xff]
    %v1445 = vld [vmem:[#allocation3 + $0x6d0] sm:$0xff]
    %v1446 = vld [vmem:[#allocation3 + $0x6d8] sm:$0xff]
    %v1447 = vld [vmem:[#allocation3 + $0x6e0] sm:$0xff]
    %v1448 = vld [vmem:[#allocation3 + $0x6e8] sm:$0xff]
    %v1449 = vld [vmem:[#allocation3 + $0x6f0] sm:$0xff]
    %v1450 = vld [vmem:[#allocation3 + $0x6f8] sm:$0xff]
    %v1451 = vld [vmem:[#allocation3 + $0x700] sm:$0xff]
    %v1452 = vld [vmem:[#allocation3 + $0x708] sm:$0xff]
    %v1453 = vld [vmem:[#allocation3 + $0x710] sm:$0xff]
    %v1454 = vld [vmem:[#allocation3 + $0x718] sm:$0xff]
    %v1455 = vld [vmem:[#allocation3 + $0x720] sm:$0xff]
    %v1456 = vld [vmem:[#allocation3 + $0x728] sm:$0xff]
    %v1457 = vld [vmem:[#allocation3 + $0x730] sm:$0xff]
    %v1458 = vld [vmem:[#allocation3 + $0x738] sm:$0xff]
    %v1459 = vld [vmem:[#allocation3 + $0x740] sm:$0xff]
    %v1460 = vld [vmem:[#allocation3 + $0x748] sm:$0xff]
    %v1461 = vld [vmem:[#allocation3 + $0x750] sm:$0xff]
    %v1462 = vld [vmem:[#allocation3 + $0x758] sm:$0xff]
    %v1463 = vld [vmem:[#allocation3 + $0x760] sm:$0xff]
    %v1464 = vld [vmem:[#allocation3 + $0x768] sm:$0xff]
    %v1465 = vld [vmem:[#allocation3 + $0x770] sm:$0xff]
    %v1466 = vld [vmem:[#allocation3 + $0x778] sm:$0xff]
    %v1467 = vld [vmem:[#allocation3 + $0x780] sm:$0xff]
    %v1468 = vld [vmem:[#allocation3 + $0x788] sm:$0xff]
    %v1469 = vld [vmem:[#allocation3 + $0x790] sm:$0xff]
    %v1470 = vld [vmem:[#allocation3 + $0x798] sm:$0xff]
    %v1471 = vld [vmem:[#allocation3 + $0x7a0] sm:$0xff]
    %v1472 = vld [vmem:[#allocation3 + $0x7a8] sm:$0xff]
    %v1473 = vld [vmem:[#allocation3 + $0x7b0] sm:$0xff]
    %v1474 = vld [vmem:[#allocation3 + $0x7b8] sm:$0xff]
    %v1475 = vld [vmem:[#allocation3 + $0x7c0] sm:$0xff]
    %v1476 = vld [vmem:[#allocation3 + $0x7c8] sm:$0xff]
    %v1477 = vld [vmem:[#allocation3 + $0x7d0] sm:$0xff]
    %v1478 = vld [vmem:[#allocation3 + $0x7d8] sm:$0xff]
    %v1479 = vld [vmem:[#allocation3 + $0x7e0] sm:$0xff]
    %v1480 = vld [vmem:[#allocation3 + $0x7e8] sm:$0xff]
    %v1481 = vld [vmem:[#allocation3 + $0x7f0] sm:$0xff]
    %v1482 = vld [vmem:[#allocation3 + $0x7f8] sm:$0xff]
    %v1483 = vld [vmem:[#allocation3 + $0x800] sm:$0xff]
    %v1484 = vld [vmem:[#allocation3 + $0x808] sm:$0xff]
    %v1485 = vld [vmem:[#allocation3 + $0x810] sm:$0xff]
    %v1486 = vld [vmem:[#allocation3 + $0x818] sm:$0xff]
    %v1487 = vld [vmem:[#allocation3 + $0x820] sm:$0xff]
    %v1488 = vld [vmem:[#allocation3 + $0x828] sm:$0xff]
    %v1489 = vld [vmem:[#allocation3 + $0x830] sm:$0xff]
    %v1490 = vld [vmem:[#allocation3 + $0x838] sm:$0xff]
    %v1491 = vld [vmem:[#allocation3 + $0x840] sm:$0xff]
    %v1492 = vld [vmem:[#allocation3 + $0x848] sm:$0xff]
    %v1493 = vld [vmem:[#allocation3 + $0x850] sm:$0xff]
    %v1494 = vld [vmem:[#allocation3 + $0x858] sm:$0xff]
    %v1495 = vld [vmem:[#allocation3 + $0x860] sm:$0xff]
    %v1496 = vld [vmem:[#allocation3 + $0x868] sm:$0xff]
    %v1497 = vld [vmem:[#allocation3 + $0x870] sm:$0xff]
    %v1498 = vld [vmem:[#allocation3 + $0x878] sm:$0xff]
    %v1499 = vld [vmem:[#allocation3 + $0x880] sm:$0xff]
    %v1500 = vld [vmem:[#allocation3 + $0x888] sm:$0xff]
    %v1501 = vld [vmem:[#allocation3 + $0x890] sm:$0xff]
    %v1502 = vld [vmem:[#allocation3 + $0x898] sm:$0xff]
    %v1503 = vld [vmem:[#allocation3 + $0x8a0] sm:$0xff]
    %v1504 = vld [vmem:[#allocation3 + $0x8a8] sm:$0xff]
    %v1505 = vld [vmem:[#allocation3 + $0x8b0] sm:$0xff]
    %v1506 = vld [vmem:[#allocation3 + $0x8b8] sm:$0xff]
    %v1507 = vld [vmem:[#allocation3 + $0x8c0] sm:$0xff]
    %v1508 = vld [vmem:[#allocation3 + $0x8c8] sm:$0xff]
    %v1509 = vld [vmem:[#allocation3 + $0x8d0] sm:$0xff]
    %v1510 = vld [vmem:[#allocation3 + $0x8d8] sm:$0xff]
    %v1511 = vld [vmem:[#allocation3 + $0x8e0] sm:$0xff]
    %v1512 = vld [vmem:[#allocation3 + $0x8e8] sm:$0xff]
    %v1513 = vld [vmem:[#allocation3 + $0x8f0] sm:$0xff]
    %v1514 = vld [vmem:[#allocation3 + $0x8f8] sm:$0xff]
    %v1515 = vld [vmem:[#allocation3 + $0x900] sm:$0xff]
    %v1516 = vld [vmem:[#allocation3 + $0x908] sm:$0xff]
    %v1517 = vld [vmem:[#allocation3 + $0x910] sm:$0xff]
    %v1518 = vld [vmem:[#allocation3 + $0x918] sm:$0xff]
    %v1519 = vld [vmem:[#allocation3 + $0x920] sm:$0xff]
    %v1520 = vld [vmem:[#allocation3 + $0x928] sm:$0xff]
    %v1521 = vld [vmem:[#allocation3 + $0x930] sm:$0xff]
    %v1522 = vld [vmem:[#allocation3 + $0x938] sm:$0xff]
    %v1523 = vld [vmem:[#allocation3 + $0x940] sm:$0xff]
    %v1524 = vld [vmem:[#allocation3 + $0x948] sm:$0xff]
    %v1525 = vld [vmem:[#allocation3 + $0x950] sm:$0xff]
    %v1526 = vld [vmem:[#allocation3 + $0x958] sm:$0xff]
    %v1527 = vld [vmem:[#allocation3 + $0x960] sm:$0xff]
    %v1528 = vld [vmem:[#allocation3 + $0x968] sm:$0xff]
    %v1529 = vld [vmem:[#allocation3 + $0x970] sm:$0xff]
    %v1530 = vld [vmem:[#allocation3 + $0x978] sm:$0xff]
    %v1531 = vld [vmem:[#allocation3 + $0x980] sm:$0xff]
    %v1532 = vld [vmem:[#allocation3 + $0x988] sm:$0xff]
    %v1533 = vld [vmem:[#allocation3 + $0x990] sm:$0xff]
    %v1534 = vld [vmem:[#allocation3 + $0x998] sm:$0xff]
    %v1535 = vld [vmem:[#allocation3 + $0x9a0] sm:$0xff]
    %v1536 = vld [vmem:[#allocation3 + $0x9a8] sm:$0xff]
    %v1537 = vld [vmem:[#allocation3 + $0x9b0] sm:$0xff]
    %v1538 = vld [vmem:[#allocation3 + $0x9b8] sm:$0xff]
    %v1539 = vld [vmem:[#allocation3 + $0x9c0] sm:$0xff]
    %v1540 = vld [vmem:[#allocation3 + $0x9c8] sm:$0xff]
    %v1541 = vld [vmem:[#allocation3 + $0x9d0] sm:$0xff]
    %v1542 = vld [vmem:[#allocation3 + $0x9d8] sm:$0xff]
    %v1543 = vld [vmem:[#allocation3 + $0x9e0] sm:$0xff]
    %v1544 = vld [vmem:[#allocation3 + $0x9e8] sm:$0xff]
    %v1545 = vld [vmem:[#allocation3 + $0x9f0] sm:$0xff]
    %v1546 = vld [vmem:[#allocation3 + $0x9f8] sm:$0xff]
    %v1547 = vld [vmem:[#allocation3 + $0xa00] sm:$0xff]
    %v1548 = vld [vmem:[#allocation3 + $0xa08] sm:$0xff]
    %v1549 = vld [vmem:[#allocation3 + $0xa10] sm:$0xff]
    %v1550 = vld [vmem:[#allocation3 + $0xa18] sm:$0xff]
    %v1551 = vld [vmem:[#allocation3 + $0xa20] sm:$0xff]
    %v1552 = vld [vmem:[#allocation3 + $0xa28] sm:$0xff]
    %v1553 = vld [vmem:[#allocation3 + $0xa30] sm:$0xff]
    %v1554 = vld [vmem:[#allocation3 + $0xa38] sm:$0xff]
    %v1555 = vld [vmem:[#allocation3 + $0xa40] sm:$0xff]
    %v1556 = vld [vmem:[#allocation3 + $0xa48] sm:$0xff]
    %v1557 = vld [vmem:[#allocation3 + $0xa50] sm:$0xff]
    %v1558 = vld [vmem:[#allocation3 + $0xa58] sm:$0xff]
    %v1559 = vld [vmem:[#allocation3 + $0xa60] sm:$0xff]
    %v1560 = vld [vmem:[#allocation3 + $0xa68] sm:$0xff]
    %v1561 = vld [vmem:[#allocation3 + $0xa70] sm:$0xff]
    %v1562 = vld [vmem:[#allocation3 + $0xa78] sm:$0xff]
    %v1563 = vld [vmem:[#allocation3 + $0xa80] sm:$0xff]
    %v1564 = vld [vmem:[#allocation3 + $0xa88] sm:$0xff]
    %v1565 = vld [vmem:[#allocation3 + $0xa90] sm:$0xff]
    %v1566 = vld [vmem:[#allocation3 + $0xa98] sm:$0xff]
    %v1567 = vld [vmem:[#allocation3 + $0xaa0] sm:$0xff]
    %v1568 = vld [vmem:[#allocation3 + $0xaa8] sm:$0xff]
    %v1569 = vld [vmem:[#allocation3 + $0xab0] sm:$0xff]
    %v1570 = vld [vmem:[#allocation3 + $0xab8] sm:$0xff]
    %v1571 = vld [vmem:[#allocation3 + $0xac0] sm:$0xff]
    %v1572 = vld [vmem:[#allocation3 + $0xac8] sm:$0xff]
    %v1573 = vld [vmem:[#allocation3 + $0xad0] sm:$0xff]
    %v1574 = vld [vmem:[#allocation3 + $0xad8] sm:$0xff]
    %v1575 = vld [vmem:[#allocation3 + $0xae0] sm:$0xff]
    %v1576 = vld [vmem:[#allocation3 + $0xae8] sm:$0xff]
    %v1577 = vld [vmem:[#allocation3 + $0xaf0] sm:$0xff]
    %v1578 = vld [vmem:[#allocation3 + $0xaf8] sm:$0xff]
    %v1579 = vld [vmem:[#allocation3 + $0xb00] sm:$0xff]
    %v1580 = vld [vmem:[#allocation3 + $0xb08] sm:$0xff]
    %v1581 = vld [vmem:[#allocation3 + $0xb10] sm:$0xff]
    %v1582 = vld [vmem:[#allocation3 + $0xb18] sm:$0xff]
    %v1583 = vld [vmem:[#allocation3 + $0xb20] sm:$0xff]
    %v1584 = vld [vmem:[#allocation3 + $0xb28] sm:$0xff]
    %v1585 = vld [vmem:[#allocation3 + $0xb30] sm:$0xff]
    %v1586 = vld [vmem:[#allocation3 + $0xb38] sm:$0xff]
    %v1587 = vld [vmem:[#allocation3 + $0xb40] sm:$0xff]
    %v1588 = vld [vmem:[#allocation3 + $0xb48] sm:$0xff]
    %v1589 = vld [vmem:[#allocation3 + $0xb50] sm:$0xff]
    %v1590 = vld [vmem:[#allocation3 + $0xb58] sm:$0xff]
    %v1591 = vld [vmem:[#allocation3 + $0xb60] sm:$0xff]
    %v1592 = vld [vmem:[#allocation3 + $0xb68] sm:$0xff]
    %v1593 = vld [vmem:[#allocation3 + $0xb70] sm:$0xff]
    %v1594 = vld [vmem:[#allocation3 + $0xb78] sm:$0xff]
    %v1595 = vld [vmem:[#allocation3 + $0xb80] sm:$0xff]
    %v1596 = vld [vmem:[#allocation3 + $0xb88] sm:$0xff]
    %v1597 = vld [vmem:[#allocation3 + $0xb90] sm:$0xff]
    %v1598 = vld [vmem:[#allocation3 + $0xb98] sm:$0xff]
    %v1599 = vld [vmem:[#allocation3 + $0xba0] sm:$0xff]
    %v1600 = vld [vmem:[#allocation3 + $0xba8] sm:$0xff]
    %v1601 = vld [vmem:[#allocation3 + $0xbb0] sm:$0xff]
    %v1602 = vld [vmem:[#allocation3 + $0xbb8] sm:$0xff]
    %v1603 = vld [vmem:[#allocation3 + $0xbc0] sm:$0xff]
    %v1604 = vld [vmem:[#allocation3 + $0xbc8] sm:$0xff]
    %v1605 = vld [vmem:[#allocation3 + $0xbd0] sm:$0xff]
    %v1606 = vld [vmem:[#allocation3 + $0xbd8] sm:$0xff]
    %v1607 = vld [vmem:[#allocation3 + $0xbe0] sm:$0xff]
    %v1608 = vld [vmem:[#allocation3 + $0xbe8] sm:$0xff]
    %v1609 = vld [vmem:[#allocation3 + $0xbf0] sm:$0xff]
    %v1610 = vld [vmem:[#allocation3 + $0xbf8] sm:$0xff]
    %v1611 = vld [vmem:[#allocation3 + $0xc00] sm:$0xff]
    %v1612 = vld [vmem:[#allocation3 + $0xc08] sm:$0xff]
    %v1613 = vld [vmem:[#allocation3 + $0xc10] sm:$0xff]
    %v1614 = vld [vmem:[#allocation3 + $0xc18] sm:$0xff]
    %v1615 = vld [vmem:[#allocation3 + $0xc20] sm:$0xff]
    %v1616 = vld [vmem:[#allocation3 + $0xc28] sm:$0xff]
    %v1617 = vld [vmem:[#allocation3 + $0xc30] sm:$0xff]
    %v1618 = vld [vmem:[#allocation3 + $0xc38] sm:$0xff]
    %v1619 = vld [vmem:[#allocation3 + $0xc40] sm:$0xff]
    %v1620 = vld [vmem:[#allocation3 + $0xc48] sm:$0xff]
    %v1621 = vld [vmem:[#allocation3 + $0xc50] sm:$0xff]
    %v1622 = vld [vmem:[#allocation3 + $0xc58] sm:$0xff]
    %v1623 = vld [vmem:[#allocation3 + $0xc60] sm:$0xff]
    %v1624 = vld [vmem:[#allocation3 + $0xc68] sm:$0xff]
    %v1625 = vld [vmem:[#allocation3 + $0xc70] sm:$0xff]
    %v1626 = vld [vmem:[#allocation3 + $0xc78] sm:$0xff]
    %v1627 = vld [vmem:[#allocation3 + $0xc80] sm:$0xff]
    %v1628 = vld [vmem:[#allocation3 + $0xc88] sm:$0xff]
    %v1629 = vld [vmem:[#allocation3 + $0xc90] sm:$0xff]
    %v1630 = vld [vmem:[#allocation3 + $0xc98] sm:$0xff]
    %v1631 = vld [vmem:[#allocation3 + $0xca0] sm:$0xff]
    %v1632 = vld [vmem:[#allocation3 + $0xca8] sm:$0xff]
    %v1633 = vld [vmem:[#allocation3 + $0xcb0] sm:$0xff]
    %v1634 = vld [vmem:[#allocation3 + $0xcb8] sm:$0xff]
    %v1635 = vld [vmem:[#allocation3 + $0xcc0] sm:$0xff]
    %v1636 = vld [vmem:[#allocation3 + $0xcc8] sm:$0xff]
    %v1637 = vld [vmem:[#allocation3 + $0xcd0] sm:$0xff]
    %v1638 = vld [vmem:[#allocation3 + $0xcd8] sm:$0xff]
    %v1639 = vld [vmem:[#allocation3 + $0xce0] sm:$0xff]
    %v1640 = vld [vmem:[#allocation3 + $0xce8] sm:$0xff]
    %v1641 = vld [vmem:[#allocation3 + $0xcf0] sm:$0xff]
    %v1642 = vld [vmem:[#allocation3 + $0xcf8] sm:$0xff]
    %v1643 = vld [vmem:[#allocation3 + $0xd00] sm:$0xff]
    %v1644 = vld [vmem:[#allocation3 + $0xd08] sm:$0xff]
    %v1645 = vld [vmem:[#allocation3 + $0xd10] sm:$0xff]
    %v1646 = vld [vmem:[#allocation3 + $0xd18] sm:$0xff]
    %v1647 = vld [vmem:[#allocation3 + $0xd20] sm:$0xff]
    %v1648 = vld [vmem:[#allocation3 + $0xd28] sm:$0xff]
    %v1649 = vld [vmem:[#allocation3 + $0xd30] sm:$0xff]
    %v1650 = vld [vmem:[#allocation3 + $0xd38] sm:$0xff]
    %v1651 = vld [vmem:[#allocation3 + $0xd40] sm:$0xff]
    %v1652 = vld [vmem:[#allocation3 + $0xd48] sm:$0xff]
    %v1653 = vld [vmem:[#allocation3 + $0xd50] sm:$0xff]
    %v1654 = vld [vmem:[#allocation3 + $0xd58] sm:$0xff]
    %v1655 = vld [vmem:[#allocation3 + $0xd60] sm:$0xff]
    %v1656 = vld [vmem:[#allocation3 + $0xd68] sm:$0xff]
    %v1657 = vld [vmem:[#allocation3 + $0xd70] sm:$0xff]
    %v1658 = vld [vmem:[#allocation3 + $0xd78] sm:$0xff]
    %v1659 = vld [vmem:[#allocation3 + $0xd80] sm:$0xff]
    %v1660 = vld [vmem:[#allocation3 + $0xd88] sm:$0xff]
    %v1661 = vld [vmem:[#allocation3 + $0xd90] sm:$0xff]
    %v1662 = vld [vmem:[#allocation3 + $0xd98] sm:$0xff]
    %v1663 = vld [vmem:[#allocation3 + $0xda0] sm:$0xff]
    %v1664 = vld [vmem:[#allocation3 + $0xda8] sm:$0xff]
    %v1665 = vld [vmem:[#allocation3 + $0xdb0] sm:$0xff]
    %v1666 = vld [vmem:[#allocation3 + $0xdb8] sm:$0xff]
    %v1667 = vld [vmem:[#allocation3 + $0xdc0] sm:$0xff]
    %v1668 = vld [vmem:[#allocation3 + $0xdc8] sm:$0xff]
    %v1669 = vld [vmem:[#allocation3 + $0xdd0] sm:$0xff]
    %v1670 = vld [vmem:[#allocation3 + $0xdd8] sm:$0xff]
    %v1671 = vld [vmem:[#allocation3 + $0xde0] sm:$0xff]
    %v1672 = vld [vmem:[#allocation3 + $0xde8] sm:$0xff]
    %v1673 = vld [vmem:[#allocation3 + $0xdf0] sm:$0xff]
    %v1674 = vld [vmem:[#allocation3 + $0xdf8] sm:$0xff]
    %v1675 = vld [vmem:[#allocation3 + $0xe00] sm:$0xff]
    %v1676 = vld [vmem:[#allocation3 + $0xe08] sm:$0xff]
    %v1677 = vld [vmem:[#allocation3 + $0xe10] sm:$0xff]
    %v1678 = vld [vmem:[#allocation3 + $0xe18] sm:$0xff]
    %v1679 = vld [vmem:[#allocation3 + $0xe20] sm:$0xff]
    %v1680 = vld [vmem:[#allocation3 + $0xe28] sm:$0xff]
    %v1681 = vld [vmem:[#allocation3 + $0xe30] sm:$0xff]
    %v1682 = vld [vmem:[#allocation3 + $0xe38] sm:$0xff]
    %v1683 = vld [vmem:[#allocation3 + $0xe40] sm:$0xff]
    %v1684 = vld [vmem:[#allocation3 + $0xe48] sm:$0xff]
    %v1685 = vld [vmem:[#allocation3 + $0xe50] sm:$0xff]
    %v1686 = vld [vmem:[#allocation3 + $0xe58] sm:$0xff]
    %v1687 = vld [vmem:[#allocation3 + $0xe60] sm:$0xff]
    %v1688 = vld [vmem:[#allocation3 + $0xe68] sm:$0xff]
    %v1689 = vld [vmem:[#allocation3 + $0xe70] sm:$0xff]
    %v1690 = vld [vmem:[#allocation3 + $0xe78] sm:$0xff]
    %v1691 = vld [vmem:[#allocation3 + $0xe80] sm:$0xff]
    %v1692 = vld [vmem:[#allocation3 + $0xe88] sm:$0xff]
    %v1693 = vld [vmem:[#allocation3 + $0xe90] sm:$0xff]
    %v1694 = vld [vmem:[#allocation3 + $0xe98] sm:$0xff]
    %v1695 = vld [vmem:[#allocation3 + $0xea0] sm:$0xff]
    %v1696 = vld [vmem:[#allocation3 + $0xea8] sm:$0xff]
    %v1697 = vld [vmem:[#allocation3 + $0xeb0] sm:$0xff]
    %v1698 = vld [vmem:[#allocation3 + $0xeb8] sm:$0xff]
    %v1699 = vld [vmem:[#allocation3 + $0xec0] sm:$0xff]
    %v1700 = vld [vmem:[#allocation3 + $0xec8] sm:$0xff]
    %v1701 = vld [vmem:[#allocation3 + $0xed0] sm:$0xff]
    %v1702 = vld [vmem:[#allocation3 + $0xed8] sm:$0xff]
    %v1703 = vld [vmem:[#allocation3 + $0xee0] sm:$0xff]
    %v1704 = vld [vmem:[#allocation3 + $0xee8] sm:$0xff]
    %v1705 = vld [vmem:[#allocation3 + $0xef0] sm:$0xff]
    %v1706 = vld [vmem:[#allocation3 + $0xef8] sm:$0xff]
    %v1707 = vld [vmem:[#allocation3 + $0xf00] sm:$0xff]
    %v1708 = vld [vmem:[#allocation3 + $0xf08] sm:$0xff]
    %v1709 = vld [vmem:[#allocation3 + $0xf10] sm:$0xff]
    %v1710 = vld [vmem:[#allocation3 + $0xf18] sm:$0xff]
    %v1711 = vld [vmem:[#allocation3 + $0xf20] sm:$0xff]
    %v1712 = vld [vmem:[#allocation3 + $0xf28] sm:$0xff]
    %v1713 = vld [vmem:[#allocation3 + $0xf30] sm:$0xff]
    %v1714 = vld [vmem:[#allocation3 + $0xf38] sm:$0xff]
    %v1715 = vld [vmem:[#allocation3 + $0xf40] sm:$0xff]
    %v1716 = vld [vmem:[#allocation3 + $0xf48] sm:$0xff]
    %v1717 = vld [vmem:[#allocation3 + $0xf50] sm:$0xff]
    %v1718 = vld [vmem:[#allocation3 + $0xf58] sm:$0xff]
    %v1719 = vld [vmem:[#allocation3 + $0xf60] sm:$0xff]
    %v1720 = vld [vmem:[#allocation3 + $0xf68] sm:$0xff]
    %v1721 = vld [vmem:[#allocation3 + $0xf70] sm:$0xff]
    %v1722 = vld [vmem:[#allocation3 + $0xf78] sm:$0xff]
    %v1723 = vld [vmem:[#allocation3 + $0xf80] sm:$0xff]
    %v1724 = vld [vmem:[#allocation3 + $0xf88] sm:$0xff]
    %v1725 = vld [vmem:[#allocation3 + $0xf90] sm:$0xff]
    %v1726 = vld [vmem:[#allocation3 + $0xf98] sm:$0xff]
    %v1727 = vld [vmem:[#allocation3 + $0xfa0] sm:$0xff]
    %v1728 = vld [vmem:[#allocation3 + $0xfa8] sm:$0xff]
    %v1729 = vld [vmem:[#allocation3 + $0xfb0] sm:$0xff]
    %v1730 = vld [vmem:[#allocation3 + $0xfb8] sm:$0xff]
    %v1731 = vld [vmem:[#allocation3 + $0xfc0] sm:$0xff]
    %v1732 = vld [vmem:[#allocation3 + $0xfc8] sm:$0xff]
    %v1733 = vld [vmem:[#allocation3 + $0xfd0] sm:$0xff]
    %v1734 = vld [vmem:[#allocation3 + $0xfd8] sm:$0xff]
    %v1735 = vld [vmem:[#allocation3 + $0xfe0] sm:$0xff]
    %v1736 = vld [vmem:[#allocation3 + $0xfe8] sm:$0xff]
    %v1737 = vld [vmem:[#allocation3 + $0xff0] sm:$0xff]
    %v1738 = vld [vmem:[#allocation3 + $0xff8] sm:$0xff]
    %v1739 = vld [vmem:[#allocation10] sm:$0xf]
    %v1741 = vperm.slane %v1739, 0
    %v1742 = vperm.slane %v1739, 1
    %v1743 = vperm.slane %v1739, 2
    %v1744 = vperm.slane %v1739, 3
    %v2261 = vunpack.c.l.b16 %v1227
    %v2262 = vunpack.c.h.b16 %v1227
    %v2263 = vunpack.c.l.b16 %v1228
    %v2264 = vunpack.c.h.b16 %v1228
    %v2265 = vunpack.c.l.b16 %v1229
    %v2266 = vunpack.c.h.b16 %v1229
    %v2267 = vunpack.c.l.b16 %v1230
    %v2268 = vunpack.c.h.b16 %v1230
    %v2269 = vunpack.c.l.b16 %v1231
    %v2270 = vunpack.c.h.b16 %v1231
    %v2271 = vunpack.c.l.b16 %v1232
    %v2272 = vunpack.c.h.b16 %v1232
    %v2273 = vunpack.c.l.b16 %v1233
    %v2274 = vunpack.c.h.b16 %v1233
    %v2275 = vunpack.c.l.b16 %v1234
    %v2276 = vunpack.c.h.b16 %v1234
    %v2277 = vunpack.c.l.b16 %v1235
    %v2278 = vunpack.c.h.b16 %v1235
    %v2279 = vunpack.c.l.b16 %v1236
    %v2280 = vunpack.c.h.b16 %v1236
    %v2281 = vunpack.c.l.b16 %v1237
    %v2282 = vunpack.c.h.b16 %v1237
    %v2283 = vunpack.c.l.b16 %v1238
    %v2284 = vunpack.c.h.b16 %v1238
    %v2285 = vunpack.c.l.b16 %v1239
    %v2286 = vunpack.c.h.b16 %v1239
    %v2287 = vunpack.c.l.b16 %v1240
    %v2288 = vunpack.c.h.b16 %v1240
    %v2289 = vunpack.c.l.b16 %v1241
    %v2290 = vunpack.c.h.b16 %v1241
    %v2291 = vunpack.c.l.b16 %v1242
    %v2292 = vunpack.c.h.b16 %v1242
    %v2293 = vunpack.c.l.b16 %v1243
    %v2294 = vunpack.c.h.b16 %v1243
    %v2295 = vunpack.c.l.b16 %v1244
    %v2296 = vunpack.c.h.b16 %v1244
    %v2297 = vunpack.c.l.b16 %v1245
    %v2298 = vunpack.c.h.b16 %v1245
    %v2299 = vunpack.c.l.b16 %v1246
    %v2300 = vunpack.c.h.b16 %v1246
    %v2301 = vunpack.c.l.b16 %v1247
    %v2302 = vunpack.c.h.b16 %v1247
    %v2303 = vunpack.c.l.b16 %v1248
    %v2304 = vunpack.c.h.b16 %v1248
    %v2305 = vunpack.c.l.b16 %v1249
    %v2306 = vunpack.c.h.b16 %v1249
    %v2307 = vunpack.c.l.b16 %v1250
    %v2308 = vunpack.c.h.b16 %v1250
    %v2309 = vunpack.c.l.b16 %v1251
    %v2310 = vunpack.c.h.b16 %v1251
    %v2311 = vunpack.c.l.b16 %v1252
    %v2312 = vunpack.c.h.b16 %v1252
    %v2313 = vunpack.c.l.b16 %v1253
    %v2314 = vunpack.c.h.b16 %v1253
    %v2315 = vunpack.c.l.b16 %v1254
    %v2316 = vunpack.c.h.b16 %v1254
    %v2317 = vunpack.c.l.b16 %v1255
    %v2318 = vunpack.c.h.b16 %v1255
    %v2319 = vunpack.c.l.b16 %v1256
    %v2320 = vunpack.c.h.b16 %v1256
    %v2321 = vunpack.c.l.b16 %v1257
    %v2322 = vunpack.c.h.b16 %v1257
    %v2323 = vunpack.c.l.b16 %v1258
    %v2324 = vunpack.c.h.b16 %v1258
    %v2325 = vunpack.c.l.b16 %v1259
    %v2326 = vunpack.c.h.b16 %v1259
    %v2327 = vunpack.c.l.b16 %v1260
    %v2328 = vunpack.c.h.b16 %v1260
    %v2329 = vunpack.c.l.b16 %v1261
    %v2330 = vunpack.c.h.b16 %v1261
    %v2331 = vunpack.c.l.b16 %v1262
    %v2332 = vunpack.c.h.b16 %v1262
    %v2333 = vunpack.c.l.b16 %v1263
    %v2334 = vunpack.c.h.b16 %v1263
    %v2335 = vunpack.c.l.b16 %v1264
    %v2336 = vunpack.c.h.b16 %v1264
    %v2337 = vunpack.c.l.b16 %v1265
    %v2338 = vunpack.c.h.b16 %v1265
    %v2339 = vunpack.c.l.b16 %v1266
    %v2340 = vunpack.c.h.b16 %v1266
    %v2341 = vunpack.c.l.b16 %v1267
    %v2342 = vunpack.c.h.b16 %v1267
    %v2343 = vunpack.c.l.b16 %v1268
    %v2344 = vunpack.c.h.b16 %v1268
    %v2345 = vunpack.c.l.b16 %v1269
    %v2346 = vunpack.c.h.b16 %v1269
    %v2347 = vunpack.c.l.b16 %v1270
    %v2348 = vunpack.c.h.b16 %v1270
    %v2349 = vunpack.c.l.b16 %v1271
    %v2350 = vunpack.c.h.b16 %v1271
    %v2351 = vunpack.c.l.b16 %v1272
    %v2352 = vunpack.c.h.b16 %v1272
    %v2353 = vunpack.c.l.b16 %v1273
    %v2354 = vunpack.c.h.b16 %v1273
    %v2355 = vunpack.c.l.b16 %v1274
    %v2356 = vunpack.c.h.b16 %v1274
    %v2357 = vunpack.c.l.b16 %v1275
    %v2358 = vunpack.c.h.b16 %v1275
    %v2359 = vunpack.c.l.b16 %v1276
    %v2360 = vunpack.c.h.b16 %v1276
    %v2361 = vunpack.c.l.b16 %v1277
    %v2362 = vunpack.c.h.b16 %v1277
    %v2363 = vunpack.c.l.b16 %v1278
    %v2364 = vunpack.c.h.b16 %v1278
    %v2365 = vunpack.c.l.b16 %v1279
    %v2366 = vunpack.c.h.b16 %v1279
    %v2367 = vunpack.c.l.b16 %v1280
    %v2368 = vunpack.c.h.b16 %v1280
    %v2369 = vunpack.c.l.b16 %v1281
    %v2370 = vunpack.c.h.b16 %v1281
    %v2371 = vunpack.c.l.b16 %v1282
    %v2372 = vunpack.c.h.b16 %v1282
    %v2373 = vunpack.c.l.b16 %v1283
    %v2374 = vunpack.c.h.b16 %v1283
    %v2375 = vunpack.c.l.b16 %v1284
    %v2376 = vunpack.c.h.b16 %v1284
    %v2377 = vunpack.c.l.b16 %v1285
    %v2378 = vunpack.c.h.b16 %v1285
    %v2379 = vunpack.c.l.b16 %v1286
    %v2380 = vunpack.c.h.b16 %v1286
    %v2381 = vunpack.c.l.b16 %v1287
    %v2382 = vunpack.c.h.b16 %v1287
    %v2383 = vunpack.c.l.b16 %v1288
    %v2384 = vunpack.c.h.b16 %v1288
    %v2385 = vunpack.c.l.b16 %v1289
    %v2386 = vunpack.c.h.b16 %v1289
    %v2387 = vunpack.c.l.b16 %v1290
    %v2388 = vunpack.c.h.b16 %v1290
    %v2389 = vunpack.c.l.b16 %v1291
    %v2390 = vunpack.c.h.b16 %v1291
    %v2391 = vunpack.c.l.b16 %v1292
    %v2392 = vunpack.c.h.b16 %v1292
    %v2393 = vunpack.c.l.b16 %v1293
    %v2394 = vunpack.c.h.b16 %v1293
    %v2395 = vunpack.c.l.b16 %v1294
    %v2396 = vunpack.c.h.b16 %v1294
    %v2397 = vunpack.c.l.b16 %v1295
    %v2398 = vunpack.c.h.b16 %v1295
    %v2399 = vunpack.c.l.b16 %v1296
    %v2400 = vunpack.c.h.b16 %v1296
    %v2401 = vunpack.c.l.b16 %v1297
    %v2402 = vunpack.c.h.b16 %v1297
    %v2403 = vunpack.c.l.b16 %v1298
    %v2404 = vunpack.c.h.b16 %v1298
    %v2405 = vunpack.c.l.b16 %v1299
    %v2406 = vunpack.c.h.b16 %v1299
    %v2407 = vunpack.c.l.b16 %v1300
    %v2408 = vunpack.c.h.b16 %v1300
    %v2409 = vunpack.c.l.b16 %v1301
    %v2410 = vunpack.c.h.b16 %v1301
    %v2411 = vunpack.c.l.b16 %v1302
    %v2412 = vunpack.c.h.b16 %v1302
    %v2413 = vunpack.c.l.b16 %v1303
    %v2414 = vunpack.c.h.b16 %v1303
    %v2415 = vunpack.c.l.b16 %v1304
    %v2416 = vunpack.c.h.b16 %v1304
    %v2417 = vunpack.c.l.b16 %v1305
    %v2418 = vunpack.c.h.b16 %v1305
    %v2419 = vunpack.c.l.b16 %v1306
    %v2420 = vunpack.c.h.b16 %v1306
    %v2421 = vunpack.c.l.b16 %v1307
    %v2422 = vunpack.c.h.b16 %v1307
    %v2423 = vunpack.c.l.b16 %v1308
    %v2424 = vunpack.c.h.b16 %v1308
    %v2425 = vunpack.c.l.b16 %v1309
    %v2426 = vunpack.c.h.b16 %v1309
    %v2427 = vunpack.c.l.b16 %v1310
    %v2428 = vunpack.c.h.b16 %v1310
    %v2429 = vunpack.c.l.b16 %v1311
    %v2430 = vunpack.c.h.b16 %v1311
    %v2431 = vunpack.c.l.b16 %v1312
    %v2432 = vunpack.c.h.b16 %v1312
    %v2433 = vunpack.c.l.b16 %v1313
    %v2434 = vunpack.c.h.b16 %v1313
    %v2435 = vunpack.c.l.b16 %v1314
    %v2436 = vunpack.c.h.b16 %v1314
    %v2437 = vunpack.c.l.b16 %v1315
    %v2438 = vunpack.c.h.b16 %v1315
    %v2439 = vunpack.c.l.b16 %v1316
    %v2440 = vunpack.c.h.b16 %v1316
    %v2441 = vunpack.c.l.b16 %v1317
    %v2442 = vunpack.c.h.b16 %v1317
    %v2443 = vunpack.c.l.b16 %v1318
    %v2444 = vunpack.c.h.b16 %v1318
    %v2445 = vunpack.c.l.b16 %v1319
    %v2446 = vunpack.c.h.b16 %v1319
    %v2447 = vunpack.c.l.b16 %v1320
    %v2448 = vunpack.c.h.b16 %v1320
    %v2449 = vunpack.c.l.b16 %v1321
    %v2450 = vunpack.c.h.b16 %v1321
    %v2451 = vunpack.c.l.b16 %v1322
    %v2452 = vunpack.c.h.b16 %v1322
    %v2453 = vunpack.c.l.b16 %v1323
    %v2454 = vunpack.c.h.b16 %v1323
    %v2455 = vunpack.c.l.b16 %v1324
    %v2456 = vunpack.c.h.b16 %v1324
    %v2457 = vunpack.c.l.b16 %v1325
    %v2458 = vunpack.c.h.b16 %v1325
    %v2459 = vunpack.c.l.b16 %v1326
    %v2460 = vunpack.c.h.b16 %v1326
    %v2461 = vunpack.c.l.b16 %v1327
    %v2462 = vunpack.c.h.b16 %v1327
    %v2463 = vunpack.c.l.b16 %v1328
    %v2464 = vunpack.c.h.b16 %v1328
    %v2465 = vunpack.c.l.b16 %v1329
    %v2466 = vunpack.c.h.b16 %v1329
    %v2467 = vunpack.c.l.b16 %v1330
    %v2468 = vunpack.c.h.b16 %v1330
    %v2469 = vunpack.c.l.b16 %v1331
    %v2470 = vunpack.c.h.b16 %v1331
    %v2471 = vunpack.c.l.b16 %v1332
    %v2472 = vunpack.c.h.b16 %v1332
    %v2473 = vunpack.c.l.b16 %v1333
    %v2474 = vunpack.c.h.b16 %v1333
    %v2475 = vunpack.c.l.b16 %v1334
    %v2476 = vunpack.c.h.b16 %v1334
    %v2477 = vunpack.c.l.b16 %v1335
    %v2478 = vunpack.c.h.b16 %v1335
    %v2479 = vunpack.c.l.b16 %v1336
    %v2480 = vunpack.c.h.b16 %v1336
    %v2481 = vunpack.c.l.b16 %v1337
    %v2482 = vunpack.c.h.b16 %v1337
    %v2483 = vunpack.c.l.b16 %v1338
    %v2484 = vunpack.c.h.b16 %v1338
    %v2485 = vunpack.c.l.b16 %v1339
    %v2486 = vunpack.c.h.b16 %v1339
    %v2487 = vunpack.c.l.b16 %v1340
    %v2488 = vunpack.c.h.b16 %v1340
    %v2489 = vunpack.c.l.b16 %v1341
    %v2490 = vunpack.c.h.b16 %v1341
    %v2491 = vunpack.c.l.b16 %v1342
    %v2492 = vunpack.c.h.b16 %v1342
    %v2493 = vunpack.c.l.b16 %v1343
    %v2494 = vunpack.c.h.b16 %v1343
    %v2495 = vunpack.c.l.b16 %v1344
    %v2496 = vunpack.c.h.b16 %v1344
    %v2497 = vunpack.c.l.b16 %v1345
    %v2498 = vunpack.c.h.b16 %v1345
    %v2499 = vunpack.c.l.b16 %v1346
    %v2500 = vunpack.c.h.b16 %v1346
    %v2501 = vunpack.c.l.b16 %v1347
    %v2502 = vunpack.c.h.b16 %v1347
    %v2503 = vunpack.c.l.b16 %v1348
    %v2504 = vunpack.c.h.b16 %v1348
    %v2505 = vunpack.c.l.b16 %v1349
    %v2506 = vunpack.c.h.b16 %v1349
    %v2507 = vunpack.c.l.b16 %v1350
    %v2508 = vunpack.c.h.b16 %v1350
    %v2509 = vunpack.c.l.b16 %v1351
    %v2510 = vunpack.c.h.b16 %v1351
    %v2511 = vunpack.c.l.b16 %v1352
    %v2512 = vunpack.c.h.b16 %v1352
    %v2513 = vunpack.c.l.b16 %v1353
    %v2514 = vunpack.c.h.b16 %v1353
    %v2515 = vunpack.c.l.b16 %v1354
    %v2516 = vunpack.c.h.b16 %v1354
    %v2517 = vunpack.c.l.b16 %v1355
    %v2518 = vunpack.c.h.b16 %v1355
    %v2519 = vunpack.c.l.b16 %v1356
    %v2520 = vunpack.c.h.b16 %v1356
    %v2521 = vunpack.c.l.b16 %v1357
    %v2522 = vunpack.c.h.b16 %v1357
    %v2523 = vunpack.c.l.b16 %v1358
    %v2524 = vunpack.c.h.b16 %v1358
    %v2525 = vunpack.c.l.b16 %v1359
    %v2526 = vunpack.c.h.b16 %v1359
    %v2527 = vunpack.c.l.b16 %v1360
    %v2528 = vunpack.c.h.b16 %v1360
    %v2529 = vunpack.c.l.b16 %v1361
    %v2530 = vunpack.c.h.b16 %v1361
    %v2531 = vunpack.c.l.b16 %v1362
    %v2532 = vunpack.c.h.b16 %v1362
    %v2533 = vunpack.c.l.b16 %v1363
    %v2534 = vunpack.c.h.b16 %v1363
    %v2535 = vunpack.c.l.b16 %v1364
    %v2536 = vunpack.c.h.b16 %v1364
    %v2537 = vunpack.c.l.b16 %v1365
    %v2538 = vunpack.c.h.b16 %v1365
    %v2539 = vunpack.c.l.b16 %v1366
    %v2540 = vunpack.c.h.b16 %v1366
    %v2541 = vunpack.c.l.b16 %v1367
    %v2542 = vunpack.c.h.b16 %v1367
    %v2543 = vunpack.c.l.b16 %v1368
    %v2544 = vunpack.c.h.b16 %v1368
    %v2545 = vunpack.c.l.b16 %v1369
    %v2546 = vunpack.c.h.b16 %v1369
    %v2547 = vunpack.c.l.b16 %v1370
    %v2548 = vunpack.c.h.b16 %v1370
    %v2549 = vunpack.c.l.b16 %v1371
    %v2550 = vunpack.c.h.b16 %v1371
    %v2551 = vunpack.c.l.b16 %v1372
    %v2552 = vunpack.c.h.b16 %v1372
    %v2553 = vunpack.c.l.b16 %v1373
    %v2554 = vunpack.c.h.b16 %v1373
    %v2555 = vunpack.c.l.b16 %v1374
    %v2556 = vunpack.c.h.b16 %v1374
    %v2557 = vunpack.c.l.b16 %v1375
    %v2558 = vunpack.c.h.b16 %v1375
    %v2559 = vunpack.c.l.b16 %v1376
    %v2560 = vunpack.c.h.b16 %v1376
    %v2561 = vunpack.c.l.b16 %v1377
    %v2562 = vunpack.c.h.b16 %v1377
    %v2563 = vunpack.c.l.b16 %v1378
    %v2564 = vunpack.c.h.b16 %v1378
    %v2565 = vunpack.c.l.b16 %v1379
    %v2566 = vunpack.c.h.b16 %v1379
    %v2567 = vunpack.c.l.b16 %v1380
    %v2568 = vunpack.c.h.b16 %v1380
    %v2569 = vunpack.c.l.b16 %v1381
    %v2570 = vunpack.c.h.b16 %v1381
    %v2571 = vunpack.c.l.b16 %v1382
    %v2572 = vunpack.c.h.b16 %v1382
    %v2573 = vunpack.c.l.b16 %v1383
    %v2574 = vunpack.c.h.b16 %v1383
    %v2575 = vunpack.c.l.b16 %v1384
    %v2576 = vunpack.c.h.b16 %v1384
    %v2577 = vunpack.c.l.b16 %v1385
    %v2578 = vunpack.c.h.b16 %v1385
    %v2579 = vunpack.c.l.b16 %v1386
    %v2580 = vunpack.c.h.b16 %v1386
    %v2581 = vunpack.c.l.b16 %v1387
    %v2582 = vunpack.c.h.b16 %v1387
    %v2583 = vunpack.c.l.b16 %v1388
    %v2584 = vunpack.c.h.b16 %v1388
    %v2585 = vunpack.c.l.b16 %v1389
    %v2586 = vunpack.c.h.b16 %v1389
    %v2587 = vunpack.c.l.b16 %v1390
    %v2588 = vunpack.c.h.b16 %v1390
    %v2589 = vunpack.c.l.b16 %v1391
    %v2590 = vunpack.c.h.b16 %v1391
    %v2591 = vunpack.c.l.b16 %v1392
    %v2592 = vunpack.c.h.b16 %v1392
    %v2593 = vunpack.c.l.b16 %v1393
    %v2594 = vunpack.c.h.b16 %v1393
    %v2595 = vunpack.c.l.b16 %v1394
    %v2596 = vunpack.c.h.b16 %v1394
    %v2597 = vunpack.c.l.b16 %v1395
    %v2598 = vunpack.c.h.b16 %v1395
    %v2599 = vunpack.c.l.b16 %v1396
    %v2600 = vunpack.c.h.b16 %v1396
    %v2601 = vunpack.c.l.b16 %v1397
    %v2602 = vunpack.c.h.b16 %v1397
    %v2603 = vunpack.c.l.b16 %v1398
    %v2604 = vunpack.c.h.b16 %v1398
    %v2605 = vunpack.c.l.b16 %v1399
    %v2606 = vunpack.c.h.b16 %v1399
    %v2607 = vunpack.c.l.b16 %v1400
    %v2608 = vunpack.c.h.b16 %v1400
    %v2609 = vunpack.c.l.b16 %v1401
    %v2610 = vunpack.c.h.b16 %v1401
    %v2611 = vunpack.c.l.b16 %v1402
    %v2612 = vunpack.c.h.b16 %v1402
    %v2613 = vunpack.c.l.b16 %v1403
    %v2614 = vunpack.c.h.b16 %v1403
    %v2615 = vunpack.c.l.b16 %v1404
    %v2616 = vunpack.c.h.b16 %v1404
    %v2617 = vunpack.c.l.b16 %v1405
    %v2618 = vunpack.c.h.b16 %v1405
    %v2619 = vunpack.c.l.b16 %v1406
    %v2620 = vunpack.c.h.b16 %v1406
    %v2621 = vunpack.c.l.b16 %v1407
    %v2622 = vunpack.c.h.b16 %v1407
    %v2623 = vunpack.c.l.b16 %v1408
    %v2624 = vunpack.c.h.b16 %v1408
    %v2625 = vunpack.c.l.b16 %v1409
    %v2626 = vunpack.c.h.b16 %v1409
    %v2627 = vunpack.c.l.b16 %v1410
    %v2628 = vunpack.c.h.b16 %v1410
    %v2629 = vunpack.c.l.b16 %v1411
    %v2630 = vunpack.c.h.b16 %v1411
    %v2631 = vunpack.c.l.b16 %v1412
    %v2632 = vunpack.c.h.b16 %v1412
    %v2633 = vunpack.c.l.b16 %v1413
    %v2634 = vunpack.c.h.b16 %v1413
    %v2635 = vunpack.c.l.b16 %v1414
    %v2636 = vunpack.c.h.b16 %v1414
    %v2637 = vunpack.c.l.b16 %v1415
    %v2638 = vunpack.c.h.b16 %v1415
    %v2639 = vunpack.c.l.b16 %v1416
    %v2640 = vunpack.c.h.b16 %v1416
    %v2641 = vunpack.c.l.b16 %v1417
    %v2642 = vunpack.c.h.b16 %v1417
    %v2643 = vunpack.c.l.b16 %v1418
    %v2644 = vunpack.c.h.b16 %v1418
    %v2645 = vunpack.c.l.b16 %v1419
    %v2646 = vunpack.c.h.b16 %v1419
    %v2647 = vunpack.c.l.b16 %v1420
    %v2648 = vunpack.c.h.b16 %v1420
    %v2649 = vunpack.c.l.b16 %v1421
    %v2650 = vunpack.c.h.b16 %v1421
    %v2651 = vunpack.c.l.b16 %v1422
    %v2652 = vunpack.c.h.b16 %v1422
    %v2653 = vunpack.c.l.b16 %v1423
    %v2654 = vunpack.c.h.b16 %v1423
    %v2655 = vunpack.c.l.b16 %v1424
    %v2656 = vunpack.c.h.b16 %v1424
    %v2657 = vunpack.c.l.b16 %v1425
    %v2658 = vunpack.c.h.b16 %v1425
    %v2659 = vunpack.c.l.b16 %v1426
    %v2660 = vunpack.c.h.b16 %v1426
    %v2661 = vunpack.c.l.b16 %v1427
    %v2662 = vunpack.c.h.b16 %v1427
    %v2663 = vunpack.c.l.b16 %v1428
    %v2664 = vunpack.c.h.b16 %v1428
    %v2665 = vunpack.c.l.b16 %v1429
    %v2666 = vunpack.c.h.b16 %v1429
    %v2667 = vunpack.c.l.b16 %v1430
    %v2668 = vunpack.c.h.b16 %v1430
    %v2669 = vunpack.c.l.b16 %v1431
    %v2670 = vunpack.c.h.b16 %v1431
    %v2671 = vunpack.c.l.b16 %v1432
    %v2672 = vunpack.c.h.b16 %v1432
    %v2673 = vunpack.c.l.b16 %v1433
    %v2674 = vunpack.c.h.b16 %v1433
    %v2675 = vunpack.c.l.b16 %v1434
    %v2676 = vunpack.c.h.b16 %v1434
    %v2677 = vunpack.c.l.b16 %v1435
    %v2678 = vunpack.c.h.b16 %v1435
    %v2679 = vunpack.c.l.b16 %v1436
    %v2680 = vunpack.c.h.b16 %v1436
    %v2681 = vunpack.c.l.b16 %v1437
    %v2682 = vunpack.c.h.b16 %v1437
    %v2683 = vunpack.c.l.b16 %v1438
    %v2684 = vunpack.c.h.b16 %v1438
    %v2685 = vunpack.c.l.b16 %v1439
    %v2686 = vunpack.c.h.b16 %v1439
    %v2687 = vunpack.c.l.b16 %v1440
    %v2688 = vunpack.c.h.b16 %v1440
    %v2689 = vunpack.c.l.b16 %v1441
    %v2690 = vunpack.c.h.b16 %v1441
    %v2691 = vunpack.c.l.b16 %v1442
    %v2692 = vunpack.c.h.b16 %v1442
    %v2693 = vunpack.c.l.b16 %v1443
    %v2694 = vunpack.c.h.b16 %v1443
    %v2695 = vunpack.c.l.b16 %v1444
    %v2696 = vunpack.c.h.b16 %v1444
    %v2697 = vunpack.c.l.b16 %v1445
    %v2698 = vunpack.c.h.b16 %v1445
    %v2699 = vunpack.c.l.b16 %v1446
    %v2700 = vunpack.c.h.b16 %v1446
    %v2701 = vunpack.c.l.b16 %v1447
    %v2702 = vunpack.c.h.b16 %v1447
    %v2703 = vunpack.c.l.b16 %v1448
    %v2704 = vunpack.c.h.b16 %v1448
    %v2705 = vunpack.c.l.b16 %v1449
    %v2706 = vunpack.c.h.b16 %v1449
    %v2707 = vunpack.c.l.b16 %v1450
    %v2708 = vunpack.c.h.b16 %v1450
    %v2709 = vunpack.c.l.b16 %v1451
    %v2710 = vunpack.c.h.b16 %v1451
    %v2711 = vunpack.c.l.b16 %v1452
    %v2712 = vunpack.c.h.b16 %v1452
    %v2713 = vunpack.c.l.b16 %v1453
    %v2714 = vunpack.c.h.b16 %v1453
    %v2715 = vunpack.c.l.b16 %v1454
    %v2716 = vunpack.c.h.b16 %v1454
    %v2717 = vunpack.c.l.b16 %v1455
    %v2718 = vunpack.c.h.b16 %v1455
    %v2719 = vunpack.c.l.b16 %v1456
    %v2720 = vunpack.c.h.b16 %v1456
    %v2721 = vunpack.c.l.b16 %v1457
    %v2722 = vunpack.c.h.b16 %v1457
    %v2723 = vunpack.c.l.b16 %v1458
    %v2724 = vunpack.c.h.b16 %v1458
    %v2725 = vunpack.c.l.b16 %v1459
    %v2726 = vunpack.c.h.b16 %v1459
    %v2727 = vunpack.c.l.b16 %v1460
    %v2728 = vunpack.c.h.b16 %v1460
    %v2729 = vunpack.c.l.b16 %v1461
    %v2730 = vunpack.c.h.b16 %v1461
    %v2731 = vunpack.c.l.b16 %v1462
    %v2732 = vunpack.c.h.b16 %v1462
    %v2733 = vunpack.c.l.b16 %v1463
    %v2734 = vunpack.c.h.b16 %v1463
    %v2735 = vunpack.c.l.b16 %v1464
    %v2736 = vunpack.c.h.b16 %v1464
    %v2737 = vunpack.c.l.b16 %v1465
    %v2738 = vunpack.c.h.b16 %v1465
    %v2739 = vunpack.c.l.b16 %v1466
    %v2740 = vunpack.c.h.b16 %v1466
    %v2741 = vunpack.c.l.b16 %v1467
    %v2742 = vunpack.c.h.b16 %v1467
    %v2743 = vunpack.c.l.b16 %v1468
    %v2744 = vunpack.c.h.b16 %v1468
    %v2745 = vunpack.c.l.b16 %v1469
    %v2746 = vunpack.c.h.b16 %v1469
    %v2747 = vunpack.c.l.b16 %v1470
    %v2748 = vunpack.c.h.b16 %v1470
    %v2749 = vunpack.c.l.b16 %v1471
    %v2750 = vunpack.c.h.b16 %v1471
    %v2751 = vunpack.c.l.b16 %v1472
    %v2752 = vunpack.c.h.b16 %v1472
    %v2753 = vunpack.c.l.b16 %v1473
    %v2754 = vunpack.c.h.b16 %v1473
    %v2755 = vunpack.c.l.b16 %v1474
    %v2756 = vunpack.c.h.b16 %v1474
    %v2757 = vunpack.c.l.b16 %v1475
    %v2758 = vunpack.c.h.b16 %v1475
    %v2759 = vunpack.c.l.b16 %v1476
    %v2760 = vunpack.c.h.b16 %v1476
    %v2761 = vunpack.c.l.b16 %v1477
    %v2762 = vunpack.c.h.b16 %v1477
    %v2763 = vunpack.c.l.b16 %v1478
    %v2764 = vunpack.c.h.b16 %v1478
    %v2765 = vunpack.c.l.b16 %v1479
    %v2766 = vunpack.c.h.b16 %v1479
    %v2767 = vunpack.c.l.b16 %v1480
    %v2768 = vunpack.c.h.b16 %v1480
    %v2769 = vunpack.c.l.b16 %v1481
    %v2770 = vunpack.c.h.b16 %v1481
    %v2771 = vunpack.c.l.b16 %v1482
    %v2772 = vunpack.c.h.b16 %v1482
    %v2773 = vunpack.c.l.b16 %v1483
    %v2774 = vunpack.c.h.b16 %v1483
    %v2775 = vunpack.c.l.b16 %v1484
    %v2776 = vunpack.c.h.b16 %v1484
    %v2777 = vunpack.c.l.b16 %v1485
    %v2778 = vunpack.c.h.b16 %v1485
    %v2779 = vunpack.c.l.b16 %v1486
    %v2780 = vunpack.c.h.b16 %v1486
    %v2781 = vunpack.c.l.b16 %v1487
    %v2782 = vunpack.c.h.b16 %v1487
    %v2783 = vunpack.c.l.b16 %v1488
    %v2784 = vunpack.c.h.b16 %v1488
    %v2785 = vunpack.c.l.b16 %v1489
    %v2786 = vunpack.c.h.b16 %v1489
    %v2787 = vunpack.c.l.b16 %v1490
    %v2788 = vunpack.c.h.b16 %v1490
    %v2789 = vunpack.c.l.b16 %v1491
    %v2790 = vunpack.c.h.b16 %v1491
    %v2791 = vunpack.c.l.b16 %v1492
    %v2792 = vunpack.c.h.b16 %v1492
    %v2793 = vunpack.c.l.b16 %v1493
    %v2794 = vunpack.c.h.b16 %v1493
    %v2795 = vunpack.c.l.b16 %v1494
    %v2796 = vunpack.c.h.b16 %v1494
    %v2797 = vunpack.c.l.b16 %v1495
    %v2798 = vunpack.c.h.b16 %v1495
    %v2799 = vunpack.c.l.b16 %v1496
    %v2800 = vunpack.c.h.b16 %v1496
    %v2801 = vunpack.c.l.b16 %v1497
    %v2802 = vunpack.c.h.b16 %v1497
    %v2803 = vunpack.c.l.b16 %v1498
    %v2804 = vunpack.c.h.b16 %v1498
    %v2805 = vunpack.c.l.b16 %v1499
    %v2806 = vunpack.c.h.b16 %v1499
    %v2807 = vunpack.c.l.b16 %v1500
    %v2808 = vunpack.c.h.b16 %v1500
    %v2809 = vunpack.c.l.b16 %v1501
    %v2810 = vunpack.c.h.b16 %v1501
    %v2811 = vunpack.c.l.b16 %v1502
    %v2812 = vunpack.c.h.b16 %v1502
    %v2813 = vunpack.c.l.b16 %v1503
    %v2814 = vunpack.c.h.b16 %v1503
    %v2815 = vunpack.c.l.b16 %v1504
    %v2816 = vunpack.c.h.b16 %v1504
    %v2817 = vunpack.c.l.b16 %v1505
    %v2818 = vunpack.c.h.b16 %v1505
    %v2819 = vunpack.c.l.b16 %v1506
    %v2820 = vunpack.c.h.b16 %v1506
    %v2821 = vunpack.c.l.b16 %v1507
    %v2822 = vunpack.c.h.b16 %v1507
    %v2823 = vunpack.c.l.b16 %v1508
    %v2824 = vunpack.c.h.b16 %v1508
    %v2825 = vunpack.c.l.b16 %v1509
    %v2826 = vunpack.c.h.b16 %v1509
    %v2827 = vunpack.c.l.b16 %v1510
    %v2828 = vunpack.c.h.b16 %v1510
    %v2829 = vunpack.c.l.b16 %v1511
    %v2830 = vunpack.c.h.b16 %v1511
    %v2831 = vunpack.c.l.b16 %v1512
    %v2832 = vunpack.c.h.b16 %v1512
    %v2833 = vunpack.c.l.b16 %v1513
    %v2834 = vunpack.c.h.b16 %v1513
    %v2835 = vunpack.c.l.b16 %v1514
    %v2836 = vunpack.c.h.b16 %v1514
    %v2837 = vunpack.c.l.b16 %v1515
    %v2838 = vunpack.c.h.b16 %v1515
    %v2839 = vunpack.c.l.b16 %v1516
    %v2840 = vunpack.c.h.b16 %v1516
    %v2841 = vunpack.c.l.b16 %v1517
    %v2842 = vunpack.c.h.b16 %v1517
    %v2843 = vunpack.c.l.b16 %v1518
    %v2844 = vunpack.c.h.b16 %v1518
    %v2845 = vunpack.c.l.b16 %v1519
    %v2846 = vunpack.c.h.b16 %v1519
    %v2847 = vunpack.c.l.b16 %v1520
    %v2848 = vunpack.c.h.b16 %v1520
    %v2849 = vunpack.c.l.b16 %v1521
    %v2850 = vunpack.c.h.b16 %v1521
    %v2851 = vunpack.c.l.b16 %v1522
    %v2852 = vunpack.c.h.b16 %v1522
    %v2853 = vunpack.c.l.b16 %v1523
    %v2854 = vunpack.c.h.b16 %v1523
    %v2855 = vunpack.c.l.b16 %v1524
    %v2856 = vunpack.c.h.b16 %v1524
    %v2857 = vunpack.c.l.b16 %v1525
    %v2858 = vunpack.c.h.b16 %v1525
    %v2859 = vunpack.c.l.b16 %v1526
    %v2860 = vunpack.c.h.b16 %v1526
    %v2861 = vunpack.c.l.b16 %v1527
    %v2862 = vunpack.c.h.b16 %v1527
    %v2863 = vunpack.c.l.b16 %v1528
    %v2864 = vunpack.c.h.b16 %v1528
    %v2865 = vunpack.c.l.b16 %v1529
    %v2866 = vunpack.c.h.b16 %v1529
    %v2867 = vunpack.c.l.b16 %v1530
    %v2868 = vunpack.c.h.b16 %v1530
    %v2869 = vunpack.c.l.b16 %v1531
    %v2870 = vunpack.c.h.b16 %v1531
    %v2871 = vunpack.c.l.b16 %v1532
    %v2872 = vunpack.c.h.b16 %v1532
    %v2873 = vunpack.c.l.b16 %v1533
    %v2874 = vunpack.c.h.b16 %v1533
    %v2875 = vunpack.c.l.b16 %v1534
    %v2876 = vunpack.c.h.b16 %v1534
    %v2877 = vunpack.c.l.b16 %v1535
    %v2878 = vunpack.c.h.b16 %v1535
    %v2879 = vunpack.c.l.b16 %v1536
    %v2880 = vunpack.c.h.b16 %v1536
    %v2881 = vunpack.c.l.b16 %v1537
    %v2882 = vunpack.c.h.b16 %v1537
    %v2883 = vunpack.c.l.b16 %v1538
    %v2884 = vunpack.c.h.b16 %v1538
    %v2885 = vunpack.c.l.b16 %v1539
    %v2886 = vunpack.c.h.b16 %v1539
    %v2887 = vunpack.c.l.b16 %v1540
    %v2888 = vunpack.c.h.b16 %v1540
    %v2889 = vunpack.c.l.b16 %v1541
    %v2890 = vunpack.c.h.b16 %v1541
    %v2891 = vunpack.c.l.b16 %v1542
    %v2892 = vunpack.c.h.b16 %v1542
    %v2893 = vunpack.c.l.b16 %v1543
    %v2894 = vunpack.c.h.b16 %v1543
    %v2895 = vunpack.c.l.b16 %v1544
    %v2896 = vunpack.c.h.b16 %v1544
    %v2897 = vunpack.c.l.b16 %v1545
    %v2898 = vunpack.c.h.b16 %v1545
    %v2899 = vunpack.c.l.b16 %v1546
    %v2900 = vunpack.c.h.b16 %v1546
    %v2901 = vunpack.c.l.b16 %v1547
    %v2902 = vunpack.c.h.b16 %v1547
    %v2903 = vunpack.c.l.b16 %v1548
    %v2904 = vunpack.c.h.b16 %v1548
    %v2905 = vunpack.c.l.b16 %v1549
    %v2906 = vunpack.c.h.b16 %v1549
    %v2907 = vunpack.c.l.b16 %v1550
    %v2908 = vunpack.c.h.b16 %v1550
    %v2909 = vunpack.c.l.b16 %v1551
    %v2910 = vunpack.c.h.b16 %v1551
    %v2911 = vunpack.c.l.b16 %v1552
    %v2912 = vunpack.c.h.b16 %v1552
    %v2913 = vunpack.c.l.b16 %v1553
    %v2914 = vunpack.c.h.b16 %v1553
    %v2915 = vunpack.c.l.b16 %v1554
    %v2916 = vunpack.c.h.b16 %v1554
    %v2917 = vunpack.c.l.b16 %v1555
    %v2918 = vunpack.c.h.b16 %v1555
    %v2919 = vunpack.c.l.b16 %v1556
    %v2920 = vunpack.c.h.b16 %v1556
    %v2921 = vunpack.c.l.b16 %v1557
    %v2922 = vunpack.c.h.b16 %v1557
    %v2923 = vunpack.c.l.b16 %v1558
    %v2924 = vunpack.c.h.b16 %v1558
    %v2925 = vunpack.c.l.b16 %v1559
    %v2926 = vunpack.c.h.b16 %v1559
    %v2927 = vunpack.c.l.b16 %v1560
    %v2928 = vunpack.c.h.b16 %v1560
    %v2929 = vunpack.c.l.b16 %v1561
    %v2930 = vunpack.c.h.b16 %v1561
    %v2931 = vunpack.c.l.b16 %v1562
    %v2932 = vunpack.c.h.b16 %v1562
    %v2933 = vunpack.c.l.b16 %v1563
    %v2934 = vunpack.c.h.b16 %v1563
    %v2935 = vunpack.c.l.b16 %v1564
    %v2936 = vunpack.c.h.b16 %v1564
    %v2937 = vunpack.c.l.b16 %v1565
    %v2938 = vunpack.c.h.b16 %v1565
    %v2939 = vunpack.c.l.b16 %v1566
    %v2940 = vunpack.c.h.b16 %v1566
    %v2941 = vunpack.c.l.b16 %v1567
    %v2942 = vunpack.c.h.b16 %v1567
    %v2943 = vunpack.c.l.b16 %v1568
    %v2944 = vunpack.c.h.b16 %v1568
    %v2945 = vunpack.c.l.b16 %v1569
    %v2946 = vunpack.c.h.b16 %v1569
    %v2947 = vunpack.c.l.b16 %v1570
    %v2948 = vunpack.c.h.b16 %v1570
    %v2949 = vunpack.c.l.b16 %v1571
    %v2950 = vunpack.c.h.b16 %v1571
    %v2951 = vunpack.c.l.b16 %v1572
    %v2952 = vunpack.c.h.b16 %v1572
    %v2953 = vunpack.c.l.b16 %v1573
    %v2954 = vunpack.c.h.b16 %v1573
    %v2955 = vunpack.c.l.b16 %v1574
    %v2956 = vunpack.c.h.b16 %v1574
    %v2957 = vunpack.c.l.b16 %v1575
    %v2958 = vunpack.c.h.b16 %v1575
    %v2959 = vunpack.c.l.b16 %v1576
    %v2960 = vunpack.c.h.b16 %v1576
    %v2961 = vunpack.c.l.b16 %v1577
    %v2962 = vunpack.c.h.b16 %v1577
    %v2963 = vunpack.c.l.b16 %v1578
    %v2964 = vunpack.c.h.b16 %v1578
    %v2965 = vunpack.c.l.b16 %v1579
    %v2966 = vunpack.c.h.b16 %v1579
    %v2967 = vunpack.c.l.b16 %v1580
    %v2968 = vunpack.c.h.b16 %v1580
    %v2969 = vunpack.c.l.b16 %v1581
    %v2970 = vunpack.c.h.b16 %v1581
    %v2971 = vunpack.c.l.b16 %v1582
    %v2972 = vunpack.c.h.b16 %v1582
    %v2973 = vunpack.c.l.b16 %v1583
    %v2974 = vunpack.c.h.b16 %v1583
    %v2975 = vunpack.c.l.b16 %v1584
    %v2976 = vunpack.c.h.b16 %v1584
    %v2977 = vunpack.c.l.b16 %v1585
    %v2978 = vunpack.c.h.b16 %v1585
    %v2979 = vunpack.c.l.b16 %v1586
    %v2980 = vunpack.c.h.b16 %v1586
    %v2981 = vunpack.c.l.b16 %v1587
    %v2982 = vunpack.c.h.b16 %v1587
    %v2983 = vunpack.c.l.b16 %v1588
    %v2984 = vunpack.c.h.b16 %v1588
    %v2985 = vunpack.c.l.b16 %v1589
    %v2986 = vunpack.c.h.b16 %v1589
    %v2987 = vunpack.c.l.b16 %v1590
    %v2988 = vunpack.c.h.b16 %v1590
    %v2989 = vunpack.c.l.b16 %v1591
    %v2990 = vunpack.c.h.b16 %v1591
    %v2991 = vunpack.c.l.b16 %v1592
    %v2992 = vunpack.c.h.b16 %v1592
    %v2993 = vunpack.c.l.b16 %v1593
    %v2994 = vunpack.c.h.b16 %v1593
    %v2995 = vunpack.c.l.b16 %v1594
    %v2996 = vunpack.c.h.b16 %v1594
    %v2997 = vunpack.c.l.b16 %v1595
    %v2998 = vunpack.c.h.b16 %v1595
    %v2999 = vunpack.c.l.b16 %v1596
    %v3000 = vunpack.c.h.b16 %v1596
    %v3001 = vunpack.c.l.b16 %v1597
    %v3002 = vunpack.c.h.b16 %v1597
    %v3003 = vunpack.c.l.b16 %v1598
    %v3004 = vunpack.c.h.b16 %v1598
    %v3005 = vunpack.c.l.b16 %v1599
    %v3006 = vunpack.c.h.b16 %v1599
    %v3007 = vunpack.c.l.b16 %v1600
    %v3008 = vunpack.c.h.b16 %v1600
    %v3009 = vunpack.c.l.b16 %v1601
    %v3010 = vunpack.c.h.b16 %v1601
    %v3011 = vunpack.c.l.b16 %v1602
    %v3012 = vunpack.c.h.b16 %v1602
    %v3013 = vunpack.c.l.b16 %v1603
    %v3014 = vunpack.c.h.b16 %v1603
    %v3015 = vunpack.c.l.b16 %v1604
    %v3016 = vunpack.c.h.b16 %v1604
    %v3017 = vunpack.c.l.b16 %v1605
    %v3018 = vunpack.c.h.b16 %v1605
    %v3019 = vunpack.c.l.b16 %v1606
    %v3020 = vunpack.c.h.b16 %v1606
    %v3021 = vunpack.c.l.b16 %v1607
    %v3022 = vunpack.c.h.b16 %v1607
    %v3023 = vunpack.c.l.b16 %v1608
    %v3024 = vunpack.c.h.b16 %v1608
    %v3025 = vunpack.c.l.b16 %v1609
    %v3026 = vunpack.c.h.b16 %v1609
    %v3027 = vunpack.c.l.b16 %v1610
    %v3028 = vunpack.c.h.b16 %v1610
    %v3029 = vunpack.c.l.b16 %v1611
    %v3030 = vunpack.c.h.b16 %v1611
    %v3031 = vunpack.c.l.b16 %v1612
    %v3032 = vunpack.c.h.b16 %v1612
    %v3033 = vunpack.c.l.b16 %v1613
    %v3034 = vunpack.c.h.b16 %v1613
    %v3035 = vunpack.c.l.b16 %v1614
    %v3036 = vunpack.c.h.b16 %v1614
    %v3037 = vunpack.c.l.b16 %v1615
    %v3038 = vunpack.c.h.b16 %v1615
    %v3039 = vunpack.c.l.b16 %v1616
    %v3040 = vunpack.c.h.b16 %v1616
    %v3041 = vunpack.c.l.b16 %v1617
    %v3042 = vunpack.c.h.b16 %v1617
    %v3043 = vunpack.c.l.b16 %v1618
    %v3044 = vunpack.c.h.b16 %v1618
    %v3045 = vunpack.c.l.b16 %v1619
    %v3046 = vunpack.c.h.b16 %v1619
    %v3047 = vunpack.c.l.b16 %v1620
    %v3048 = vunpack.c.h.b16 %v1620
    %v3049 = vunpack.c.l.b16 %v1621
    %v3050 = vunpack.c.h.b16 %v1621
    %v3051 = vunpack.c.l.b16 %v1622
    %v3052 = vunpack.c.h.b16 %v1622
    %v3053 = vunpack.c.l.b16 %v1623
    %v3054 = vunpack.c.h.b16 %v1623
    %v3055 = vunpack.c.l.b16 %v1624
    %v3056 = vunpack.c.h.b16 %v1624
    %v3057 = vunpack.c.l.b16 %v1625
    %v3058 = vunpack.c.h.b16 %v1625
    %v3059 = vunpack.c.l.b16 %v1626
    %v3060 = vunpack.c.h.b16 %v1626
    %v3061 = vunpack.c.l.b16 %v1627
    %v3062 = vunpack.c.h.b16 %v1627
    %v3063 = vunpack.c.l.b16 %v1628
    %v3064 = vunpack.c.h.b16 %v1628
    %v3065 = vunpack.c.l.b16 %v1629
    %v3066 = vunpack.c.h.b16 %v1629
    %v3067 = vunpack.c.l.b16 %v1630
    %v3068 = vunpack.c.h.b16 %v1630
    %v3069 = vunpack.c.l.b16 %v1631
    %v3070 = vunpack.c.h.b16 %v1631
    %v3071 = vunpack.c.l.b16 %v1632
    %v3072 = vunpack.c.h.b16 %v1632
    %v3073 = vunpack.c.l.b16 %v1633
    %v3074 = vunpack.c.h.b16 %v1633
    %v3075 = vunpack.c.l.b16 %v1634
    %v3076 = vunpack.c.h.b16 %v1634
    %v3077 = vunpack.c.l.b16 %v1635
    %v3078 = vunpack.c.h.b16 %v1635
    %v3079 = vunpack.c.l.b16 %v1636
    %v3080 = vunpack.c.h.b16 %v1636
    %v3081 = vunpack.c.l.b16 %v1637
    %v3082 = vunpack.c.h.b16 %v1637
    %v3083 = vunpack.c.l.b16 %v1638
    %v3084 = vunpack.c.h.b16 %v1638
    %v3085 = vunpack.c.l.b16 %v1639
    %v3086 = vunpack.c.h.b16 %v1639
    %v3087 = vunpack.c.l.b16 %v1640
    %v3088 = vunpack.c.h.b16 %v1640
    %v3089 = vunpack.c.l.b16 %v1641
    %v3090 = vunpack.c.h.b16 %v1641
    %v3091 = vunpack.c.l.b16 %v1642
    %v3092 = vunpack.c.h.b16 %v1642
    %v3093 = vunpack.c.l.b16 %v1643
    %v3094 = vunpack.c.h.b16 %v1643
    %v3095 = vunpack.c.l.b16 %v1644
    %v3096 = vunpack.c.h.b16 %v1644
    %v3097 = vunpack.c.l.b16 %v1645
    %v3098 = vunpack.c.h.b16 %v1645
    %v3099 = vunpack.c.l.b16 %v1646
    %v3100 = vunpack.c.h.b16 %v1646
    %v3101 = vunpack.c.l.b16 %v1647
    %v3102 = vunpack.c.h.b16 %v1647
    %v3103 = vunpack.c.l.b16 %v1648
    %v3104 = vunpack.c.h.b16 %v1648
    %v3105 = vunpack.c.l.b16 %v1649
    %v3106 = vunpack.c.h.b16 %v1649
    %v3107 = vunpack.c.l.b16 %v1650
    %v3108 = vunpack.c.h.b16 %v1650
    %v3109 = vunpack.c.l.b16 %v1651
    %v3110 = vunpack.c.h.b16 %v1651
    %v3111 = vunpack.c.l.b16 %v1652
    %v3112 = vunpack.c.h.b16 %v1652
    %v3113 = vunpack.c.l.b16 %v1653
    %v3114 = vunpack.c.h.b16 %v1653
    %v3115 = vunpack.c.l.b16 %v1654
    %v3116 = vunpack.c.h.b16 %v1654
    %v3117 = vunpack.c.l.b16 %v1655
    %v3118 = vunpack.c.h.b16 %v1655
    %v3119 = vunpack.c.l.b16 %v1656
    %v3120 = vunpack.c.h.b16 %v1656
    %v3121 = vunpack.c.l.b16 %v1657
    %v3122 = vunpack.c.h.b16 %v1657
    %v3123 = vunpack.c.l.b16 %v1658
    %v3124 = vunpack.c.h.b16 %v1658
    %v3125 = vunpack.c.l.b16 %v1659
    %v3126 = vunpack.c.h.b16 %v1659
    %v3127 = vunpack.c.l.b16 %v1660
    %v3128 = vunpack.c.h.b16 %v1660
    %v3129 = vunpack.c.l.b16 %v1661
    %v3130 = vunpack.c.h.b16 %v1661
    %v3131 = vunpack.c.l.b16 %v1662
    %v3132 = vunpack.c.h.b16 %v1662
    %v3133 = vunpack.c.l.b16 %v1663
    %v3134 = vunpack.c.h.b16 %v1663
    %v3135 = vunpack.c.l.b16 %v1664
    %v3136 = vunpack.c.h.b16 %v1664
    %v3137 = vunpack.c.l.b16 %v1665
    %v3138 = vunpack.c.h.b16 %v1665
    %v3139 = vunpack.c.l.b16 %v1666
    %v3140 = vunpack.c.h.b16 %v1666
    %v3141 = vunpack.c.l.b16 %v1667
    %v3142 = vunpack.c.h.b16 %v1667
    %v3143 = vunpack.c.l.b16 %v1668
    %v3144 = vunpack.c.h.b16 %v1668
    %v3145 = vunpack.c.l.b16 %v1669
    %v3146 = vunpack.c.h.b16 %v1669
    %v3147 = vunpack.c.l.b16 %v1670
    %v3148 = vunpack.c.h.b16 %v1670
    %v3149 = vunpack.c.l.b16 %v1671
    %v3150 = vunpack.c.h.b16 %v1671
    %v3151 = vunpack.c.l.b16 %v1672
    %v3152 = vunpack.c.h.b16 %v1672
    %v3153 = vunpack.c.l.b16 %v1673
    %v3154 = vunpack.c.h.b16 %v1673
    %v3155 = vunpack.c.l.b16 %v1674
    %v3156 = vunpack.c.h.b16 %v1674
    %v3157 = vunpack.c.l.b16 %v1675
    %v3158 = vunpack.c.h.b16 %v1675
    %v3159 = vunpack.c.l.b16 %v1676
    %v3160 = vunpack.c.h.b16 %v1676
    %v3161 = vunpack.c.l.b16 %v1677
    %v3162 = vunpack.c.h.b16 %v1677
    %v3163 = vunpack.c.l.b16 %v1678
    %v3164 = vunpack.c.h.b16 %v1678
    %v3165 = vunpack.c.l.b16 %v1679
    %v3166 = vunpack.c.h.b16 %v1679
    %v3167 = vunpack.c.l.b16 %v1680
    %v3168 = vunpack.c.h.b16 %v1680
    %v3169 = vunpack.c.l.b16 %v1681
    %v3170 = vunpack.c.h.b16 %v1681
    %v3171 = vunpack.c.l.b16 %v1682
    %v3172 = vunpack.c.h.b16 %v1682
    %v3173 = vunpack.c.l.b16 %v1683
    %v3174 = vunpack.c.h.b16 %v1683
    %v3175 = vunpack.c.l.b16 %v1684
    %v3176 = vunpack.c.h.b16 %v1684
    %v3177 = vunpack.c.l.b16 %v1685
    %v3178 = vunpack.c.h.b16 %v1685
    %v3179 = vunpack.c.l.b16 %v1686
    %v3180 = vunpack.c.h.b16 %v1686
    %v3181 = vunpack.c.l.b16 %v1687
    %v3182 = vunpack.c.h.b16 %v1687
    %v3183 = vunpack.c.l.b16 %v1688
    %v3184 = vunpack.c.h.b16 %v1688
    %v3185 = vunpack.c.l.b16 %v1689
    %v3186 = vunpack.c.h.b16 %v1689
    %v3187 = vunpack.c.l.b16 %v1690
    %v3188 = vunpack.c.h.b16 %v1690
    %v3189 = vunpack.c.l.b16 %v1691
    %v3190 = vunpack.c.h.b16 %v1691
    %v3191 = vunpack.c.l.b16 %v1692
    %v3192 = vunpack.c.h.b16 %v1692
    %v3193 = vunpack.c.l.b16 %v1693
    %v3194 = vunpack.c.h.b16 %v1693
    %v3195 = vunpack.c.l.b16 %v1694
    %v3196 = vunpack.c.h.b16 %v1694
    %v3197 = vunpack.c.l.b16 %v1695
    %v3198 = vunpack.c.h.b16 %v1695
    %v3199 = vunpack.c.l.b16 %v1696
    %v3200 = vunpack.c.h.b16 %v1696
    %v3201 = vunpack.c.l.b16 %v1697
    %v3202 = vunpack.c.h.b16 %v1697
    %v3203 = vunpack.c.l.b16 %v1698
    %v3204 = vunpack.c.h.b16 %v1698
    %v3205 = vunpack.c.l.b16 %v1699
    %v3206 = vunpack.c.h.b16 %v1699
    %v3207 = vunpack.c.l.b16 %v1700
    %v3208 = vunpack.c.h.b16 %v1700
    %v3209 = vunpack.c.l.b16 %v1701
    %v3210 = vunpack.c.h.b16 %v1701
    %v3211 = vunpack.c.l.b16 %v1702
    %v3212 = vunpack.c.h.b16 %v1702
    %v3213 = vunpack.c.l.b16 %v1703
    %v3214 = vunpack.c.h.b16 %v1703
    %v3215 = vunpack.c.l.b16 %v1704
    %v3216 = vunpack.c.h.b16 %v1704
    %v3217 = vunpack.c.l.b16 %v1705
    %v3218 = vunpack.c.h.b16 %v1705
    %v3219 = vunpack.c.l.b16 %v1706
    %v3220 = vunpack.c.h.b16 %v1706
    %v3221 = vunpack.c.l.b16 %v1707
    %v3222 = vunpack.c.h.b16 %v1707
    %v3223 = vunpack.c.l.b16 %v1708
    %v3224 = vunpack.c.h.b16 %v1708
    %v3225 = vunpack.c.l.b16 %v1709
    %v3226 = vunpack.c.h.b16 %v1709
    %v3227 = vunpack.c.l.b16 %v1710
    %v3228 = vunpack.c.h.b16 %v1710
    %v3229 = vunpack.c.l.b16 %v1711
    %v3230 = vunpack.c.h.b16 %v1711
    %v3231 = vunpack.c.l.b16 %v1712
    %v3232 = vunpack.c.h.b16 %v1712
    %v3233 = vunpack.c.l.b16 %v1713
    %v3234 = vunpack.c.h.b16 %v1713
    %v3235 = vunpack.c.l.b16 %v1714
    %v3236 = vunpack.c.h.b16 %v1714
    %v3237 = vunpack.c.l.b16 %v1715
    %v3238 = vunpack.c.h.b16 %v1715
    %v3239 = vunpack.c.l.b16 %v1716
    %v3240 = vunpack.c.h.b16 %v1716
    %v3241 = vunpack.c.l.b16 %v1717
    %v3242 = vunpack.c.h.b16 %v1717
    %v3243 = vunpack.c.l.b16 %v1718
    %v3244 = vunpack.c.h.b16 %v1718
    %v3245 = vunpack.c.l.b16 %v1719
    %v3246 = vunpack.c.h.b16 %v1719
    %v3247 = vunpack.c.l.b16 %v1720
    %v3248 = vunpack.c.h.b16 %v1720
    %v3249 = vunpack.c.l.b16 %v1721
    %v3250 = vunpack.c.h.b16 %v1721
    %v3251 = vunpack.c.l.b16 %v1722
    %v3252 = vunpack.c.h.b16 %v1722
    %v3253 = vunpack.c.l.b16 %v1723
    %v3254 = vunpack.c.h.b16 %v1723
    %v3255 = vunpack.c.l.b16 %v1724
    %v3256 = vunpack.c.h.b16 %v1724
    %v3257 = vunpack.c.l.b16 %v1725
    %v3258 = vunpack.c.h.b16 %v1725
    %v3259 = vunpack.c.l.b16 %v1726
    %v3260 = vunpack.c.h.b16 %v1726
    %v3261 = vunpack.c.l.b16 %v1727
    %v3262 = vunpack.c.h.b16 %v1727
    %v3263 = vunpack.c.l.b16 %v1728
    %v3264 = vunpack.c.h.b16 %v1728
    %v3265 = vunpack.c.l.b16 %v1729
    %v3266 = vunpack.c.h.b16 %v1729
    %v3267 = vunpack.c.l.b16 %v1730
    %v3268 = vunpack.c.h.b16 %v1730
    %v3269 = vunpack.c.l.b16 %v1731
    %v3270 = vunpack.c.h.b16 %v1731
    %v3271 = vunpack.c.l.b16 %v1732
    %v3272 = vunpack.c.h.b16 %v1732
    %v3273 = vunpack.c.l.b16 %v1733
    %v3274 = vunpack.c.h.b16 %v1733
    %v3275 = vunpack.c.l.b16 %v1734
    %v3276 = vunpack.c.h.b16 %v1734
    %v3277 = vunpack.c.l.b16 %v1735
    %v3278 = vunpack.c.h.b16 %v1735
    %v3279 = vunpack.c.l.b16 %v1736
    %v3280 = vunpack.c.h.b16 %v1736
    %v3281 = vunpack.c.l.b16 %v1737
    %v3282 = vunpack.c.h.b16 %v1737
    %v3283 = vunpack.c.l.b16 %v1738
    %v3284 = vunpack.c.h.b16 %v1738
    %v3285 = vpack.c.b16 %v2265, %v2261
    %v3286 = vpack.c.b16 %v2266, %v2262
    %v3287 = vpack.c.b16 %v2267, %v2263
    %v3288 = vpack.c.b16 %v2268, %v2264
    %v3289 = vpack.c.b16 %v2273, %v2269
    %v3290 = vpack.c.b16 %v2274, %v2270
    %v3291 = vpack.c.b16 %v2275, %v2271
    %v3292 = vpack.c.b16 %v2276, %v2272
    %v3293 = vpack.c.b16 %v2281, %v2277
    %v3294 = vpack.c.b16 %v2282, %v2278
    %v3295 = vpack.c.b16 %v2283, %v2279
    %v3296 = vpack.c.b16 %v2284, %v2280
    %v3297 = vpack.c.b16 %v2289, %v2285
    %v3298 = vpack.c.b16 %v2290, %v2286
    %v3299 = vpack.c.b16 %v2291, %v2287
    %v3300 = vpack.c.b16 %v2292, %v2288
    %v3301 = vpack.c.b16 %v2297, %v2293
    %v3302 = vpack.c.b16 %v2298, %v2294
    %v3303 = vpack.c.b16 %v2299, %v2295
    %v3304 = vpack.c.b16 %v2300, %v2296
    %v3305 = vpack.c.b16 %v2305, %v2301
    %v3306 = vpack.c.b16 %v2306, %v2302
    %v3307 = vpack.c.b16 %v2307, %v2303
    %v3308 = vpack.c.b16 %v2308, %v2304
    %v3309 = vpack.c.b16 %v2313, %v2309
    %v3310 = vpack.c.b16 %v2314, %v2310
    %v3311 = vpack.c.b16 %v2315, %v2311
    %v3312 = vpack.c.b16 %v2316, %v2312
    %v3313 = vpack.c.b16 %v2321, %v2317
    %v3314 = vpack.c.b16 %v2322, %v2318
    %v3315 = vpack.c.b16 %v2323, %v2319
    %v3316 = vpack.c.b16 %v2324, %v2320
    %v3317 = vpack.c.b16 %v2329, %v2325
    %v3318 = vpack.c.b16 %v2330, %v2326
    %v3319 = vpack.c.b16 %v2331, %v2327
    %v3320 = vpack.c.b16 %v2332, %v2328
    %v3321 = vpack.c.b16 %v2337, %v2333
    %v3322 = vpack.c.b16 %v2338, %v2334
    %v3323 = vpack.c.b16 %v2339, %v2335
    %v3324 = vpack.c.b16 %v2340, %v2336
    %v3325 = vpack.c.b16 %v2345, %v2341
    %v3326 = vpack.c.b16 %v2346, %v2342
    %v3327 = vpack.c.b16 %v2347, %v2343
    %v3328 = vpack.c.b16 %v2348, %v2344
    %v3329 = vpack.c.b16 %v2353, %v2349
    %v3330 = vpack.c.b16 %v2354, %v2350
    %v3331 = vpack.c.b16 %v2355, %v2351
    %v3332 = vpack.c.b16 %v2356, %v2352
    %v3333 = vpack.c.b16 %v2361, %v2357
    %v3334 = vpack.c.b16 %v2362, %v2358
    %v3335 = vpack.c.b16 %v2363, %v2359
    %v3336 = vpack.c.b16 %v2364, %v2360
    %v3337 = vpack.c.b16 %v2369, %v2365
    %v3338 = vpack.c.b16 %v2370, %v2366
    %v3339 = vpack.c.b16 %v2371, %v2367
    %v3340 = vpack.c.b16 %v2372, %v2368
    %v3341 = vpack.c.b16 %v2377, %v2373
    %v3342 = vpack.c.b16 %v2378, %v2374
    %v3343 = vpack.c.b16 %v2379, %v2375
    %v3344 = vpack.c.b16 %v2380, %v2376
    %v3345 = vpack.c.b16 %v2385, %v2381
    %v3346 = vpack.c.b16 %v2386, %v2382
    %v3347 = vpack.c.b16 %v2387, %v2383
    %v3348 = vpack.c.b16 %v2388, %v2384
    %v3349 = vpack.c.b16 %v2393, %v2389
    %v3350 = vpack.c.b16 %v2394, %v2390
    %v3351 = vpack.c.b16 %v2395, %v2391
    %v3352 = vpack.c.b16 %v2396, %v2392
    %v3353 = vpack.c.b16 %v2401, %v2397
    %v3354 = vpack.c.b16 %v2402, %v2398
    %v3355 = vpack.c.b16 %v2403, %v2399
    %v3356 = vpack.c.b16 %v2404, %v2400
    %v3357 = vpack.c.b16 %v2409, %v2405
    %v3358 = vpack.c.b16 %v2410, %v2406
    %v3359 = vpack.c.b16 %v2411, %v2407
    %v3360 = vpack.c.b16 %v2412, %v2408
    %v3361 = vpack.c.b16 %v2417, %v2413
    %v3362 = vpack.c.b16 %v2418, %v2414
    %v3363 = vpack.c.b16 %v2419, %v2415
    %v3364 = vpack.c.b16 %v2420, %v2416
    %v3365 = vpack.c.b16 %v2425, %v2421
    %v3366 = vpack.c.b16 %v2426, %v2422
    %v3367 = vpack.c.b16 %v2427, %v2423
    %v3368 = vpack.c.b16 %v2428, %v2424
    %v3369 = vpack.c.b16 %v2433, %v2429
    %v3370 = vpack.c.b16 %v2434, %v2430
    %v3371 = vpack.c.b16 %v2435, %v2431
    %v3372 = vpack.c.b16 %v2436, %v2432
    %v3373 = vpack.c.b16 %v2441, %v2437
    %v3374 = vpack.c.b16 %v2442, %v2438
    %v3375 = vpack.c.b16 %v2443, %v2439
    %v3376 = vpack.c.b16 %v2444, %v2440
    %v3377 = vpack.c.b16 %v2449, %v2445
    %v3378 = vpack.c.b16 %v2450, %v2446
    %v3379 = vpack.c.b16 %v2451, %v2447
    %v3380 = vpack.c.b16 %v2452, %v2448
    %v3381 = vpack.c.b16 %v2457, %v2453
    %v3382 = vpack.c.b16 %v2458, %v2454
    %v3383 = vpack.c.b16 %v2459, %v2455
    %v3384 = vpack.c.b16 %v2460, %v2456
    %v3385 = vpack.c.b16 %v2465, %v2461
    %v3386 = vpack.c.b16 %v2466, %v2462
    %v3387 = vpack.c.b16 %v2467, %v2463
    %v3388 = vpack.c.b16 %v2468, %v2464
    %v3389 = vpack.c.b16 %v2473, %v2469
    %v3390 = vpack.c.b16 %v2474, %v2470
    %v3391 = vpack.c.b16 %v2475, %v2471
    %v3392 = vpack.c.b16 %v2476, %v2472
    %v3393 = vpack.c.b16 %v2481, %v2477
    %v3394 = vpack.c.b16 %v2482, %v2478
    %v3395 = vpack.c.b16 %v2483, %v2479
    %v3396 = vpack.c.b16 %v2484, %v2480
    %v3397 = vpack.c.b16 %v2489, %v2485
    %v3398 = vpack.c.b16 %v2490, %v2486
    %v3399 = vpack.c.b16 %v2491, %v2487
    %v3400 = vpack.c.b16 %v2492, %v2488
    %v3401 = vpack.c.b16 %v2497, %v2493
    %v3402 = vpack.c.b16 %v2498, %v2494
    %v3403 = vpack.c.b16 %v2499, %v2495
    %v3404 = vpack.c.b16 %v2500, %v2496
    %v3405 = vpack.c.b16 %v2505, %v2501
    %v3406 = vpack.c.b16 %v2506, %v2502
    %v3407 = vpack.c.b16 %v2507, %v2503
    %v3408 = vpack.c.b16 %v2508, %v2504
    %v3409 = vpack.c.b16 %v2513, %v2509
    %v3410 = vpack.c.b16 %v2514, %v2510
    %v3411 = vpack.c.b16 %v2515, %v2511
    %v3412 = vpack.c.b16 %v2516, %v2512
    %v3413 = vpack.c.b16 %v2521, %v2517
    %v3414 = vpack.c.b16 %v2522, %v2518
    %v3415 = vpack.c.b16 %v2523, %v2519
    %v3416 = vpack.c.b16 %v2524, %v2520
    %v3417 = vpack.c.b16 %v2529, %v2525
    %v3418 = vpack.c.b16 %v2530, %v2526
    %v3419 = vpack.c.b16 %v2531, %v2527
    %v3420 = vpack.c.b16 %v2532, %v2528
    %v3421 = vpack.c.b16 %v2537, %v2533
    %v3422 = vpack.c.b16 %v2538, %v2534
    %v3423 = vpack.c.b16 %v2539, %v2535
    %v3424 = vpack.c.b16 %v2540, %v2536
    %v3425 = vpack.c.b16 %v2545, %v2541
    %v3426 = vpack.c.b16 %v2546, %v2542
    %v3427 = vpack.c.b16 %v2547, %v2543
    %v3428 = vpack.c.b16 %v2548, %v2544
    %v3429 = vpack.c.b16 %v2553, %v2549
    %v3430 = vpack.c.b16 %v2554, %v2550
    %v3431 = vpack.c.b16 %v2555, %v2551
    %v3432 = vpack.c.b16 %v2556, %v2552
    %v3433 = vpack.c.b16 %v2561, %v2557
    %v3434 = vpack.c.b16 %v2562, %v2558
    %v3435 = vpack.c.b16 %v2563, %v2559
    %v3436 = vpack.c.b16 %v2564, %v2560
    %v3437 = vpack.c.b16 %v2569, %v2565
    %v3438 = vpack.c.b16 %v2570, %v2566
    %v3439 = vpack.c.b16 %v2571, %v2567
    %v3440 = vpack.c.b16 %v2572, %v2568
    %v3441 = vpack.c.b16 %v2577, %v2573
    %v3442 = vpack.c.b16 %v2578, %v2574
    %v3443 = vpack.c.b16 %v2579, %v2575
    %v3444 = vpack.c.b16 %v2580, %v2576
    %v3445 = vpack.c.b16 %v2585, %v2581
    %v3446 = vpack.c.b16 %v2586, %v2582
    %v3447 = vpack.c.b16 %v2587, %v2583
    %v3448 = vpack.c.b16 %v2588, %v2584
    %v3449 = vpack.c.b16 %v2593, %v2589
    %v3450 = vpack.c.b16 %v2594, %v2590
    %v3451 = vpack.c.b16 %v2595, %v2591
    %v3452 = vpack.c.b16 %v2596, %v2592
    %v3453 = vpack.c.b16 %v2601, %v2597
    %v3454 = vpack.c.b16 %v2602, %v2598
    %v3455 = vpack.c.b16 %v2603, %v2599
    %v3456 = vpack.c.b16 %v2604, %v2600
    %v3457 = vpack.c.b16 %v2609, %v2605
    %v3458 = vpack.c.b16 %v2610, %v2606
    %v3459 = vpack.c.b16 %v2611, %v2607
    %v3460 = vpack.c.b16 %v2612, %v2608
    %v3461 = vpack.c.b16 %v2617, %v2613
    %v3462 = vpack.c.b16 %v2618, %v2614
    %v3463 = vpack.c.b16 %v2619, %v2615
    %v3464 = vpack.c.b16 %v2620, %v2616
    %v3465 = vpack.c.b16 %v2625, %v2621
    %v3466 = vpack.c.b16 %v2626, %v2622
    %v3467 = vpack.c.b16 %v2627, %v2623
    %v3468 = vpack.c.b16 %v2628, %v2624
    %v3469 = vpack.c.b16 %v2633, %v2629
    %v3470 = vpack.c.b16 %v2634, %v2630
    %v3471 = vpack.c.b16 %v2635, %v2631
    %v3472 = vpack.c.b16 %v2636, %v2632
    %v3473 = vpack.c.b16 %v2641, %v2637
    %v3474 = vpack.c.b16 %v2642, %v2638
    %v3475 = vpack.c.b16 %v2643, %v2639
    %v3476 = vpack.c.b16 %v2644, %v2640
    %v3477 = vpack.c.b16 %v2649, %v2645
    %v3478 = vpack.c.b16 %v2650, %v2646
    %v3479 = vpack.c.b16 %v2651, %v2647
    %v3480 = vpack.c.b16 %v2652, %v2648
    %v3481 = vpack.c.b16 %v2657, %v2653
    %v3482 = vpack.c.b16 %v2658, %v2654
    %v3483 = vpack.c.b16 %v2659, %v2655
    %v3484 = vpack.c.b16 %v2660, %v2656
    %v3485 = vpack.c.b16 %v2665, %v2661
    %v3486 = vpack.c.b16 %v2666, %v2662
    %v3487 = vpack.c.b16 %v2667, %v2663
    %v3488 = vpack.c.b16 %v2668, %v2664
    %v3489 = vpack.c.b16 %v2673, %v2669
    %v3490 = vpack.c.b16 %v2674, %v2670
    %v3491 = vpack.c.b16 %v2675, %v2671
    %v3492 = vpack.c.b16 %v2676, %v2672
    %v3493 = vpack.c.b16 %v2681, %v2677
    %v3494 = vpack.c.b16 %v2682, %v2678
    %v3495 = vpack.c.b16 %v2683, %v2679
    %v3496 = vpack.c.b16 %v2684, %v2680
    %v3497 = vpack.c.b16 %v2689, %v2685
    %v3498 = vpack.c.b16 %v2690, %v2686
    %v3499 = vpack.c.b16 %v2691, %v2687
    %v3500 = vpack.c.b16 %v2692, %v2688
    %v3501 = vpack.c.b16 %v2697, %v2693
    %v3502 = vpack.c.b16 %v2698, %v2694
    %v3503 = vpack.c.b16 %v2699, %v2695
    %v3504 = vpack.c.b16 %v2700, %v2696
    %v3505 = vpack.c.b16 %v2705, %v2701
    %v3506 = vpack.c.b16 %v2706, %v2702
    %v3507 = vpack.c.b16 %v2707, %v2703
    %v3508 = vpack.c.b16 %v2708, %v2704
    %v3509 = vpack.c.b16 %v2713, %v2709
    %v3510 = vpack.c.b16 %v2714, %v2710
    %v3511 = vpack.c.b16 %v2715, %v2711
    %v3512 = vpack.c.b16 %v2716, %v2712
    %v3513 = vpack.c.b16 %v2721, %v2717
    %v3514 = vpack.c.b16 %v2722, %v2718
    %v3515 = vpack.c.b16 %v2723, %v2719
    %v3516 = vpack.c.b16 %v2724, %v2720
    %v3517 = vpack.c.b16 %v2729, %v2725
    %v3518 = vpack.c.b16 %v2730, %v2726
    %v3519 = vpack.c.b16 %v2731, %v2727
    %v3520 = vpack.c.b16 %v2732, %v2728
    %v3521 = vpack.c.b16 %v2737, %v2733
    %v3522 = vpack.c.b16 %v2738, %v2734
    %v3523 = vpack.c.b16 %v2739, %v2735
    %v3524 = vpack.c.b16 %v2740, %v2736
    %v3525 = vpack.c.b16 %v2745, %v2741
    %v3526 = vpack.c.b16 %v2746, %v2742
    %v3527 = vpack.c.b16 %v2747, %v2743
    %v3528 = vpack.c.b16 %v2748, %v2744
    %v3529 = vpack.c.b16 %v2753, %v2749
    %v3530 = vpack.c.b16 %v2754, %v2750
    %v3531 = vpack.c.b16 %v2755, %v2751
    %v3532 = vpack.c.b16 %v2756, %v2752
    %v3533 = vpack.c.b16 %v2761, %v2757
    %v3534 = vpack.c.b16 %v2762, %v2758
    %v3535 = vpack.c.b16 %v2763, %v2759
    %v3536 = vpack.c.b16 %v2764, %v2760
    %v3537 = vpack.c.b16 %v2769, %v2765
    %v3538 = vpack.c.b16 %v2770, %v2766
    %v3539 = vpack.c.b16 %v2771, %v2767
    %v3540 = vpack.c.b16 %v2772, %v2768
    %v3541 = vpack.c.b16 %v2777, %v2773
    %v3542 = vpack.c.b16 %v2778, %v2774
    %v3543 = vpack.c.b16 %v2779, %v2775
    %v3544 = vpack.c.b16 %v2780, %v2776
    %v3545 = vpack.c.b16 %v2785, %v2781
    %v3546 = vpack.c.b16 %v2786, %v2782
    %v3547 = vpack.c.b16 %v2787, %v2783
    %v3548 = vpack.c.b16 %v2788, %v2784
    %v3549 = vpack.c.b16 %v2793, %v2789
    %v3550 = vpack.c.b16 %v2794, %v2790
    %v3551 = vpack.c.b16 %v2795, %v2791
    %v3552 = vpack.c.b16 %v2796, %v2792
    %v3553 = vpack.c.b16 %v2801, %v2797
    %v3554 = vpack.c.b16 %v2802, %v2798
    %v3555 = vpack.c.b16 %v2803, %v2799
    %v3556 = vpack.c.b16 %v2804, %v2800
    %v3557 = vpack.c.b16 %v2809, %v2805
    %v3558 = vpack.c.b16 %v2810, %v2806
    %v3559 = vpack.c.b16 %v2811, %v2807
    %v3560 = vpack.c.b16 %v2812, %v2808
    %v3561 = vpack.c.b16 %v2817, %v2813
    %v3562 = vpack.c.b16 %v2818, %v2814
    %v3563 = vpack.c.b16 %v2819, %v2815
    %v3564 = vpack.c.b16 %v2820, %v2816
    %v3565 = vpack.c.b16 %v2825, %v2821
    %v3566 = vpack.c.b16 %v2826, %v2822
    %v3567 = vpack.c.b16 %v2827, %v2823
    %v3568 = vpack.c.b16 %v2828, %v2824
    %v3569 = vpack.c.b16 %v2833, %v2829
    %v3570 = vpack.c.b16 %v2834, %v2830
    %v3571 = vpack.c.b16 %v2835, %v2831
    %v3572 = vpack.c.b16 %v2836, %v2832
    %v3573 = vpack.c.b16 %v2841, %v2837
    %v3574 = vpack.c.b16 %v2842, %v2838
    %v3575 = vpack.c.b16 %v2843, %v2839
    %v3576 = vpack.c.b16 %v2844, %v2840
    %v3577 = vpack.c.b16 %v2849, %v2845
    %v3578 = vpack.c.b16 %v2850, %v2846
    %v3579 = vpack.c.b16 %v2851, %v2847
    %v3580 = vpack.c.b16 %v2852, %v2848
    %v3581 = vpack.c.b16 %v2857, %v2853
    %v3582 = vpack.c.b16 %v2858, %v2854
    %v3583 = vpack.c.b16 %v2859, %v2855
    %v3584 = vpack.c.b16 %v2860, %v2856
    %v3585 = vpack.c.b16 %v2865, %v2861
    %v3586 = vpack.c.b16 %v2866, %v2862
    %v3587 = vpack.c.b16 %v2867, %v2863
    %v3588 = vpack.c.b16 %v2868, %v2864
    %v3589 = vpack.c.b16 %v2873, %v2869
    %v3590 = vpack.c.b16 %v2874, %v2870
    %v3591 = vpack.c.b16 %v2875, %v2871
    %v3592 = vpack.c.b16 %v2876, %v2872
    %v3593 = vpack.c.b16 %v2881, %v2877
    %v3594 = vpack.c.b16 %v2882, %v2878
    %v3595 = vpack.c.b16 %v2883, %v2879
    %v3596 = vpack.c.b16 %v2884, %v2880
    %v3597 = vpack.c.b16 %v2889, %v2885
    %v3598 = vpack.c.b16 %v2890, %v2886
    %v3599 = vpack.c.b16 %v2891, %v2887
    %v3600 = vpack.c.b16 %v2892, %v2888
    %v3601 = vpack.c.b16 %v2897, %v2893
    %v3602 = vpack.c.b16 %v2898, %v2894
    %v3603 = vpack.c.b16 %v2899, %v2895
    %v3604 = vpack.c.b16 %v2900, %v2896
    %v3605 = vpack.c.b16 %v2905, %v2901
    %v3606 = vpack.c.b16 %v2906, %v2902
    %v3607 = vpack.c.b16 %v2907, %v2903
    %v3608 = vpack.c.b16 %v2908, %v2904
    %v3609 = vpack.c.b16 %v2913, %v2909
    %v3610 = vpack.c.b16 %v2914, %v2910
    %v3611 = vpack.c.b16 %v2915, %v2911
    %v3612 = vpack.c.b16 %v2916, %v2912
    %v3613 = vpack.c.b16 %v2921, %v2917
    %v3614 = vpack.c.b16 %v2922, %v2918
    %v3615 = vpack.c.b16 %v2923, %v2919
    %v3616 = vpack.c.b16 %v2924, %v2920
    %v3617 = vpack.c.b16 %v2929, %v2925
    %v3618 = vpack.c.b16 %v2930, %v2926
    %v3619 = vpack.c.b16 %v2931, %v2927
    %v3620 = vpack.c.b16 %v2932, %v2928
    %v3621 = vpack.c.b16 %v2937, %v2933
    %v3622 = vpack.c.b16 %v2938, %v2934
    %v3623 = vpack.c.b16 %v2939, %v2935
    %v3624 = vpack.c.b16 %v2940, %v2936
    %v3625 = vpack.c.b16 %v2945, %v2941
    %v3626 = vpack.c.b16 %v2946, %v2942
    %v3627 = vpack.c.b16 %v2947, %v2943
    %v3628 = vpack.c.b16 %v2948, %v2944
    %v3629 = vpack.c.b16 %v2953, %v2949
    %v3630 = vpack.c.b16 %v2954, %v2950
    %v3631 = vpack.c.b16 %v2955, %v2951
    %v3632 = vpack.c.b16 %v2956, %v2952
    %v3633 = vpack.c.b16 %v2961, %v2957
    %v3634 = vpack.c.b16 %v2962, %v2958
    %v3635 = vpack.c.b16 %v2963, %v2959
    %v3636 = vpack.c.b16 %v2964, %v2960
    %v3637 = vpack.c.b16 %v2969, %v2965
    %v3638 = vpack.c.b16 %v2970, %v2966
    %v3639 = vpack.c.b16 %v2971, %v2967
    %v3640 = vpack.c.b16 %v2972, %v2968
    %v3641 = vpack.c.b16 %v2977, %v2973
    %v3642 = vpack.c.b16 %v2978, %v2974
    %v3643 = vpack.c.b16 %v2979, %v2975
    %v3644 = vpack.c.b16 %v2980, %v2976
    %v3645 = vpack.c.b16 %v2985, %v2981
    %v3646 = vpack.c.b16 %v2986, %v2982
    %v3647 = vpack.c.b16 %v2987, %v2983
    %v3648 = vpack.c.b16 %v2988, %v2984
    %v3649 = vpack.c.b16 %v2993, %v2989
    %v3650 = vpack.c.b16 %v2994, %v2990
    %v3651 = vpack.c.b16 %v2995, %v2991
    %v3652 = vpack.c.b16 %v2996, %v2992
    %v3653 = vpack.c.b16 %v3001, %v2997
    %v3654 = vpack.c.b16 %v3002, %v2998
    %v3655 = vpack.c.b16 %v3003, %v2999
    %v3656 = vpack.c.b16 %v3004, %v3000
    %v3657 = vpack.c.b16 %v3009, %v3005
    %v3658 = vpack.c.b16 %v3010, %v3006
    %v3659 = vpack.c.b16 %v3011, %v3007
    %v3660 = vpack.c.b16 %v3012, %v3008
    %v3661 = vpack.c.b16 %v3017, %v3013
    %v3662 = vpack.c.b16 %v3018, %v3014
    %v3663 = vpack.c.b16 %v3019, %v3015
    %v3664 = vpack.c.b16 %v3020, %v3016
    %v3665 = vpack.c.b16 %v3025, %v3021
    %v3666 = vpack.c.b16 %v3026, %v3022
    %v3667 = vpack.c.b16 %v3027, %v3023
    %v3668 = vpack.c.b16 %v3028, %v3024
    %v3669 = vpack.c.b16 %v3033, %v3029
    %v3670 = vpack.c.b16 %v3034, %v3030
    %v3671 = vpack.c.b16 %v3035, %v3031
    %v3672 = vpack.c.b16 %v3036, %v3032
    %v3673 = vpack.c.b16 %v3041, %v3037
    %v3674 = vpack.c.b16 %v3042, %v3038
    %v3675 = vpack.c.b16 %v3043, %v3039
    %v3676 = vpack.c.b16 %v3044, %v3040
    %v3677 = vpack.c.b16 %v3049, %v3045
    %v3678 = vpack.c.b16 %v3050, %v3046
    %v3679 = vpack.c.b16 %v3051, %v3047
    %v3680 = vpack.c.b16 %v3052, %v3048
    %v3681 = vpack.c.b16 %v3057, %v3053
    %v3682 = vpack.c.b16 %v3058, %v3054
    %v3683 = vpack.c.b16 %v3059, %v3055
    %v3684 = vpack.c.b16 %v3060, %v3056
    %v3685 = vpack.c.b16 %v3065, %v3061
    %v3686 = vpack.c.b16 %v3066, %v3062
    %v3687 = vpack.c.b16 %v3067, %v3063
    %v3688 = vpack.c.b16 %v3068, %v3064
    %v3689 = vpack.c.b16 %v3073, %v3069
    %v3690 = vpack.c.b16 %v3074, %v3070
    %v3691 = vpack.c.b16 %v3075, %v3071
    %v3692 = vpack.c.b16 %v3076, %v3072
    %v3693 = vpack.c.b16 %v3081, %v3077
    %v3694 = vpack.c.b16 %v3082, %v3078
    %v3695 = vpack.c.b16 %v3083, %v3079
    %v3696 = vpack.c.b16 %v3084, %v3080
    %v3697 = vpack.c.b16 %v3089, %v3085
    %v3698 = vpack.c.b16 %v3090, %v3086
    %v3699 = vpack.c.b16 %v3091, %v3087
    %v3700 = vpack.c.b16 %v3092, %v3088
    %v3701 = vpack.c.b16 %v3097, %v3093
    %v3702 = vpack.c.b16 %v3098, %v3094
    %v3703 = vpack.c.b16 %v3099, %v3095
    %v3704 = vpack.c.b16 %v3100, %v3096
    %v3705 = vpack.c.b16 %v3105, %v3101
    %v3706 = vpack.c.b16 %v3106, %v3102
    %v3707 = vpack.c.b16 %v3107, %v3103
    %v3708 = vpack.c.b16 %v3108, %v3104
    %v3709 = vpack.c.b16 %v3113, %v3109
    %v3710 = vpack.c.b16 %v3114, %v3110
    %v3711 = vpack.c.b16 %v3115, %v3111
    %v3712 = vpack.c.b16 %v3116, %v3112
    %v3713 = vpack.c.b16 %v3121, %v3117
    %v3714 = vpack.c.b16 %v3122, %v3118
    %v3715 = vpack.c.b16 %v3123, %v3119
    %v3716 = vpack.c.b16 %v3124, %v3120
    %v3717 = vpack.c.b16 %v3129, %v3125
    %v3718 = vpack.c.b16 %v3130, %v3126
    %v3719 = vpack.c.b16 %v3131, %v3127
    %v3720 = vpack.c.b16 %v3132, %v3128
    %v3721 = vpack.c.b16 %v3137, %v3133
    %v3722 = vpack.c.b16 %v3138, %v3134
    %v3723 = vpack.c.b16 %v3139, %v3135
    %v3724 = vpack.c.b16 %v3140, %v3136
    %v3725 = vpack.c.b16 %v3145, %v3141
    %v3726 = vpack.c.b16 %v3146, %v3142
    %v3727 = vpack.c.b16 %v3147, %v3143
    %v3728 = vpack.c.b16 %v3148, %v3144
    %v3729 = vpack.c.b16 %v3153, %v3149
    %v3730 = vpack.c.b16 %v3154, %v3150
    %v3731 = vpack.c.b16 %v3155, %v3151
    %v3732 = vpack.c.b16 %v3156, %v3152
    %v3733 = vpack.c.b16 %v3161, %v3157
    %v3734 = vpack.c.b16 %v3162, %v3158
    %v3735 = vpack.c.b16 %v3163, %v3159
    %v3736 = vpack.c.b16 %v3164, %v3160
    %v3737 = vpack.c.b16 %v3169, %v3165
    %v3738 = vpack.c.b16 %v3170, %v3166
    %v3739 = vpack.c.b16 %v3171, %v3167
    %v3740 = vpack.c.b16 %v3172, %v3168
    %v3741 = vpack.c.b16 %v3177, %v3173
    %v3742 = vpack.c.b16 %v3178, %v3174
    %v3743 = vpack.c.b16 %v3179, %v3175
    %v3744 = vpack.c.b16 %v3180, %v3176
    %v3745 = vpack.c.b16 %v3185, %v3181
    %v3746 = vpack.c.b16 %v3186, %v3182
    %v3747 = vpack.c.b16 %v3187, %v3183
    %v3748 = vpack.c.b16 %v3188, %v3184
    %v3749 = vpack.c.b16 %v3193, %v3189
    %v3750 = vpack.c.b16 %v3194, %v3190
    %v3751 = vpack.c.b16 %v3195, %v3191
    %v3752 = vpack.c.b16 %v3196, %v3192
    %v3753 = vpack.c.b16 %v3201, %v3197
    %v3754 = vpack.c.b16 %v3202, %v3198
    %v3755 = vpack.c.b16 %v3203, %v3199
    %v3756 = vpack.c.b16 %v3204, %v3200
    %v3757 = vpack.c.b16 %v3209, %v3205
    %v3758 = vpack.c.b16 %v3210, %v3206
    %v3759 = vpack.c.b16 %v3211, %v3207
    %v3760 = vpack.c.b16 %v3212, %v3208
    %v3761 = vpack.c.b16 %v3217, %v3213
    %v3762 = vpack.c.b16 %v3218, %v3214
    %v3763 = vpack.c.b16 %v3219, %v3215
    %v3764 = vpack.c.b16 %v3220, %v3216
    %v3765 = vpack.c.b16 %v3225, %v3221
    %v3766 = vpack.c.b16 %v3226, %v3222
    %v3767 = vpack.c.b16 %v3227, %v3223
    %v3768 = vpack.c.b16 %v3228, %v3224
    %v3769 = vpack.c.b16 %v3233, %v3229
    %v3770 = vpack.c.b16 %v3234, %v3230
    %v3771 = vpack.c.b16 %v3235, %v3231
    %v3772 = vpack.c.b16 %v3236, %v3232
    %v3773 = vpack.c.b16 %v3241, %v3237
    %v3774 = vpack.c.b16 %v3242, %v3238
    %v3775 = vpack.c.b16 %v3243, %v3239
    %v3776 = vpack.c.b16 %v3244, %v3240
    %v3777 = vpack.c.b16 %v3249, %v3245
    %v3778 = vpack.c.b16 %v3250, %v3246
    %v3779 = vpack.c.b16 %v3251, %v3247
    %v3780 = vpack.c.b16 %v3252, %v3248
    %v3781 = vpack.c.b16 %v3257, %v3253
    %v3782 = vpack.c.b16 %v3258, %v3254
    %v3783 = vpack.c.b16 %v3259, %v3255
    %v3784 = vpack.c.b16 %v3260, %v3256
    %v3785 = vpack.c.b16 %v3265, %v3261
    %v3786 = vpack.c.b16 %v3266, %v3262
    %v3787 = vpack.c.b16 %v3267, %v3263
    %v3788 = vpack.c.b16 %v3268, %v3264
    %v3789 = vpack.c.b16 %v3273, %v3269
    %v3790 = vpack.c.b16 %v3274, %v3270
    %v3791 = vpack.c.b16 %v3275, %v3271
    %v3792 = vpack.c.b16 %v3276, %v3272
    %v3793 = vpack.c.b16 %v3281, %v3277
    %v3794 = vpack.c.b16 %v3282, %v3278
    %v3795 = vpack.c.b16 %v3283, %v3279
    %v3796 = vpack.c.b16 %v3284, %v3280
    %4309 = vmatpush.bf16.msra.mxu0 %v3313
    %4310 = vmatpush.bf16.msra.mxu0 %v3309
    %4311 = vmatpush.bf16.msra.mxu0 %v3305
    %4312 = vmatpush.bf16.msra.mxu0 %v3301
    %4313 = vmatpush.bf16.msra.mxu0 %v3297
    %4314 = vmatpush.bf16.msra.mxu0 %v3293
    %4315 = vmatpush.bf16.msra.mxu0 %v3289
    %4316 = vmatpush.bf16.msra.mxu0 %v3285
    %4317 = vmatmul.bf16.gmra.mxu0 %v1207
    %v4318 = vpop.f32.mrf.mxu0
    %v4319 = vadd.f32 %v1741, %v4318
    %v4320 = vpop.f32.mrf.mxu0
    %v4321 = vadd.f32 %v1741, %v4320
    %4322 = vdwg.mxu0
    %4323 = vmatpush.bf16.msra.mxu0 %v3345
    %4324 = vmatpush.bf16.msra.mxu0 %v3341
    %4325 = vmatpush.bf16.msra.mxu0 %v3337
    %4326 = vmatpush.bf16.msra.mxu0 %v3333
    %4327 = vmatpush.bf16.msra.mxu0 %v3329
    %4328 = vmatpush.bf16.msra.mxu0 %v3325
    %4329 = vmatpush.bf16.msra.mxu0 %v3321
    %4330 = vmatpush.bf16.msra.mxu0 %v3317
    %4331 = vmatmul.bf16.gmra.mxu0 %v1208
    %v4332 = vpop.f32.mrf.mxu0
    %v4333 = vadd.f32 %v4319, %v4332
    %v4334 = vpop.f32.mrf.mxu0
    %v4335 = vadd.f32 %v4321, %v4334
    %4336 = vdwg.mxu0
    %4337 = vmatpush.bf16.msra.mxu0 %v3377
    %4338 = vmatpush.bf16.msra.mxu0 %v3373
    %4339 = vmatpush.bf16.msra.mxu0 %v3369
    %4340 = vmatpush.bf16.msra.mxu0 %v3365
    %4341 = vmatpush.bf16.msra.mxu0 %v3361
    %4342 = vmatpush.bf16.msra.mxu0 %v3357
    %4343 = vmatpush.bf16.msra.mxu0 %v3353
    %4344 = vmatpush.bf16.msra.mxu0 %v3349
    %4345 = vmatmul.bf16.gmra.mxu0 %v1209
    %v4346 = vpop.f32.mrf.mxu0
    %v4347 = vadd.f32 %v4333, %v4346
    %v4348 = vpop.f32.mrf.mxu0
    %v4349 = vadd.f32 %v4335, %v4348
    %4350 = vdwg.mxu0
    %4351 = vmatpush.bf16.msra.mxu0 %v3409
    %4352 = vmatpush.bf16.msra.mxu0 %v3405
    %4353 = vmatpush.bf16.msra.mxu0 %v3401
    %4354 = vmatpush.bf16.msra.mxu0 %v3397
    %4355 = vmatpush.bf16.msra.mxu0 %v3393
    %4356 = vmatpush.bf16.msra.mxu0 %v3389
    %4357 = vmatpush.bf16.msra.mxu0 %v3385
    %4358 = vmatpush.bf16.msra.mxu0 %v3381
    %4359 = vmatmul.bf16.gmra.mxu0 %v1210
    %v4360 = vpop.f32.mrf.mxu0
    %v4361 = vadd.f32 %v4347, %v4360
    %v4362 = vpop.f32.mrf.mxu0
    %v4363 = vadd.f32 %v4349, %v4362
    %4364 = vdwg.mxu0
    %4365 = vmatpush.bf16.msra.mxu0 %v3441
    %4366 = vmatpush.bf16.msra.mxu0 %v3437
    %4367 = vmatpush.bf16.msra.mxu0 %v3433
    %4368 = vmatpush.bf16.msra.mxu0 %v3429
    %4369 = vmatpush.bf16.msra.mxu0 %v3425
    %4370 = vmatpush.bf16.msra.mxu0 %v3421
    %4371 = vmatpush.bf16.msra.mxu0 %v3417
    %4372 = vmatpush.bf16.msra.mxu0 %v3413
    %4373 = vmatmul.bf16.gmra.mxu0 %v1211
    %v4374 = vpop.f32.mrf.mxu0
    %v4375 = vadd.f32 %v4361, %v4374
    %v4376 = vpop.f32.mrf.mxu0
    %v4377 = vadd.f32 %v4363, %v4376
    %4378 = vdwg.mxu0
    %4379 = vmatpush.bf16.msra.mxu0 %v3473
    %4380 = vmatpush.bf16.msra.mxu0 %v3469
    %4381 = vmatpush.bf16.msra.mxu0 %v3465
    %4382 = vmatpush.bf16.msra.mxu0 %v3461
    %4383 = vmatpush.bf16.msra.mxu0 %v3457
    %4384 = vmatpush.bf16.msra.mxu0 %v3453
    %4385 = vmatpush.bf16.msra.mxu0 %v3449
    %4386 = vmatpush.bf16.msra.mxu0 %v3445
    %4387 = vmatmul.bf16.gmra.mxu0 %v1212
    %v4388 = vpop.f32.mrf.mxu0
    %v4389 = vadd.f32 %v4375, %v4388
    %v4390 = vpop.f32.mrf.mxu0
    %v4391 = vadd.f32 %v4377, %v4390
    %4392 = vdwg.mxu0
    %4393 = vmatpush.bf16.msra.mxu0 %v3505
    %4394 = vmatpush.bf16.msra.mxu0 %v3501
    %4395 = vmatpush.bf16.msra.mxu0 %v3497
    %4396 = vmatpush.bf16.msra.mxu0 %v3493
    %4397 = vmatpush.bf16.msra.mxu0 %v3489
    %4398 = vmatpush.bf16.msra.mxu0 %v3485
    %4399 = vmatpush.bf16.msra.mxu0 %v3481
    %4400 = vmatpush.bf16.msra.mxu0 %v3477
    %4401 = vmatmul.bf16.gmra.mxu0 %v1213
    %v4402 = vpop.f32.mrf.mxu0
    %v4403 = vadd.f32 %v4389, %v4402
    %v4404 = vpop.f32.mrf.mxu0
    %v4405 = vadd.f32 %v4391, %v4404
    %4406 = vdwg.mxu0
    %4407 = vmatpush.bf16.msra.mxu0 %v3537
    %4408 = vmatpush.bf16.msra.mxu0 %v3533
    %4409 = vmatpush.bf16.msra.mxu0 %v3529
    %4410 = vmatpush.bf16.msra.mxu0 %v3525
    %4411 = vmatpush.bf16.msra.mxu0 %v3521
    %4412 = vmatpush.bf16.msra.mxu0 %v3517
    %4413 = vmatpush.bf16.msra.mxu0 %v3513
    %4414 = vmatpush.bf16.msra.mxu0 %v3509
    %4415 = vmatmul.bf16.gmra.mxu0 %v1214
    %v4416 = vpop.f32.mrf.mxu0
    %v4417 = vadd.f32 %v4403, %v4416
    %v4418 = vpop.f32.mrf.mxu0
    %v4419 = vadd.f32 %v4405, %v4418
    %4420 = vdwg.mxu0
    %4421 = vmatpush.bf16.msra.mxu0 %v3569
    %4422 = vmatpush.bf16.msra.mxu0 %v3565
    %4423 = vmatpush.bf16.msra.mxu0 %v3561
    %4424 = vmatpush.bf16.msra.mxu0 %v3557
    %4425 = vmatpush.bf16.msra.mxu0 %v3553
    %4426 = vmatpush.bf16.msra.mxu0 %v3549
    %4427 = vmatpush.bf16.msra.mxu0 %v3545
    %4428 = vmatpush.bf16.msra.mxu0 %v3541
    %4429 = vmatmul.bf16.gmra.mxu0 %v1215
    %v4430 = vpop.f32.mrf.mxu0
    %v4431 = vadd.f32 %v4417, %v4430
    %v4432 = vpop.f32.mrf.mxu0
    %v4433 = vadd.f32 %v4419, %v4432
    %4434 = vdwg.mxu0
    %4435 = vmatpush.bf16.msra.mxu0 %v3601
    %4436 = vmatpush.bf16.msra.mxu0 %v3597
    %4437 = vmatpush.bf16.msra.mxu0 %v3593
    %4438 = vmatpush.bf16.msra.mxu0 %v3589
    %4439 = vmatpush.bf16.msra.mxu0 %v3585
    %4440 = vmatpush.bf16.msra.mxu0 %v3581
    %4441 = vmatpush.bf16.msra.mxu0 %v3577
    %4442 = vmatpush.bf16.msra.mxu0 %v3573
    %4443 = vmatmul.bf16.gmra.mxu0 %v1216
    %v4444 = vpop.f32.mrf.mxu0
    %v4445 = vadd.f32 %v4431, %v4444
    %v4446 = vpop.f32.mrf.mxu0
    %v4447 = vadd.f32 %v4433, %v4446
    %4448 = vdwg.mxu0
    %4449 = vmatpush.bf16.msra.mxu0 %v3633
    %4450 = vmatpush.bf16.msra.mxu0 %v3629
    %4451 = vmatpush.bf16.msra.mxu0 %v3625
    %4452 = vmatpush.bf16.msra.mxu0 %v3621
    %4453 = vmatpush.bf16.msra.mxu0 %v3617
    %4454 = vmatpush.bf16.msra.mxu0 %v3613
    %4455 = vmatpush.bf16.msra.mxu0 %v3609
    %4456 = vmatpush.bf16.msra.mxu0 %v3605
    %4457 = vmatmul.bf16.gmra.mxu0 %v1217
    %v4458 = vpop.f32.mrf.mxu0
    %v4459 = vadd.f32 %v4445, %v4458
    %v4460 = vpop.f32.mrf.mxu0
    %v4461 = vadd.f32 %v4447, %v4460
    %4462 = vdwg.mxu0
    %4463 = vmatpush.bf16.msra.mxu0 %v3665
    %4464 = vmatpush.bf16.msra.mxu0 %v3661
    %4465 = vmatpush.bf16.msra.mxu0 %v3657
    %4466 = vmatpush.bf16.msra.mxu0 %v3653
    %4467 = vmatpush.bf16.msra.mxu0 %v3649
    %4468 = vmatpush.bf16.msra.mxu0 %v3645
    %4469 = vmatpush.bf16.msra.mxu0 %v3641
    %4470 = vmatpush.bf16.msra.mxu0 %v3637
    %4471 = vmatmul.bf16.gmra.mxu0 %v1218
    %v4472 = vpop.f32.mrf.mxu0
    %v4473 = vadd.f32 %v4459, %v4472
    %v4474 = vpop.f32.mrf.mxu0
    %v4475 = vadd.f32 %v4461, %v4474
    %4476 = vdwg.mxu0
    %4477 = vmatpush.bf16.msra.mxu0 %v3697
    %4478 = vmatpush.bf16.msra.mxu0 %v3693
    %4479 = vmatpush.bf16.msra.mxu0 %v3689
    %4480 = vmatpush.bf16.msra.mxu0 %v3685
    %4481 = vmatpush.bf16.msra.mxu0 %v3681
    %4482 = vmatpush.bf16.msra.mxu0 %v3677
    %4483 = vmatpush.bf16.msra.mxu0 %v3673
    %4484 = vmatpush.bf16.msra.mxu0 %v3669
    %4485 = vmatmul.bf16.gmra.mxu0 %v1219
    %v4486 = vpop.f32.mrf.mxu0
    %v4487 = vadd.f32 %v4473, %v4486
    %v4488 = vpop.f32.mrf.mxu0
    %v4489 = vadd.f32 %v4475, %v4488
    %4490 = vdwg.mxu0
    %4491 = vmatpush.bf16.msra.mxu0 %v3729
    %4492 = vmatpush.bf16.msra.mxu0 %v3725
    %4493 = vmatpush.bf16.msra.mxu0 %v3721
    %4494 = vmatpush.bf16.msra.mxu0 %v3717
    %4495 = vmatpush.bf16.msra.mxu0 %v3713
    %4496 = vmatpush.bf16.msra.mxu0 %v3709
    %4497 = vmatpush.bf16.msra.mxu0 %v3705
    %4498 = vmatpush.bf16.msra.mxu0 %v3701
    %4499 = vmatmul.bf16.gmra.mxu0 %v1220
    %v4500 = vpop.f32.mrf.mxu0
    %v4501 = vadd.f32 %v4487, %v4500
    %v4502 = vpop.f32.mrf.mxu0
    %v4503 = vadd.f32 %v4489, %v4502
    %4504 = vdwg.mxu0
    %4505 = vmatpush.bf16.msra.mxu0 %v3761
    %4506 = vmatpush.bf16.msra.mxu0 %v3757
    %4507 = vmatpush.bf16.msra.mxu0 %v3753
    %4508 = vmatpush.bf16.msra.mxu0 %v3749
    %4509 = vmatpush.bf16.msra.mxu0 %v3745
    %4510 = vmatpush.bf16.msra.mxu0 %v3741
    %4511 = vmatpush.bf16.msra.mxu0 %v3737
    %4512 = vmatpush.bf16.msra.mxu0 %v3733
    %4513 = vmatmul.bf16.gmra.mxu0 %v1221
    %v4514 = vpop.f32.mrf.mxu0
    %v4515 = vadd.f32 %v4501, %v4514
    %v4516 = vpop.f32.mrf.mxu0
    %v4517 = vadd.f32 %v4503, %v4516
    %4518 = vdwg.mxu0
    %4519 = vmatpush.bf16.msra.mxu0 %v3793
    %4520 = vmatpush.bf16.msra.mxu0 %v3789
    %4521 = vmatpush.bf16.msra.mxu0 %v3785
    %4522 = vmatpush.bf16.msra.mxu0 %v3781
    %4523 = vmatpush.bf16.msra.mxu0 %v3777
    %4524 = vmatpush.bf16.msra.mxu0 %v3773
    %4525 = vmatpush.bf16.msra.mxu0 %v3769
    %4526 = vmatpush.bf16.msra.mxu0 %v3765
    %4527 = vmatmul.bf16.gmra.mxu0 %v1222
    %v4528 = vpop.f32.mrf.mxu0
    %v4529 = vadd.f32 %v4515, %v4528
    %v4530 = vpop.f32.mrf.mxu0
    %v4531 = vadd.f32 %v4517, %v4530
    %4532 = vdwg.mxu0
    %4533 = vmatpush.bf16.msra.mxu0 %v3314
    %4534 = vmatpush.bf16.msra.mxu0 %v3310
    %4535 = vmatpush.bf16.msra.mxu0 %v3306
    %4536 = vmatpush.bf16.msra.mxu0 %v3302
    %4537 = vmatpush.bf16.msra.mxu0 %v3298
    %4538 = vmatpush.bf16.msra.mxu0 %v3294
    %4539 = vmatpush.bf16.msra.mxu0 %v3290
    %4540 = vmatpush.bf16.msra.mxu0 %v3286
    %4541 = vmatmul.bf16.gmra.mxu0 %v1207
    %v4542 = vpop.f32.mrf.mxu0
    %v4543 = vadd.f32 %v1742, %v4542
    %v4544 = vpop.f32.mrf.mxu0
    %v4545 = vadd.f32 %v1742, %v4544
    %4546 = vdwg.mxu0
    %4547 = vmatpush.bf16.msra.mxu0 %v3346
    %4548 = vmatpush.bf16.msra.mxu0 %v3342
    %4549 = vmatpush.bf16.msra.mxu0 %v3338
    %4550 = vmatpush.bf16.msra.mxu0 %v3334
    %4551 = vmatpush.bf16.msra.mxu0 %v3330
    %4552 = vmatpush.bf16.msra.mxu0 %v3326
    %4553 = vmatpush.bf16.msra.mxu0 %v3322
    %4554 = vmatpush.bf16.msra.mxu0 %v3318
    %4555 = vmatmul.bf16.gmra.mxu0 %v1208
    %v4556 = vpop.f32.mrf.mxu0
    %v4557 = vadd.f32 %v4543, %v4556
    %v4558 = vpop.f32.mrf.mxu0
    %v4559 = vadd.f32 %v4545, %v4558
    %4560 = vdwg.mxu0
    %4561 = vmatpush.bf16.msra.mxu0 %v3378
    %4562 = vmatpush.bf16.msra.mxu0 %v3374
    %4563 = vmatpush.bf16.msra.mxu0 %v3370
    %4564 = vmatpush.bf16.msra.mxu0 %v3366
    %4565 = vmatpush.bf16.msra.mxu0 %v3362
    %4566 = vmatpush.bf16.msra.mxu0 %v3358
    %4567 = vmatpush.bf16.msra.mxu0 %v3354
    %4568 = vmatpush.bf16.msra.mxu0 %v3350
    %4569 = vmatmul.bf16.gmra.mxu0 %v1209
    %v4570 = vpop.f32.mrf.mxu0
    %v4571 = vadd.f32 %v4557, %v4570
    %v4572 = vpop.f32.mrf.mxu0
    %v4573 = vadd.f32 %v4559, %v4572
    %4574 = vdwg.mxu0
    %4575 = vmatpush.bf16.msra.mxu0 %v3410
    %4576 = vmatpush.bf16.msra.mxu0 %v3406
    %4577 = vmatpush.bf16.msra.mxu0 %v3402
    %4578 = vmatpush.bf16.msra.mxu0 %v3398
    %4579 = vmatpush.bf16.msra.mxu0 %v3394
    %4580 = vmatpush.bf16.msra.mxu0 %v3390
    %4581 = vmatpush.bf16.msra.mxu0 %v3386
    %4582 = vmatpush.bf16.msra.mxu0 %v3382
    %4583 = vmatmul.bf16.gmra.mxu0 %v1210
    %v4584 = vpop.f32.mrf.mxu0
    %v4585 = vadd.f32 %v4571, %v4584
    %v4586 = vpop.f32.mrf.mxu0
    %v4587 = vadd.f32 %v4573, %v4586
    %4588 = vdwg.mxu0
    %4589 = vmatpush.bf16.msra.mxu0 %v3442
    %4590 = vmatpush.bf16.msra.mxu0 %v3438
    %4591 = vmatpush.bf16.msra.mxu0 %v3434
    %4592 = vmatpush.bf16.msra.mxu0 %v3430
    %4593 = vmatpush.bf16.msra.mxu0 %v3426
    %4594 = vmatpush.bf16.msra.mxu0 %v3422
    %4595 = vmatpush.bf16.msra.mxu0 %v3418
    %4596 = vmatpush.bf16.msra.mxu0 %v3414
    %4597 = vmatmul.bf16.gmra.mxu0 %v1211
    %v4598 = vpop.f32.mrf.mxu0
    %v4599 = vadd.f32 %v4585, %v4598
    %v4600 = vpop.f32.mrf.mxu0
    %v4601 = vadd.f32 %v4587, %v4600
    %4602 = vdwg.mxu0
    %4603 = vmatpush.bf16.msra.mxu0 %v3474
    %4604 = vmatpush.bf16.msra.mxu0 %v3470
    %4605 = vmatpush.bf16.msra.mxu0 %v3466
    %4606 = vmatpush.bf16.msra.mxu0 %v3462
    %4607 = vmatpush.bf16.msra.mxu0 %v3458
    %4608 = vmatpush.bf16.msra.mxu0 %v3454
    %4609 = vmatpush.bf16.msra.mxu0 %v3450
    %4610 = vmatpush.bf16.msra.mxu0 %v3446
    %4611 = vmatmul.bf16.gmra.mxu0 %v1212
    %v4612 = vpop.f32.mrf.mxu0
    %v4613 = vadd.f32 %v4599, %v4612
    %v4614 = vpop.f32.mrf.mxu0
    %v4615 = vadd.f32 %v4601, %v4614
    %4616 = vdwg.mxu0
    %4617 = vmatpush.bf16.msra.mxu0 %v3506
    %4618 = vmatpush.bf16.msra.mxu0 %v3502
    %4619 = vmatpush.bf16.msra.mxu0 %v3498
    %4620 = vmatpush.bf16.msra.mxu0 %v3494
    %4621 = vmatpush.bf16.msra.mxu0 %v3490
    %4622 = vmatpush.bf16.msra.mxu0 %v3486
    %4623 = vmatpush.bf16.msra.mxu0 %v3482
    %4624 = vmatpush.bf16.msra.mxu0 %v3478
    %4625 = vmatmul.bf16.gmra.mxu0 %v1213
    %v4626 = vpop.f32.mrf.mxu0
    %v4627 = vadd.f32 %v4613, %v4626
    %v4628 = vpop.f32.mrf.mxu0
    %v4629 = vadd.f32 %v4615, %v4628
    %4630 = vdwg.mxu0
    %4631 = vmatpush.bf16.msra.mxu0 %v3538
    %4632 = vmatpush.bf16.msra.mxu0 %v3534
    %4633 = vmatpush.bf16.msra.mxu0 %v3530
    %4634 = vmatpush.bf16.msra.mxu0 %v3526
    %4635 = vmatpush.bf16.msra.mxu0 %v3522
    %4636 = vmatpush.bf16.msra.mxu0 %v3518
    %4637 = vmatpush.bf16.msra.mxu0 %v3514
    %4638 = vmatpush.bf16.msra.mxu0 %v3510
    %4639 = vmatmul.bf16.gmra.mxu0 %v1214
    %v4640 = vpop.f32.mrf.mxu0
    %v4641 = vadd.f32 %v4627, %v4640
    %v4642 = vpop.f32.mrf.mxu0
    %v4643 = vadd.f32 %v4629, %v4642
    %4644 = vdwg.mxu0
    %4645 = vmatpush.bf16.msra.mxu0 %v3570
    %4646 = vmatpush.bf16.msra.mxu0 %v3566
    %4647 = vmatpush.bf16.msra.mxu0 %v3562
    %4648 = vmatpush.bf16.msra.mxu0 %v3558
    %4649 = vmatpush.bf16.msra.mxu0 %v3554
    %4650 = vmatpush.bf16.msra.mxu0 %v3550
    %4651 = vmatpush.bf16.msra.mxu0 %v3546
    %4652 = vmatpush.bf16.msra.mxu0 %v3542
    %4653 = vmatmul.bf16.gmra.mxu0 %v1215
    %v4654 = vpop.f32.mrf.mxu0
    %v4655 = vadd.f32 %v4641, %v4654
    %v4656 = vpop.f32.mrf.mxu0
    %v4657 = vadd.f32 %v4643, %v4656
    %4658 = vdwg.mxu0
    %4659 = vmatpush.bf16.msra.mxu0 %v3602
    %4660 = vmatpush.bf16.msra.mxu0 %v3598
    %4661 = vmatpush.bf16.msra.mxu0 %v3594
    %4662 = vmatpush.bf16.msra.mxu0 %v3590
    %4663 = vmatpush.bf16.msra.mxu0 %v3586
    %4664 = vmatpush.bf16.msra.mxu0 %v3582
    %4665 = vmatpush.bf16.msra.mxu0 %v3578
    %4666 = vmatpush.bf16.msra.mxu0 %v3574
    %4667 = vmatmul.bf16.gmra.mxu0 %v1216
    %v4668 = vpop.f32.mrf.mxu0
    %v4669 = vadd.f32 %v4655, %v4668
    %v4670 = vpop.f32.mrf.mxu0
    %v4671 = vadd.f32 %v4657, %v4670
    %4672 = vdwg.mxu0
    %4673 = vmatpush.bf16.msra.mxu0 %v3634
    %4674 = vmatpush.bf16.msra.mxu0 %v3630
    %4675 = vmatpush.bf16.msra.mxu0 %v3626
    %4676 = vmatpush.bf16.msra.mxu0 %v3622
    %4677 = vmatpush.bf16.msra.mxu0 %v3618
    %4678 = vmatpush.bf16.msra.mxu0 %v3614
    %4679 = vmatpush.bf16.msra.mxu0 %v3610
    %4680 = vmatpush.bf16.msra.mxu0 %v3606
    %4681 = vmatmul.bf16.gmra.mxu0 %v1217
    %v4682 = vpop.f32.mrf.mxu0
    %v4683 = vadd.f32 %v4669, %v4682
    %v4684 = vpop.f32.mrf.mxu0
    %v4685 = vadd.f32 %v4671, %v4684
    %4686 = vdwg.mxu0
    %4687 = vmatpush.bf16.msra.mxu0 %v3666
    %4688 = vmatpush.bf16.msra.mxu0 %v3662
    %4689 = vmatpush.bf16.msra.mxu0 %v3658
    %4690 = vmatpush.bf16.msra.mxu0 %v3654
    %4691 = vmatpush.bf16.msra.mxu0 %v3650
    %4692 = vmatpush.bf16.msra.mxu0 %v3646
    %4693 = vmatpush.bf16.msra.mxu0 %v3642
    %4694 = vmatpush.bf16.msra.mxu0 %v3638
    %4695 = vmatmul.bf16.gmra.mxu0 %v1218
    %v4696 = vpop.f32.mrf.mxu0
    %v4697 = vadd.f32 %v4683, %v4696
    %v4698 = vpop.f32.mrf.mxu0
    %v4699 = vadd.f32 %v4685, %v4698
    %4700 = vdwg.mxu0
    %4701 = vmatpush.bf16.msra.mxu0 %v3698
    %4702 = vmatpush.bf16.msra.mxu0 %v3694
    %4703 = vmatpush.bf16.msra.mxu0 %v3690
    %4704 = vmatpush.bf16.msra.mxu0 %v3686
    %4705 = vmatpush.bf16.msra.mxu0 %v3682
    %4706 = vmatpush.bf16.msra.mxu0 %v3678
    %4707 = vmatpush.bf16.msra.mxu0 %v3674
    %4708 = vmatpush.bf16.msra.mxu0 %v3670
    %4709 = vmatmul.bf16.gmra.mxu0 %v1219
    %v4710 = vpop.f32.mrf.mxu0
    %v4711 = vadd.f32 %v4697, %v4710
    %v4712 = vpop.f32.mrf.mxu0
    %v4713 = vadd.f32 %v4699, %v4712
    %4714 = vdwg.mxu0
    %4715 = vmatpush.bf16.msra.mxu0 %v3730
    %4716 = vmatpush.bf16.msra.mxu0 %v3726
    %4717 = vmatpush.bf16.msra.mxu0 %v3722
    %4718 = vmatpush.bf16.msra.mxu0 %v3718
    %4719 = vmatpush.bf16.msra.mxu0 %v3714
    %4720 = vmatpush.bf16.msra.mxu0 %v3710
    %4721 = vmatpush.bf16.msra.mxu0 %v3706
    %4722 = vmatpush.bf16.msra.mxu0 %v3702
    %4723 = vmatmul.bf16.gmra.mxu0 %v1220
    %v4724 = vpop.f32.mrf.mxu0
    %v4725 = vadd.f32 %v4711, %v4724
    %v4726 = vpop.f32.mrf.mxu0
    %v4727 = vadd.f32 %v4713, %v4726
    %4728 = vdwg.mxu0
    %4729 = vmatpush.bf16.msra.mxu0 %v3762
    %4730 = vmatpush.bf16.msra.mxu0 %v3758
    %4731 = vmatpush.bf16.msra.mxu0 %v3754
    %4732 = vmatpush.bf16.msra.mxu0 %v3750
    %4733 = vmatpush.bf16.msra.mxu0 %v3746
    %4734 = vmatpush.bf16.msra.mxu0 %v3742
    %4735 = vmatpush.bf16.msra.mxu0 %v3738
    %4736 = vmatpush.bf16.msra.mxu0 %v3734
    %4737 = vmatmul.bf16.gmra.mxu0 %v1221
    %v4738 = vpop.f32.mrf.mxu0
    %v4739 = vadd.f32 %v4725, %v4738
    %v4740 = vpop.f32.mrf.mxu0
    %v4741 = vadd.f32 %v4727, %v4740
    %4742 = vdwg.mxu0
    %4743 = vmatpush.bf16.msra.mxu0 %v3794
    %4744 = vmatpush.bf16.msra.mxu0 %v3790
    %4745 = vmatpush.bf16.msra.mxu0 %v3786
    %4746 = vmatpush.bf16.msra.mxu0 %v3782
    %4747 = vmatpush.bf16.msra.mxu0 %v3778
    %4748 = vmatpush.bf16.msra.mxu0 %v3774
    %4749 = vmatpush.bf16.msra.mxu0 %v3770
    %4750 = vmatpush.bf16.msra.mxu0 %v3766
    %4751 = vmatmul.bf16.gmra.mxu0 %v1222
    %v4752 = vpop.f32.mrf.mxu0
    %v4753 = vadd.f32 %v4739, %v4752
    %v4754 = vpop.f32.mrf.mxu0
    %v4755 = vadd.f32 %v4741, %v4754
    %4756 = vdwg.mxu0
    %4757 = vmatpush.bf16.msra.mxu0 %v3315
    %4758 = vmatpush.bf16.msra.mxu0 %v3311
    %4759 = vmatpush.bf16.msra.mxu0 %v3307
    %4760 = vmatpush.bf16.msra.mxu0 %v3303
    %4761 = vmatpush.bf16.msra.mxu0 %v3299
    %4762 = vmatpush.bf16.msra.mxu0 %v3295
    %4763 = vmatpush.bf16.msra.mxu0 %v3291
    %4764 = vmatpush.bf16.msra.mxu0 %v3287
    %4765 = vmatmul.bf16.gmra.mxu0 %v1207
    %v4766 = vpop.f32.mrf.mxu0
    %v4767 = vadd.f32 %v1743, %v4766
    %v4768 = vpop.f32.mrf.mxu0
    %v4769 = vadd.f32 %v1743, %v4768
    %4770 = vdwg.mxu0
    %4771 = vmatpush.bf16.msra.mxu0 %v3347
    %4772 = vmatpush.bf16.msra.mxu0 %v3343
    %4773 = vmatpush.bf16.msra.mxu0 %v3339
    %4774 = vmatpush.bf16.msra.mxu0 %v3335
    %4775 = vmatpush.bf16.msra.mxu0 %v3331
    %4776 = vmatpush.bf16.msra.mxu0 %v3327
    %4777 = vmatpush.bf16.msra.mxu0 %v3323
    %4778 = vmatpush.bf16.msra.mxu0 %v3319
    %4779 = vmatmul.bf16.gmra.mxu0 %v1208
    %v4780 = vpop.f32.mrf.mxu0
    %v4781 = vadd.f32 %v4767, %v4780
    %v4782 = vpop.f32.mrf.mxu0
    %v4783 = vadd.f32 %v4769, %v4782
    %4784 = vdwg.mxu0
    %4785 = vmatpush.bf16.msra.mxu0 %v3379
    %4786 = vmatpush.bf16.msra.mxu0 %v3375
    %4787 = vmatpush.bf16.msra.mxu0 %v3371
    %4788 = vmatpush.bf16.msra.mxu0 %v3367
    %4789 = vmatpush.bf16.msra.mxu0 %v3363
    %4790 = vmatpush.bf16.msra.mxu0 %v3359
    %4791 = vmatpush.bf16.msra.mxu0 %v3355
    %4792 = vmatpush.bf16.msra.mxu0 %v3351
    %4793 = vmatmul.bf16.gmra.mxu0 %v1209
    %v4794 = vpop.f32.mrf.mxu0
    %v4795 = vadd.f32 %v4781, %v4794
    %v4796 = vpop.f32.mrf.mxu0
    %v4797 = vadd.f32 %v4783, %v4796
    %4798 = vdwg.mxu0
    %4799 = vmatpush.bf16.msra.mxu0 %v3411
    %4800 = vmatpush.bf16.msra.mxu0 %v3407
    %4801 = vmatpush.bf16.msra.mxu0 %v3403
    %4802 = vmatpush.bf16.msra.mxu0 %v3399
    %4803 = vmatpush.bf16.msra.mxu0 %v3395
    %4804 = vmatpush.bf16.msra.mxu0 %v3391
    %4805 = vmatpush.bf16.msra.mxu0 %v3387
    %4806 = vmatpush.bf16.msra.mxu0 %v3383
    %4807 = vmatmul.bf16.gmra.mxu0 %v1210
    %v4808 = vpop.f32.mrf.mxu0
    %v4809 = vadd.f32 %v4795, %v4808
    %v4810 = vpop.f32.mrf.mxu0
    %v4811 = vadd.f32 %v4797, %v4810
    %4812 = vdwg.mxu0
    %4813 = vmatpush.bf16.msra.mxu0 %v3443
    %4814 = vmatpush.bf16.msra.mxu0 %v3439
    %4815 = vmatpush.bf16.msra.mxu0 %v3435
    %4816 = vmatpush.bf16.msra.mxu0 %v3431
    %4817 = vmatpush.bf16.msra.mxu0 %v3427
    %4818 = vmatpush.bf16.msra.mxu0 %v3423
    %4819 = vmatpush.bf16.msra.mxu0 %v3419
    %4820 = vmatpush.bf16.msra.mxu0 %v3415
    %4821 = vmatmul.bf16.gmra.mxu0 %v1211
    %v4822 = vpop.f32.mrf.mxu0
    %v4823 = vadd.f32 %v4809, %v4822
    %v4824 = vpop.f32.mrf.mxu0
    %v4825 = vadd.f32 %v4811, %v4824
    %4826 = vdwg.mxu0
    %4827 = vmatpush.bf16.msra.mxu0 %v3475
    %4828 = vmatpush.bf16.msra.mxu0 %v3471
    %4829 = vmatpush.bf16.msra.mxu0 %v3467
    %4830 = vmatpush.bf16.msra.mxu0 %v3463
    %4831 = vmatpush.bf16.msra.mxu0 %v3459
    %4832 = vmatpush.bf16.msra.mxu0 %v3455
    %4833 = vmatpush.bf16.msra.mxu0 %v3451
    %4834 = vmatpush.bf16.msra.mxu0 %v3447
    %4835 = vmatmul.bf16.gmra.mxu0 %v1212
    %v4836 = vpop.f32.mrf.mxu0
    %v4837 = vadd.f32 %v4823, %v4836
    %v4838 = vpop.f32.mrf.mxu0
    %v4839 = vadd.f32 %v4825, %v4838
    %4840 = vdwg.mxu0
    %4841 = vmatpush.bf16.msra.mxu0 %v3507
    %4842 = vmatpush.bf16.msra.mxu0 %v3503
    %4843 = vmatpush.bf16.msra.mxu0 %v3499
    %4844 = vmatpush.bf16.msra.mxu0 %v3495
    %4845 = vmatpush.bf16.msra.mxu0 %v3491
    %4846 = vmatpush.bf16.msra.mxu0 %v3487
    %4847 = vmatpush.bf16.msra.mxu0 %v3483
    %4848 = vmatpush.bf16.msra.mxu0 %v3479
    %4849 = vmatmul.bf16.gmra.mxu0 %v1213
    %v4850 = vpop.f32.mrf.mxu0
    %v4851 = vadd.f32 %v4837, %v4850
    %v4852 = vpop.f32.mrf.mxu0
    %v4853 = vadd.f32 %v4839, %v4852
    %4854 = vdwg.mxu0
    %4855 = vmatpush.bf16.msra.mxu0 %v3539
    %4856 = vmatpush.bf16.msra.mxu0 %v3535
    %4857 = vmatpush.bf16.msra.mxu0 %v3531
    %4858 = vmatpush.bf16.msra.mxu0 %v3527
    %4859 = vmatpush.bf16.msra.mxu0 %v3523
    %4860 = vmatpush.bf16.msra.mxu0 %v3519
    %4861 = vmatpush.bf16.msra.mxu0 %v3515
    %4862 = vmatpush.bf16.msra.mxu0 %v3511
    %4863 = vmatmul.bf16.gmra.mxu0 %v1214
    %v4864 = vpop.f32.mrf.mxu0
    %v4865 = vadd.f32 %v4851, %v4864
    %v4866 = vpop.f32.mrf.mxu0
    %v4867 = vadd.f32 %v4853, %v4866
    %4868 = vdwg.mxu0
    %4869 = vmatpush.bf16.msra.mxu0 %v3571
    %4870 = vmatpush.bf16.msra.mxu0 %v3567
    %4871 = vmatpush.bf16.msra.mxu0 %v3563
    %4872 = vmatpush.bf16.msra.mxu0 %v3559
    %4873 = vmatpush.bf16.msra.mxu0 %v3555
    %4874 = vmatpush.bf16.msra.mxu0 %v3551
    %4875 = vmatpush.bf16.msra.mxu0 %v3547
    %4876 = vmatpush.bf16.msra.mxu0 %v3543
    %4877 = vmatmul.bf16.gmra.mxu0 %v1215
    %v4878 = vpop.f32.mrf.mxu0
    %v4879 = vadd.f32 %v4865, %v4878
    %v4880 = vpop.f32.mrf.mxu0
    %v4881 = vadd.f32 %v4867, %v4880
    %4882 = vdwg.mxu0
    %4883 = vmatpush.bf16.msra.mxu0 %v3603
    %4884 = vmatpush.bf16.msra.mxu0 %v3599
    %4885 = vmatpush.bf16.msra.mxu0 %v3595
    %4886 = vmatpush.bf16.msra.mxu0 %v3591
    %4887 = vmatpush.bf16.msra.mxu0 %v3587
    %4888 = vmatpush.bf16.msra.mxu0 %v3583
    %4889 = vmatpush.bf16.msra.mxu0 %v3579
    %4890 = vmatpush.bf16.msra.mxu0 %v3575
    %4891 = vmatmul.bf16.gmra.mxu0 %v1216
    %v4892 = vpop.f32.mrf.mxu0
    %v4893 = vadd.f32 %v4879, %v4892
    %v4894 = vpop.f32.mrf.mxu0
    %v4895 = vadd.f32 %v4881, %v4894
    %4896 = vdwg.mxu0
    %4897 = vmatpush.bf16.msra.mxu0 %v3635
    %4898 = vmatpush.bf16.msra.mxu0 %v3631
    %4899 = vmatpush.bf16.msra.mxu0 %v3627
    %4900 = vmatpush.bf16.msra.mxu0 %v3623
    %4901 = vmatpush.bf16.msra.mxu0 %v3619
    %4902 = vmatpush.bf16.msra.mxu0 %v3615
    %4903 = vmatpush.bf16.msra.mxu0 %v3611
    %4904 = vmatpush.bf16.msra.mxu0 %v3607
    %4905 = vmatmul.bf16.gmra.mxu0 %v1217
    %v4906 = vpop.f32.mrf.mxu0
    %v4907 = vadd.f32 %v4893, %v4906
    %v4908 = vpop.f32.mrf.mxu0
    %v4909 = vadd.f32 %v4895, %v4908
    %4910 = vdwg.mxu0
    %4911 = vmatpush.bf16.msra.mxu0 %v3667
    %4912 = vmatpush.bf16.msra.mxu0 %v3663
    %4913 = vmatpush.bf16.msra.mxu0 %v3659
    %4914 = vmatpush.bf16.msra.mxu0 %v3655
    %4915 = vmatpush.bf16.msra.mxu0 %v3651
    %4916 = vmatpush.bf16.msra.mxu0 %v3647
    %4917 = vmatpush.bf16.msra.mxu0 %v3643
    %4918 = vmatpush.bf16.msra.mxu0 %v3639
    %4919 = vmatmul.bf16.gmra.mxu0 %v1218
    %v4920 = vpop.f32.mrf.mxu0
    %v4921 = vadd.f32 %v4907, %v4920
    %v4922 = vpop.f32.mrf.mxu0
    %v4923 = vadd.f32 %v4909, %v4922
    %4924 = vdwg.mxu0
    %4925 = vmatpush.bf16.msra.mxu0 %v3699
    %4926 = vmatpush.bf16.msra.mxu0 %v3695
    %4927 = vmatpush.bf16.msra.mxu0 %v3691
    %4928 = vmatpush.bf16.msra.mxu0 %v3687
    %4929 = vmatpush.bf16.msra.mxu0 %v3683
    %4930 = vmatpush.bf16.msra.mxu0 %v3679
    %4931 = vmatpush.bf16.msra.mxu0 %v3675
    %4932 = vmatpush.bf16.msra.mxu0 %v3671
    %4933 = vmatmul.bf16.gmra.mxu0 %v1219
    %v4934 = vpop.f32.mrf.mxu0
    %v4935 = vadd.f32 %v4921, %v4934
    %v4936 = vpop.f32.mrf.mxu0
    %v4937 = vadd.f32 %v4923, %v4936
    %4938 = vdwg.mxu0
    %4939 = vmatpush.bf16.msra.mxu0 %v3731
    %4940 = vmatpush.bf16.msra.mxu0 %v3727
    %4941 = vmatpush.bf16.msra.mxu0 %v3723
    %4942 = vmatpush.bf16.msra.mxu0 %v3719
    %4943 = vmatpush.bf16.msra.mxu0 %v3715
    %4944 = vmatpush.bf16.msra.mxu0 %v3711
    %4945 = vmatpush.bf16.msra.mxu0 %v3707
    %4946 = vmatpush.bf16.msra.mxu0 %v3703
    %4947 = vmatmul.bf16.gmra.mxu0 %v1220
    %v4948 = vpop.f32.mrf.mxu0
    %v4949 = vadd.f32 %v4935, %v4948
    %v4950 = vpop.f32.mrf.mxu0
    %v4951 = vadd.f32 %v4937, %v4950
    %4952 = vdwg.mxu0
    %4953 = vmatpush.bf16.msra.mxu0 %v3763
    %4954 = vmatpush.bf16.msra.mxu0 %v3759
    %4955 = vmatpush.bf16.msra.mxu0 %v3755
    %4956 = vmatpush.bf16.msra.mxu0 %v3751
    %4957 = vmatpush.bf16.msra.mxu0 %v3747
    %4958 = vmatpush.bf16.msra.mxu0 %v3743
    %4959 = vmatpush.bf16.msra.mxu0 %v3739
    %4960 = vmatpush.bf16.msra.mxu0 %v3735
    %4961 = vmatmul.bf16.gmra.mxu0 %v1221
    %v4962 = vpop.f32.mrf.mxu0
    %v4963 = vadd.f32 %v4949, %v4962
    %v4964 = vpop.f32.mrf.mxu0
    %v4965 = vadd.f32 %v4951, %v4964
    %4966 = vdwg.mxu0
    %4967 = vmatpush.bf16.msra.mxu0 %v3795
    %4968 = vmatpush.bf16.msra.mxu0 %v3791
    %4969 = vmatpush.bf16.msra.mxu0 %v3787
    %4970 = vmatpush.bf16.msra.mxu0 %v3783
    %4971 = vmatpush.bf16.msra.mxu0 %v3779
    %4972 = vmatpush.bf16.msra.mxu0 %v3775
    %4973 = vmatpush.bf16.msra.mxu0 %v3771
    %4974 = vmatpush.bf16.msra.mxu0 %v3767
    %4975 = vmatmul.bf16.gmra.mxu0 %v1222
    %v4976 = vpop.f32.mrf.mxu0
    %v4977 = vadd.f32 %v4963, %v4976
    %v4978 = vpop.f32.mrf.mxu0
    %v4979 = vadd.f32 %v4965, %v4978
    %4980 = vdwg.mxu0
    %4981 = vmatpush.bf16.msra.mxu0 %v3316
    %4982 = vmatpush.bf16.msra.mxu0 %v3312
    %4983 = vmatpush.bf16.msra.mxu0 %v3308
    %4984 = vmatpush.bf16.msra.mxu0 %v3304
    %4985 = vmatpush.bf16.msra.mxu0 %v3300
    %4986 = vmatpush.bf16.msra.mxu0 %v3296
    %4987 = vmatpush.bf16.msra.mxu0 %v3292
    %4988 = vmatpush.bf16.msra.mxu0 %v3288
    %4989 = vmatmul.bf16.gmra.mxu0 %v1207
    %v4990 = vpop.f32.mrf.mxu0
    %v4991 = vadd.f32 %v1744, %v4990
    %v4992 = vpop.f32.mrf.mxu0
    %v4993 = vadd.f32 %v1744, %v4992
    %4994 = vdwg.mxu0
    %4995 = vmatpush.bf16.msra.mxu0 %v3348
    %4996 = vmatpush.bf16.msra.mxu0 %v3344
    %4997 = vmatpush.bf16.msra.mxu0 %v3340
    %4998 = vmatpush.bf16.msra.mxu0 %v3336
    %4999 = vmatpush.bf16.msra.mxu0 %v3332
    %5000 = vmatpush.bf16.msra.mxu0 %v3328
    %5001 = vmatpush.bf16.msra.mxu0 %v3324
    %5002 = vmatpush.bf16.msra.mxu0 %v3320
    %5003 = vmatmul.bf16.gmra.mxu0 %v1208
    %v5004 = vpop.f32.mrf.mxu0
    %v5005 = vadd.f32 %v4991, %v5004
    %v5006 = vpop.f32.mrf.mxu0
    %v5007 = vadd.f32 %v4993, %v5006
    %5008 = vdwg.mxu0
    %5009 = vmatpush.bf16.msra.mxu0 %v3380
    %5010 = vmatpush.bf16.msra.mxu0 %v3376
    %5011 = vmatpush.bf16.msra.mxu0 %v3372
    %5012 = vmatpush.bf16.msra.mxu0 %v3368
    %5013 = vmatpush.bf16.msra.mxu0 %v3364
    %5014 = vmatpush.bf16.msra.mxu0 %v3360
    %5015 = vmatpush.bf16.msra.mxu0 %v3356
    %5016 = vmatpush.bf16.msra.mxu0 %v3352
    %5017 = vmatmul.bf16.gmra.mxu0 %v1209
    %v5018 = vpop.f32.mrf.mxu0
    %v5019 = vadd.f32 %v5005, %v5018
    %v5020 = vpop.f32.mrf.mxu0
    %v5021 = vadd.f32 %v5007, %v5020
    %5022 = vdwg.mxu0
    %5023 = vmatpush.bf16.msra.mxu0 %v3412
    %5024 = vmatpush.bf16.msra.mxu0 %v3408
    %5025 = vmatpush.bf16.msra.mxu0 %v3404
    %5026 = vmatpush.bf16.msra.mxu0 %v3400
    %5027 = vmatpush.bf16.msra.mxu0 %v3396
    %5028 = vmatpush.bf16.msra.mxu0 %v3392
    %5029 = vmatpush.bf16.msra.mxu0 %v3388
    %5030 = vmatpush.bf16.msra.mxu0 %v3384
    %5031 = vmatmul.bf16.gmra.mxu0 %v1210
    %v5032 = vpop.f32.mrf.mxu0
    %v5033 = vadd.f32 %v5019, %v5032
    %v5034 = vpop.f32.mrf.mxu0
    %v5035 = vadd.f32 %v5021, %v5034
    %5036 = vdwg.mxu0
    %5037 = vmatpush.bf16.msra.mxu0 %v3444
    %5038 = vmatpush.bf16.msra.mxu0 %v3440
    %5039 = vmatpush.bf16.msra.mxu0 %v3436
    %5040 = vmatpush.bf16.msra.mxu0 %v3432
    %5041 = vmatpush.bf16.msra.mxu0 %v3428
    %5042 = vmatpush.bf16.msra.mxu0 %v3424
    %5043 = vmatpush.bf16.msra.mxu0 %v3420
    %5044 = vmatpush.bf16.msra.mxu0 %v3416
    %5045 = vmatmul.bf16.gmra.mxu0 %v1211
    %v5046 = vpop.f32.mrf.mxu0
    %v5047 = vadd.f32 %v5033, %v5046
    %v5048 = vpop.f32.mrf.mxu0
    %v5049 = vadd.f32 %v5035, %v5048
    %5050 = vdwg.mxu0
    %5051 = vmatpush.bf16.msra.mxu0 %v3476
    %5052 = vmatpush.bf16.msra.mxu0 %v3472
    %5053 = vmatpush.bf16.msra.mxu0 %v3468
    %5054 = vmatpush.bf16.msra.mxu0 %v3464
    %5055 = vmatpush.bf16.msra.mxu0 %v3460
    %5056 = vmatpush.bf16.msra.mxu0 %v3456
    %5057 = vmatpush.bf16.msra.mxu0 %v3452
    %5058 = vmatpush.bf16.msra.mxu0 %v3448
    %5059 = vmatmul.bf16.gmra.mxu0 %v1212
    %v5060 = vpop.f32.mrf.mxu0
    %v5061 = vadd.f32 %v5047, %v5060
    %v5062 = vpop.f32.mrf.mxu0
    %v5063 = vadd.f32 %v5049, %v5062
    %5064 = vdwg.mxu0
    %5065 = vmatpush.bf16.msra.mxu0 %v3508
    %5066 = vmatpush.bf16.msra.mxu0 %v3504
    %5067 = vmatpush.bf16.msra.mxu0 %v3500
    %5068 = vmatpush.bf16.msra.mxu0 %v3496
    %5069 = vmatpush.bf16.msra.mxu0 %v3492
    %5070 = vmatpush.bf16.msra.mxu0 %v3488
    %5071 = vmatpush.bf16.msra.mxu0 %v3484
    %5072 = vmatpush.bf16.msra.mxu0 %v3480
    %5073 = vmatmul.bf16.gmra.mxu0 %v1213
    %v5074 = vpop.f32.mrf.mxu0
    %v5075 = vadd.f32 %v5061, %v5074
    %v5076 = vpop.f32.mrf.mxu0
    %v5077 = vadd.f32 %v5063, %v5076
    %5078 = vdwg.mxu0
    %5079 = vmatpush.bf16.msra.mxu0 %v3540
    %5080 = vmatpush.bf16.msra.mxu0 %v3536
    %5081 = vmatpush.bf16.msra.mxu0 %v3532
    %5082 = vmatpush.bf16.msra.mxu0 %v3528
    %5083 = vmatpush.bf16.msra.mxu0 %v3524
    %5084 = vmatpush.bf16.msra.mxu0 %v3520
    %5085 = vmatpush.bf16.msra.mxu0 %v3516
    %5086 = vmatpush.bf16.msra.mxu0 %v3512
    %5087 = vmatmul.bf16.gmra.mxu0 %v1214
    %v5088 = vpop.f32.mrf.mxu0
    %v5089 = vadd.f32 %v5075, %v5088
    %v5090 = vpop.f32.mrf.mxu0
    %v5091 = vadd.f32 %v5077, %v5090
    %5092 = vdwg.mxu0
    %5093 = vmatpush.bf16.msra.mxu0 %v3572
    %5094 = vmatpush.bf16.msra.mxu0 %v3568
    %5095 = vmatpush.bf16.msra.mxu0 %v3564
    %5096 = vmatpush.bf16.msra.mxu0 %v3560
    %5097 = vmatpush.bf16.msra.mxu0 %v3556
    %5098 = vmatpush.bf16.msra.mxu0 %v3552
    %5099 = vmatpush.bf16.msra.mxu0 %v3548
    %5100 = vmatpush.bf16.msra.mxu0 %v3544
    %5101 = vmatmul.bf16.gmra.mxu0 %v1215
    %v5102 = vpop.f32.mrf.mxu0
    %v5103 = vadd.f32 %v5089, %v5102
    %v5104 = vpop.f32.mrf.mxu0
    %v5105 = vadd.f32 %v5091, %v5104
    %5106 = vdwg.mxu0
    %5107 = vmatpush.bf16.msra.mxu0 %v3604
    %5108 = vmatpush.bf16.msra.mxu0 %v3600
    %5109 = vmatpush.bf16.msra.mxu0 %v3596
    %5110 = vmatpush.bf16.msra.mxu0 %v3592
    %5111 = vmatpush.bf16.msra.mxu0 %v3588
    %5112 = vmatpush.bf16.msra.mxu0 %v3584
    %5113 = vmatpush.bf16.msra.mxu0 %v3580
    %5114 = vmatpush.bf16.msra.mxu0 %v3576
    %5115 = vmatmul.bf16.gmra.mxu0 %v1216
    %v5116 = vpop.f32.mrf.mxu0
    %v5117 = vadd.f32 %v5103, %v5116
    %v5118 = vpop.f32.mrf.mxu0
    %v5119 = vadd.f32 %v5105, %v5118
    %5120 = vdwg.mxu0
    %5121 = vmatpush.bf16.msra.mxu0 %v3636
    %5122 = vmatpush.bf16.msra.mxu0 %v3632
    %5123 = vmatpush.bf16.msra.mxu0 %v3628
    %5124 = vmatpush.bf16.msra.mxu0 %v3624
    %5125 = vmatpush.bf16.msra.mxu0 %v3620
    %5126 = vmatpush.bf16.msra.mxu0 %v3616
    %5127 = vmatpush.bf16.msra.mxu0 %v3612
    %5128 = vmatpush.bf16.msra.mxu0 %v3608
    %5129 = vmatmul.bf16.gmra.mxu0 %v1217
    %v5130 = vpop.f32.mrf.mxu0
    %v5131 = vadd.f32 %v5117, %v5130
    %v5132 = vpop.f32.mrf.mxu0
    %v5133 = vadd.f32 %v5119, %v5132
    %5134 = vdwg.mxu0
    %5135 = vmatpush.bf16.msra.mxu0 %v3668
    %5136 = vmatpush.bf16.msra.mxu0 %v3664
    %5137 = vmatpush.bf16.msra.mxu0 %v3660
    %5138 = vmatpush.bf16.msra.mxu0 %v3656
    %5139 = vmatpush.bf16.msra.mxu0 %v3652
    %5140 = vmatpush.bf16.msra.mxu0 %v3648
    %5141 = vmatpush.bf16.msra.mxu0 %v3644
    %5142 = vmatpush.bf16.msra.mxu0 %v3640
    %5143 = vmatmul.bf16.gmra.mxu0 %v1218
    %v5144 = vpop.f32.mrf.mxu0
    %v5145 = vadd.f32 %v5131, %v5144
    %v5146 = vpop.f32.mrf.mxu0
    %v5147 = vadd.f32 %v5133, %v5146
    %5148 = vdwg.mxu0
    %5149 = vmatpush.bf16.msra.mxu0 %v3700
    %5150 = vmatpush.bf16.msra.mxu0 %v3696
    %5151 = vmatpush.bf16.msra.mxu0 %v3692
    %5152 = vmatpush.bf16.msra.mxu0 %v3688
    %5153 = vmatpush.bf16.msra.mxu0 %v3684
    %5154 = vmatpush.bf16.msra.mxu0 %v3680
    %5155 = vmatpush.bf16.msra.mxu0 %v3676
    %5156 = vmatpush.bf16.msra.mxu0 %v3672
    %5157 = vmatmul.bf16.gmra.mxu0 %v1219
    %v5158 = vpop.f32.mrf.mxu0
    %v5159 = vadd.f32 %v5145, %v5158
    %v5160 = vpop.f32.mrf.mxu0
    %v5161 = vadd.f32 %v5147, %v5160
    %5162 = vdwg.mxu0
    %5163 = vmatpush.bf16.msra.mxu0 %v3732
    %5164 = vmatpush.bf16.msra.mxu0 %v3728
    %5165 = vmatpush.bf16.msra.mxu0 %v3724
    %5166 = vmatpush.bf16.msra.mxu0 %v3720
    %5167 = vmatpush.bf16.msra.mxu0 %v3716
    %5168 = vmatpush.bf16.msra.mxu0 %v3712
    %5169 = vmatpush.bf16.msra.mxu0 %v3708
    %5170 = vmatpush.bf16.msra.mxu0 %v3704
    %5171 = vmatmul.bf16.gmra.mxu0 %v1220
    %v5172 = vpop.f32.mrf.mxu0
    %v5173 = vadd.f32 %v5159, %v5172
    %v5174 = vpop.f32.mrf.mxu0
    %v5175 = vadd.f32 %v5161, %v5174
    %5176 = vdwg.mxu0
    %5177 = vmatpush.bf16.msra.mxu0 %v3764
    %5178 = vmatpush.bf16.msra.mxu0 %v3760
    %5179 = vmatpush.bf16.msra.mxu0 %v3756
    %5180 = vmatpush.bf16.msra.mxu0 %v3752
    %5181 = vmatpush.bf16.msra.mxu0 %v3748
    %5182 = vmatpush.bf16.msra.mxu0 %v3744
    %5183 = vmatpush.bf16.msra.mxu0 %v3740
    %5184 = vmatpush.bf16.msra.mxu0 %v3736
    %5185 = vmatmul.bf16.gmra.mxu0 %v1221
    %v5186 = vpop.f32.mrf.mxu0
    %v5187 = vadd.f32 %v5173, %v5186
    %v5188 = vpop.f32.mrf.mxu0
    %v5189 = vadd.f32 %v5175, %v5188
    %5190 = vdwg.mxu0
    %5191 = vmatpush.bf16.msra.mxu0 %v3796
    %5192 = vmatpush.bf16.msra.mxu0 %v3792
    %5193 = vmatpush.bf16.msra.mxu0 %v3788
    %5194 = vmatpush.bf16.msra.mxu0 %v3784
    %5195 = vmatpush.bf16.msra.mxu0 %v3780
    %5196 = vmatpush.bf16.msra.mxu0 %v3776
    %5197 = vmatpush.bf16.msra.mxu0 %v3772
    %5198 = vmatpush.bf16.msra.mxu0 %v3768
    %5199 = vmatmul.bf16.gmra.mxu0 %v1222
    %v5200 = vpop.f32.mrf.mxu0
    %v5201 = vadd.f32 %v5187, %v5200
    %v5202 = vpop.f32.mrf.mxu0
    %v5203 = vadd.f32 %v5189, %v5202
    %5204 = vdwg.mxu0
    %v5205 = vmax.f32 %v4529, 0.0
    %v5206 = vmax.f32 %v4753, 0.0
    %v5207 = vmax.f32 %v4977, 0.0
    %v5208 = vmax.f32 %v5201, 0.0
    %v5209 = vmax.f32 %v4531, 0.0
    %v5210 = vmax.f32 %v4755, 0.0
    %v5211 = vmax.f32 %v4979, 0.0
    %v5212 = vmax.f32 %v5203, 0.0
    %v5213 = vpack.c.bf16 %v5209, %v5205
    %v5214 = vpack.c.bf16 %v5210, %v5206
    %v5215 = vpack.c.bf16 %v5211, %v5207
    %v5216 = vpack.c.bf16 %v5212, %v5208
    %s5217 = smul.u32 4, 64
    %s5218 = smul.u32 %s5217, 4
    %s5219 = sshll.u32 %s5218, 4
    %5220 = dma.done %s107, %s5219
    %v5221 = vld [vmem:[#allocation4] sm:$0xff]
    %v5222 = vld [vmem:[#allocation4 + $0x8] sm:$0xff]
    %v5223 = vld [vmem:[#allocation4 + $0x10] sm:$0xff]
    %v5224 = vld [vmem:[#allocation4 + $0x18] sm:$0xff]
    %v5225 = vld [vmem:[#allocation4 + $0x20] sm:$0xff]
    %v5226 = vld [vmem:[#allocation4 + $0x28] sm:$0xff]
    %v5227 = vld [vmem:[#allocation4 + $0x30] sm:$0xff]
    %v5228 = vld [vmem:[#allocation4 + $0x38] sm:$0xff]
    %v5229 = vld [vmem:[#allocation4 + $0x40] sm:$0xff]
    %v5230 = vld [vmem:[#allocation4 + $0x48] sm:$0xff]
    %v5231 = vld [vmem:[#allocation4 + $0x50] sm:$0xff]
    %v5232 = vld [vmem:[#allocation4 + $0x58] sm:$0xff]
    %v5233 = vld [vmem:[#allocation4 + $0x60] sm:$0xff]
    %v5234 = vld [vmem:[#allocation4 + $0x68] sm:$0xff]
    %v5235 = vld [vmem:[#allocation4 + $0x70] sm:$0xff]
    %v5236 = vld [vmem:[#allocation4 + $0x78] sm:$0xff]
    %v5237 = vld [vmem:[#allocation4 + $0x80] sm:$0xff]
    %v5238 = vld [vmem:[#allocation4 + $0x88] sm:$0xff]
    %v5239 = vld [vmem:[#allocation4 + $0x90] sm:$0xff]
    %v5240 = vld [vmem:[#allocation4 + $0x98] sm:$0xff]
    %v5241 = vld [vmem:[#allocation4 + $0xa0] sm:$0xff]
    %v5242 = vld [vmem:[#allocation4 + $0xa8] sm:$0xff]
    %v5243 = vld [vmem:[#allocation4 + $0xb0] sm:$0xff]
    %v5244 = vld [vmem:[#allocation4 + $0xb8] sm:$0xff]
    %v5245 = vld [vmem:[#allocation4 + $0xc0] sm:$0xff]
    %v5246 = vld [vmem:[#allocation4 + $0xc8] sm:$0xff]
    %v5247 = vld [vmem:[#allocation4 + $0xd0] sm:$0xff]
    %v5248 = vld [vmem:[#allocation4 + $0xd8] sm:$0xff]
    %v5249 = vld [vmem:[#allocation4 + $0xe0] sm:$0xff]
    %v5250 = vld [vmem:[#allocation4 + $0xe8] sm:$0xff]
    %v5251 = vld [vmem:[#allocation4 + $0xf0] sm:$0xff]
    %v5252 = vld [vmem:[#allocation4 + $0xf8] sm:$0xff]
    %v5253 = vld [vmem:[#allocation4 + $0x100] sm:$0xff]
    %v5254 = vld [vmem:[#allocation4 + $0x108] sm:$0xff]
    %v5255 = vld [vmem:[#allocation4 + $0x110] sm:$0xff]
    %v5256 = vld [vmem:[#allocation4 + $0x118] sm:$0xff]
    %v5257 = vld [vmem:[#allocation4 + $0x120] sm:$0xff]
    %v5258 = vld [vmem:[#allocation4 + $0x128] sm:$0xff]
    %v5259 = vld [vmem:[#allocation4 + $0x130] sm:$0xff]
    %v5260 = vld [vmem:[#allocation4 + $0x138] sm:$0xff]
    %v5261 = vld [vmem:[#allocation4 + $0x140] sm:$0xff]
    %v5262 = vld [vmem:[#allocation4 + $0x148] sm:$0xff]
    %v5263 = vld [vmem:[#allocation4 + $0x150] sm:$0xff]
    %v5264 = vld [vmem:[#allocation4 + $0x158] sm:$0xff]
    %v5265 = vld [vmem:[#allocation4 + $0x160] sm:$0xff]
    %v5266 = vld [vmem:[#allocation4 + $0x168] sm:$0xff]
    %v5267 = vld [vmem:[#allocation4 + $0x170] sm:$0xff]
    %v5268 = vld [vmem:[#allocation4 + $0x178] sm:$0xff]
    %v5269 = vld [vmem:[#allocation4 + $0x180] sm:$0xff]
    %v5270 = vld [vmem:[#allocation4 + $0x188] sm:$0xff]
    %v5271 = vld [vmem:[#allocation4 + $0x190] sm:$0xff]
    %v5272 = vld [vmem:[#allocation4 + $0x198] sm:$0xff]
    %v5273 = vld [vmem:[#allocation4 + $0x1a0] sm:$0xff]
    %v5274 = vld [vmem:[#allocation4 + $0x1a8] sm:$0xff]
    %v5275 = vld [vmem:[#allocation4 + $0x1b0] sm:$0xff]
    %v5276 = vld [vmem:[#allocation4 + $0x1b8] sm:$0xff]
    %v5277 = vld [vmem:[#allocation4 + $0x1c0] sm:$0xff]
    %v5278 = vld [vmem:[#allocation4 + $0x1c8] sm:$0xff]
    %v5279 = vld [vmem:[#allocation4 + $0x1d0] sm:$0xff]
    %v5280 = vld [vmem:[#allocation4 + $0x1d8] sm:$0xff]
    %v5281 = vld [vmem:[#allocation4 + $0x1e0] sm:$0xff]
    %v5282 = vld [vmem:[#allocation4 + $0x1e8] sm:$0xff]
    %v5283 = vld [vmem:[#allocation4 + $0x1f0] sm:$0xff]
    %v5284 = vld [vmem:[#allocation4 + $0x1f8] sm:$0xff]
    %v5285 = vld [vmem:[#allocation4 + $0x200] sm:$0xff]
    %v5286 = vld [vmem:[#allocation4 + $0x208] sm:$0xff]
    %v5287 = vld [vmem:[#allocation4 + $0x210] sm:$0xff]
    %v5288 = vld [vmem:[#allocation4 + $0x218] sm:$0xff]
    %v5289 = vld [vmem:[#allocation4 + $0x220] sm:$0xff]
    %v5290 = vld [vmem:[#allocation4 + $0x228] sm:$0xff]
    %v5291 = vld [vmem:[#allocation4 + $0x230] sm:$0xff]
    %v5292 = vld [vmem:[#allocation4 + $0x238] sm:$0xff]
    %v5293 = vld [vmem:[#allocation4 + $0x240] sm:$0xff]
    %v5294 = vld [vmem:[#allocation4 + $0x248] sm:$0xff]
    %v5295 = vld [vmem:[#allocation4 + $0x250] sm:$0xff]
    %v5296 = vld [vmem:[#allocation4 + $0x258] sm:$0xff]
    %v5297 = vld [vmem:[#allocation4 + $0x260] sm:$0xff]
    %v5298 = vld [vmem:[#allocation4 + $0x268] sm:$0xff]
    %v5299 = vld [vmem:[#allocation4 + $0x270] sm:$0xff]
    %v5300 = vld [vmem:[#allocation4 + $0x278] sm:$0xff]
    %v5301 = vld [vmem:[#allocation4 + $0x280] sm:$0xff]
    %v5302 = vld [vmem:[#allocation4 + $0x288] sm:$0xff]
    %v5303 = vld [vmem:[#allocation4 + $0x290] sm:$0xff]
    %v5304 = vld [vmem:[#allocation4 + $0x298] sm:$0xff]
    %v5305 = vld [vmem:[#allocation4 + $0x2a0] sm:$0xff]
    %v5306 = vld [vmem:[#allocation4 + $0x2a8] sm:$0xff]
    %v5307 = vld [vmem:[#allocation4 + $0x2b0] sm:$0xff]
    %v5308 = vld [vmem:[#allocation4 + $0x2b8] sm:$0xff]
    %v5309 = vld [vmem:[#allocation4 + $0x2c0] sm:$0xff]
    %v5310 = vld [vmem:[#allocation4 + $0x2c8] sm:$0xff]
    %v5311 = vld [vmem:[#allocation4 + $0x2d0] sm:$0xff]
    %v5312 = vld [vmem:[#allocation4 + $0x2d8] sm:$0xff]
    %v5313 = vld [vmem:[#allocation4 + $0x2e0] sm:$0xff]
    %v5314 = vld [vmem:[#allocation4 + $0x2e8] sm:$0xff]
    %v5315 = vld [vmem:[#allocation4 + $0x2f0] sm:$0xff]
    %v5316 = vld [vmem:[#allocation4 + $0x2f8] sm:$0xff]
    %v5317 = vld [vmem:[#allocation4 + $0x300] sm:$0xff]
    %v5318 = vld [vmem:[#allocation4 + $0x308] sm:$0xff]
    %v5319 = vld [vmem:[#allocation4 + $0x310] sm:$0xff]
    %v5320 = vld [vmem:[#allocation4 + $0x318] sm:$0xff]
    %v5321 = vld [vmem:[#allocation4 + $0x320] sm:$0xff]
    %v5322 = vld [vmem:[#allocation4 + $0x328] sm:$0xff]
    %v5323 = vld [vmem:[#allocation4 + $0x330] sm:$0xff]
    %v5324 = vld [vmem:[#allocation4 + $0x338] sm:$0xff]
    %v5325 = vld [vmem:[#allocation4 + $0x340] sm:$0xff]
    %v5326 = vld [vmem:[#allocation4 + $0x348] sm:$0xff]
    %v5327 = vld [vmem:[#allocation4 + $0x350] sm:$0xff]
    %v5328 = vld [vmem:[#allocation4 + $0x358] sm:$0xff]
    %v5329 = vld [vmem:[#allocation4 + $0x360] sm:$0xff]
    %v5330 = vld [vmem:[#allocation4 + $0x368] sm:$0xff]
    %v5331 = vld [vmem:[#allocation4 + $0x370] sm:$0xff]
    %v5332 = vld [vmem:[#allocation4 + $0x378] sm:$0xff]
    %v5333 = vld [vmem:[#allocation4 + $0x380] sm:$0xff]
    %v5334 = vld [vmem:[#allocation4 + $0x388] sm:$0xff]
    %v5335 = vld [vmem:[#allocation4 + $0x390] sm:$0xff]
    %v5336 = vld [vmem:[#allocation4 + $0x398] sm:$0xff]
    %v5337 = vld [vmem:[#allocation4 + $0x3a0] sm:$0xff]
    %v5338 = vld [vmem:[#allocation4 + $0x3a8] sm:$0xff]
    %v5339 = vld [vmem:[#allocation4 + $0x3b0] sm:$0xff]
    %v5340 = vld [vmem:[#allocation4 + $0x3b8] sm:$0xff]
    %v5341 = vld [vmem:[#allocation4 + $0x3c0] sm:$0xff]
    %v5342 = vld [vmem:[#allocation4 + $0x3c8] sm:$0xff]
    %v5343 = vld [vmem:[#allocation4 + $0x3d0] sm:$0xff]
    %v5344 = vld [vmem:[#allocation4 + $0x3d8] sm:$0xff]
    %v5345 = vld [vmem:[#allocation4 + $0x3e0] sm:$0xff]
    %v5346 = vld [vmem:[#allocation4 + $0x3e8] sm:$0xff]
    %v5347 = vld [vmem:[#allocation4 + $0x3f0] sm:$0xff]
    %v5348 = vld [vmem:[#allocation4 + $0x3f8] sm:$0xff]
    %v5349 = vld [vmem:[#allocation12] sm:$0xf]
    %v5351 = vperm.slane %v5349, 0
    %v5352 = vperm.slane %v5349, 1
    %v5353 = vperm.slane %v5349, 2
    %v5354 = vperm.slane %v5349, 3
    %v5487 = vunpack.c.l.b16 %v5221
    %v5488 = vunpack.c.h.b16 %v5221
    %v5489 = vunpack.c.l.b16 %v5222
    %v5490 = vunpack.c.h.b16 %v5222
    %v5491 = vunpack.c.l.b16 %v5223
    %v5492 = vunpack.c.h.b16 %v5223
    %v5493 = vunpack.c.l.b16 %v5224
    %v5494 = vunpack.c.h.b16 %v5224
    %v5495 = vunpack.c.l.b16 %v5225
    %v5496 = vunpack.c.h.b16 %v5225
    %v5497 = vunpack.c.l.b16 %v5226
    %v5498 = vunpack.c.h.b16 %v5226
    %v5499 = vunpack.c.l.b16 %v5227
    %v5500 = vunpack.c.h.b16 %v5227
    %v5501 = vunpack.c.l.b16 %v5228
    %v5502 = vunpack.c.h.b16 %v5228
    %v5503 = vunpack.c.l.b16 %v5229
    %v5504 = vunpack.c.h.b16 %v5229
    %v5505 = vunpack.c.l.b16 %v5230
    %v5506 = vunpack.c.h.b16 %v5230
    %v5507 = vunpack.c.l.b16 %v5231
    %v5508 = vunpack.c.h.b16 %v5231
    %v5509 = vunpack.c.l.b16 %v5232
    %v5510 = vunpack.c.h.b16 %v5232
    %v5511 = vunpack.c.l.b16 %v5233
    %v5512 = vunpack.c.h.b16 %v5233
    %v5513 = vunpack.c.l.b16 %v5234
    %v5514 = vunpack.c.h.b16 %v5234
    %v5515 = vunpack.c.l.b16 %v5235
    %v5516 = vunpack.c.h.b16 %v5235
    %v5517 = vunpack.c.l.b16 %v5236
    %v5518 = vunpack.c.h.b16 %v5236
    %v5519 = vunpack.c.l.b16 %v5237
    %v5520 = vunpack.c.h.b16 %v5237
    %v5521 = vunpack.c.l.b16 %v5238
    %v5522 = vunpack.c.h.b16 %v5238
    %v5523 = vunpack.c.l.b16 %v5239
    %v5524 = vunpack.c.h.b16 %v5239
    %v5525 = vunpack.c.l.b16 %v5240
    %v5526 = vunpack.c.h.b16 %v5240
    %v5527 = vunpack.c.l.b16 %v5241
    %v5528 = vunpack.c.h.b16 %v5241
    %v5529 = vunpack.c.l.b16 %v5242
    %v5530 = vunpack.c.h.b16 %v5242
    %v5531 = vunpack.c.l.b16 %v5243
    %v5532 = vunpack.c.h.b16 %v5243
    %v5533 = vunpack.c.l.b16 %v5244
    %v5534 = vunpack.c.h.b16 %v5244
    %v5535 = vunpack.c.l.b16 %v5245
    %v5536 = vunpack.c.h.b16 %v5245
    %v5537 = vunpack.c.l.b16 %v5246
    %v5538 = vunpack.c.h.b16 %v5246
    %v5539 = vunpack.c.l.b16 %v5247
    %v5540 = vunpack.c.h.b16 %v5247
    %v5541 = vunpack.c.l.b16 %v5248
    %v5542 = vunpack.c.h.b16 %v5248
    %v5543 = vunpack.c.l.b16 %v5249
    %v5544 = vunpack.c.h.b16 %v5249
    %v5545 = vunpack.c.l.b16 %v5250
    %v5546 = vunpack.c.h.b16 %v5250
    %v5547 = vunpack.c.l.b16 %v5251
    %v5548 = vunpack.c.h.b16 %v5251
    %v5549 = vunpack.c.l.b16 %v5252
    %v5550 = vunpack.c.h.b16 %v5252
    %v5551 = vunpack.c.l.b16 %v5253
    %v5552 = vunpack.c.h.b16 %v5253
    %v5553 = vunpack.c.l.b16 %v5254
    %v5554 = vunpack.c.h.b16 %v5254
    %v5555 = vunpack.c.l.b16 %v5255
    %v5556 = vunpack.c.h.b16 %v5255
    %v5557 = vunpack.c.l.b16 %v5256
    %v5558 = vunpack.c.h.b16 %v5256
    %v5559 = vunpack.c.l.b16 %v5257
    %v5560 = vunpack.c.h.b16 %v5257
    %v5561 = vunpack.c.l.b16 %v5258
    %v5562 = vunpack.c.h.b16 %v5258
    %v5563 = vunpack.c.l.b16 %v5259
    %v5564 = vunpack.c.h.b16 %v5259
    %v5565 = vunpack.c.l.b16 %v5260
    %v5566 = vunpack.c.h.b16 %v5260
    %v5567 = vunpack.c.l.b16 %v5261
    %v5568 = vunpack.c.h.b16 %v5261
    %v5569 = vunpack.c.l.b16 %v5262
    %v5570 = vunpack.c.h.b16 %v5262
    %v5571 = vunpack.c.l.b16 %v5263
    %v5572 = vunpack.c.h.b16 %v5263
    %v5573 = vunpack.c.l.b16 %v5264
    %v5574 = vunpack.c.h.b16 %v5264
    %v5575 = vunpack.c.l.b16 %v5265
    %v5576 = vunpack.c.h.b16 %v5265
    %v5577 = vunpack.c.l.b16 %v5266
    %v5578 = vunpack.c.h.b16 %v5266
    %v5579 = vunpack.c.l.b16 %v5267
    %v5580 = vunpack.c.h.b16 %v5267
    %v5581 = vunpack.c.l.b16 %v5268
    %v5582 = vunpack.c.h.b16 %v5268
    %v5583 = vunpack.c.l.b16 %v5269
    %v5584 = vunpack.c.h.b16 %v5269
    %v5585 = vunpack.c.l.b16 %v5270
    %v5586 = vunpack.c.h.b16 %v5270
    %v5587 = vunpack.c.l.b16 %v5271
    %v5588 = vunpack.c.h.b16 %v5271
    %v5589 = vunpack.c.l.b16 %v5272
    %v5590 = vunpack.c.h.b16 %v5272
    %v5591 = vunpack.c.l.b16 %v5273
    %v5592 = vunpack.c.h.b16 %v5273
    %v5593 = vunpack.c.l.b16 %v5274
    %v5594 = vunpack.c.h.b16 %v5274
    %v5595 = vunpack.c.l.b16 %v5275
    %v5596 = vunpack.c.h.b16 %v5275
    %v5597 = vunpack.c.l.b16 %v5276
    %v5598 = vunpack.c.h.b16 %v5276
    %v5599 = vunpack.c.l.b16 %v5277
    %v5600 = vunpack.c.h.b16 %v5277
    %v5601 = vunpack.c.l.b16 %v5278
    %v5602 = vunpack.c.h.b16 %v5278
    %v5603 = vunpack.c.l.b16 %v5279
    %v5604 = vunpack.c.h.b16 %v5279
    %v5605 = vunpack.c.l.b16 %v5280
    %v5606 = vunpack.c.h.b16 %v5280
    %v5607 = vunpack.c.l.b16 %v5281
    %v5608 = vunpack.c.h.b16 %v5281
    %v5609 = vunpack.c.l.b16 %v5282
    %v5610 = vunpack.c.h.b16 %v5282
    %v5611 = vunpack.c.l.b16 %v5283
    %v5612 = vunpack.c.h.b16 %v5283
    %v5613 = vunpack.c.l.b16 %v5284
    %v5614 = vunpack.c.h.b16 %v5284
    %v5615 = vunpack.c.l.b16 %v5285
    %v5616 = vunpack.c.h.b16 %v5285
    %v5617 = vunpack.c.l.b16 %v5286
    %v5618 = vunpack.c.h.b16 %v5286
    %v5619 = vunpack.c.l.b16 %v5287
    %v5620 = vunpack.c.h.b16 %v5287
    %v5621 = vunpack.c.l.b16 %v5288
    %v5622 = vunpack.c.h.b16 %v5288
    %v5623 = vunpack.c.l.b16 %v5289
    %v5624 = vunpack.c.h.b16 %v5289
    %v5625 = vunpack.c.l.b16 %v5290
    %v5626 = vunpack.c.h.b16 %v5290
    %v5627 = vunpack.c.l.b16 %v5291
    %v5628 = vunpack.c.h.b16 %v5291
    %v5629 = vunpack.c.l.b16 %v5292
    %v5630 = vunpack.c.h.b16 %v5292
    %v5631 = vunpack.c.l.b16 %v5293
    %v5632 = vunpack.c.h.b16 %v5293
    %v5633 = vunpack.c.l.b16 %v5294
    %v5634 = vunpack.c.h.b16 %v5294
    %v5635 = vunpack.c.l.b16 %v5295
    %v5636 = vunpack.c.h.b16 %v5295
    %v5637 = vunpack.c.l.b16 %v5296
    %v5638 = vunpack.c.h.b16 %v5296
    %v5639 = vunpack.c.l.b16 %v5297
    %v5640 = vunpack.c.h.b16 %v5297
    %v5641 = vunpack.c.l.b16 %v5298
    %v5642 = vunpack.c.h.b16 %v5298
    %v5643 = vunpack.c.l.b16 %v5299
    %v5644 = vunpack.c.h.b16 %v5299
    %v5645 = vunpack.c.l.b16 %v5300
    %v5646 = vunpack.c.h.b16 %v5300
    %v5647 = vunpack.c.l.b16 %v5301
    %v5648 = vunpack.c.h.b16 %v5301
    %v5649 = vunpack.c.l.b16 %v5302
    %v5650 = vunpack.c.h.b16 %v5302
    %v5651 = vunpack.c.l.b16 %v5303
    %v5652 = vunpack.c.h.b16 %v5303
    %v5653 = vunpack.c.l.b16 %v5304
    %v5654 = vunpack.c.h.b16 %v5304
    %v5655 = vunpack.c.l.b16 %v5305
    %v5656 = vunpack.c.h.b16 %v5305
    %v5657 = vunpack.c.l.b16 %v5306
    %v5658 = vunpack.c.h.b16 %v5306
    %v5659 = vunpack.c.l.b16 %v5307
    %v5660 = vunpack.c.h.b16 %v5307
    %v5661 = vunpack.c.l.b16 %v5308
    %v5662 = vunpack.c.h.b16 %v5308
    %v5663 = vunpack.c.l.b16 %v5309
    %v5664 = vunpack.c.h.b16 %v5309
    %v5665 = vunpack.c.l.b16 %v5310
    %v5666 = vunpack.c.h.b16 %v5310
    %v5667 = vunpack.c.l.b16 %v5311
    %v5668 = vunpack.c.h.b16 %v5311
    %v5669 = vunpack.c.l.b16 %v5312
    %v5670 = vunpack.c.h.b16 %v5312
    %v5671 = vunpack.c.l.b16 %v5313
    %v5672 = vunpack.c.h.b16 %v5313
    %v5673 = vunpack.c.l.b16 %v5314
    %v5674 = vunpack.c.h.b16 %v5314
    %v5675 = vunpack.c.l.b16 %v5315
    %v5676 = vunpack.c.h.b16 %v5315
    %v5677 = vunpack.c.l.b16 %v5316
    %v5678 = vunpack.c.h.b16 %v5316
    %v5679 = vunpack.c.l.b16 %v5317
    %v5680 = vunpack.c.h.b16 %v5317
    %v5681 = vunpack.c.l.b16 %v5318
    %v5682 = vunpack.c.h.b16 %v5318
    %v5683 = vunpack.c.l.b16 %v5319
    %v5684 = vunpack.c.h.b16 %v5319
    %v5685 = vunpack.c.l.b16 %v5320
    %v5686 = vunpack.c.h.b16 %v5320
    %v5687 = vunpack.c.l.b16 %v5321
    %v5688 = vunpack.c.h.b16 %v5321
    %v5689 = vunpack.c.l.b16 %v5322
    %v5690 = vunpack.c.h.b16 %v5322
    %v5691 = vunpack.c.l.b16 %v5323
    %v5692 = vunpack.c.h.b16 %v5323
    %v5693 = vunpack.c.l.b16 %v5324
    %v5694 = vunpack.c.h.b16 %v5324
    %v5695 = vunpack.c.l.b16 %v5325
    %v5696 = vunpack.c.h.b16 %v5325
    %v5697 = vunpack.c.l.b16 %v5326
    %v5698 = vunpack.c.h.b16 %v5326
    %v5699 = vunpack.c.l.b16 %v5327
    %v5700 = vunpack.c.h.b16 %v5327
    %v5701 = vunpack.c.l.b16 %v5328
    %v5702 = vunpack.c.h.b16 %v5328
    %v5703 = vunpack.c.l.b16 %v5329
    %v5704 = vunpack.c.h.b16 %v5329
    %v5705 = vunpack.c.l.b16 %v5330
    %v5706 = vunpack.c.h.b16 %v5330
    %v5707 = vunpack.c.l.b16 %v5331
    %v5708 = vunpack.c.h.b16 %v5331
    %v5709 = vunpack.c.l.b16 %v5332
    %v5710 = vunpack.c.h.b16 %v5332
    %v5711 = vunpack.c.l.b16 %v5333
    %v5712 = vunpack.c.h.b16 %v5333
    %v5713 = vunpack.c.l.b16 %v5334
    %v5714 = vunpack.c.h.b16 %v5334
    %v5715 = vunpack.c.l.b16 %v5335
    %v5716 = vunpack.c.h.b16 %v5335
    %v5717 = vunpack.c.l.b16 %v5336
    %v5718 = vunpack.c.h.b16 %v5336
    %v5719 = vunpack.c.l.b16 %v5337
    %v5720 = vunpack.c.h.b16 %v5337
    %v5721 = vunpack.c.l.b16 %v5338
    %v5722 = vunpack.c.h.b16 %v5338
    %v5723 = vunpack.c.l.b16 %v5339
    %v5724 = vunpack.c.h.b16 %v5339
    %v5725 = vunpack.c.l.b16 %v5340
    %v5726 = vunpack.c.h.b16 %v5340
    %v5727 = vunpack.c.l.b16 %v5341
    %v5728 = vunpack.c.h.b16 %v5341
    %v5729 = vunpack.c.l.b16 %v5342
    %v5730 = vunpack.c.h.b16 %v5342
    %v5731 = vunpack.c.l.b16 %v5343
    %v5732 = vunpack.c.h.b16 %v5343
    %v5733 = vunpack.c.l.b16 %v5344
    %v5734 = vunpack.c.h.b16 %v5344
    %v5735 = vunpack.c.l.b16 %v5345
    %v5736 = vunpack.c.h.b16 %v5345
    %v5737 = vunpack.c.l.b16 %v5346
    %v5738 = vunpack.c.h.b16 %v5346
    %v5739 = vunpack.c.l.b16 %v5347
    %v5740 = vunpack.c.h.b16 %v5347
    %v5741 = vunpack.c.l.b16 %v5348
    %v5742 = vunpack.c.h.b16 %v5348
    %v5743 = vpack.c.b16 %v5491, %v5487
    %v5744 = vpack.c.b16 %v5492, %v5488
    %v5745 = vpack.c.b16 %v5493, %v5489
    %v5746 = vpack.c.b16 %v5494, %v5490
    %v5747 = vpack.c.b16 %v5499, %v5495
    %v5748 = vpack.c.b16 %v5500, %v5496
    %v5749 = vpack.c.b16 %v5501, %v5497
    %v5750 = vpack.c.b16 %v5502, %v5498
    %v5751 = vpack.c.b16 %v5507, %v5503
    %v5752 = vpack.c.b16 %v5508, %v5504
    %v5753 = vpack.c.b16 %v5509, %v5505
    %v5754 = vpack.c.b16 %v5510, %v5506
    %v5755 = vpack.c.b16 %v5515, %v5511
    %v5756 = vpack.c.b16 %v5516, %v5512
    %v5757 = vpack.c.b16 %v5517, %v5513
    %v5758 = vpack.c.b16 %v5518, %v5514
    %v5759 = vpack.c.b16 %v5523, %v5519
    %v5760 = vpack.c.b16 %v5524, %v5520
    %v5761 = vpack.c.b16 %v5525, %v5521
    %v5762 = vpack.c.b16 %v5526, %v5522
    %v5763 = vpack.c.b16 %v5531, %v5527
    %v5764 = vpack.c.b16 %v5532, %v5528
    %v5765 = vpack.c.b16 %v5533, %v5529
    %v5766 = vpack.c.b16 %v5534, %v5530
    %v5767 = vpack.c.b16 %v5539, %v5535
    %v5768 = vpack.c.b16 %v5540, %v5536
    %v5769 = vpack.c.b16 %v5541, %v5537
    %v5770 = vpack.c.b16 %v5542, %v5538
    %v5771 = vpack.c.b16 %v5547, %v5543
    %v5772 = vpack.c.b16 %v5548, %v5544
    %v5773 = vpack.c.b16 %v5549, %v5545
    %v5774 = vpack.c.b16 %v5550, %v5546
    %v5775 = vpack.c.b16 %v5555, %v5551
    %v5776 = vpack.c.b16 %v5556, %v5552
    %v5777 = vpack.c.b16 %v5557, %v5553
    %v5778 = vpack.c.b16 %v5558, %v5554
    %v5779 = vpack.c.b16 %v5563, %v5559
    %v5780 = vpack.c.b16 %v5564, %v5560
    %v5781 = vpack.c.b16 %v5565, %v5561
    %v5782 = vpack.c.b16 %v5566, %v5562
    %v5783 = vpack.c.b16 %v5571, %v5567
    %v5784 = vpack.c.b16 %v5572, %v5568
    %v5785 = vpack.c.b16 %v5573, %v5569
    %v5786 = vpack.c.b16 %v5574, %v5570
    %v5787 = vpack.c.b16 %v5579, %v5575
    %v5788 = vpack.c.b16 %v5580, %v5576
    %v5789 = vpack.c.b16 %v5581, %v5577
    %v5790 = vpack.c.b16 %v5582, %v5578
    %v5791 = vpack.c.b16 %v5587, %v5583
    %v5792 = vpack.c.b16 %v5588, %v5584
    %v5793 = vpack.c.b16 %v5589, %v5585
    %v5794 = vpack.c.b16 %v5590, %v5586
    %v5795 = vpack.c.b16 %v5595, %v5591
    %v5796 = vpack.c.b16 %v5596, %v5592
    %v5797 = vpack.c.b16 %v5597, %v5593
    %v5798 = vpack.c.b16 %v5598, %v5594
    %v5799 = vpack.c.b16 %v5603, %v5599
    %v5800 = vpack.c.b16 %v5604, %v5600
    %v5801 = vpack.c.b16 %v5605, %v5601
    %v5802 = vpack.c.b16 %v5606, %v5602
    %v5803 = vpack.c.b16 %v5611, %v5607
    %v5804 = vpack.c.b16 %v5612, %v5608
    %v5805 = vpack.c.b16 %v5613, %v5609
    %v5806 = vpack.c.b16 %v5614, %v5610
    %v5807 = vpack.c.b16 %v5619, %v5615
    %v5808 = vpack.c.b16 %v5620, %v5616
    %v5809 = vpack.c.b16 %v5621, %v5617
    %v5810 = vpack.c.b16 %v5622, %v5618
    %v5811 = vpack.c.b16 %v5627, %v5623
    %v5812 = vpack.c.b16 %v5628, %v5624
    %v5813 = vpack.c.b16 %v5629, %v5625
    %v5814 = vpack.c.b16 %v5630, %v5626
    %v5815 = vpack.c.b16 %v5635, %v5631
    %v5816 = vpack.c.b16 %v5636, %v5632
    %v5817 = vpack.c.b16 %v5637, %v5633
    %v5818 = vpack.c.b16 %v5638, %v5634
    %v5819 = vpack.c.b16 %v5643, %v5639
    %v5820 = vpack.c.b16 %v5644, %v5640
    %v5821 = vpack.c.b16 %v5645, %v5641
    %v5822 = vpack.c.b16 %v5646, %v5642
    %v5823 = vpack.c.b16 %v5651, %v5647
    %v5824 = vpack.c.b16 %v5652, %v5648
    %v5825 = vpack.c.b16 %v5653, %v5649
    %v5826 = vpack.c.b16 %v5654, %v5650
    %v5827 = vpack.c.b16 %v5659, %v5655
    %v5828 = vpack.c.b16 %v5660, %v5656
    %v5829 = vpack.c.b16 %v5661, %v5657
    %v5830 = vpack.c.b16 %v5662, %v5658
    %v5831 = vpack.c.b16 %v5667, %v5663
    %v5832 = vpack.c.b16 %v5668, %v5664
    %v5833 = vpack.c.b16 %v5669, %v5665
    %v5834 = vpack.c.b16 %v5670, %v5666
    %v5835 = vpack.c.b16 %v5675, %v5671
    %v5836 = vpack.c.b16 %v5676, %v5672
    %v5837 = vpack.c.b16 %v5677, %v5673
    %v5838 = vpack.c.b16 %v5678, %v5674
    %v5839 = vpack.c.b16 %v5683, %v5679
    %v5840 = vpack.c.b16 %v5684, %v5680
    %v5841 = vpack.c.b16 %v5685, %v5681
    %v5842 = vpack.c.b16 %v5686, %v5682
    %v5843 = vpack.c.b16 %v5691, %v5687
    %v5844 = vpack.c.b16 %v5692, %v5688
    %v5845 = vpack.c.b16 %v5693, %v5689
    %v5846 = vpack.c.b16 %v5694, %v5690
    %v5847 = vpack.c.b16 %v5699, %v5695
    %v5848 = vpack.c.b16 %v5700, %v5696
    %v5849 = vpack.c.b16 %v5701, %v5697
    %v5850 = vpack.c.b16 %v5702, %v5698
    %v5851 = vpack.c.b16 %v5707, %v5703
    %v5852 = vpack.c.b16 %v5708, %v5704
    %v5853 = vpack.c.b16 %v5709, %v5705
    %v5854 = vpack.c.b16 %v5710, %v5706
    %v5855 = vpack.c.b16 %v5715, %v5711
    %v5856 = vpack.c.b16 %v5716, %v5712
    %v5857 = vpack.c.b16 %v5717, %v5713
    %v5858 = vpack.c.b16 %v5718, %v5714
    %v5859 = vpack.c.b16 %v5723, %v5719
    %v5860 = vpack.c.b16 %v5724, %v5720
    %v5861 = vpack.c.b16 %v5725, %v5721
    %v5862 = vpack.c.b16 %v5726, %v5722
    %v5863 = vpack.c.b16 %v5731, %v5727
    %v5864 = vpack.c.b16 %v5732, %v5728
    %v5865 = vpack.c.b16 %v5733, %v5729
    %v5866 = vpack.c.b16 %v5734, %v5730
    %v5867 = vpack.c.b16 %v5739, %v5735
    %v5868 = vpack.c.b16 %v5740, %v5736
    %v5869 = vpack.c.b16 %v5741, %v5737
    %v5870 = vpack.c.b16 %v5742, %v5738
    %5999 = vmatpush.bf16.msra.mxu0 %v5771
    %6000 = vmatpush.bf16.msra.mxu0 %v5767
    %6001 = vmatpush.bf16.msra.mxu0 %v5763
    %6002 = vmatpush.bf16.msra.mxu0 %v5759
    %6003 = vmatpush.bf16.msra.mxu0 %v5755
    %6004 = vmatpush.bf16.msra.mxu0 %v5751
    %6005 = vmatpush.bf16.msra.mxu0 %v5747
    %6006 = vmatpush.bf16.msra.mxu0 %v5743
    %6007 = vmatmul.bf16.gmra.mxu0 %v5213
    %v6008 = vpop.f32.mrf.mxu0
    %v6009 = vadd.f32 %v5351, %v6008
    %v6010 = vpop.f32.mrf.mxu0
    %v6011 = vadd.f32 %v5351, %v6010
    %6012 = vdwg.mxu0
    %6013 = vmatpush.bf16.msra.mxu0 %v5803
    %6014 = vmatpush.bf16.msra.mxu0 %v5799
    %6015 = vmatpush.bf16.msra.mxu0 %v5795
    %6016 = vmatpush.bf16.msra.mxu0 %v5791
    %6017 = vmatpush.bf16.msra.mxu0 %v5787
    %6018 = vmatpush.bf16.msra.mxu0 %v5783
    %6019 = vmatpush.bf16.msra.mxu0 %v5779
    %6020 = vmatpush.bf16.msra.mxu0 %v5775
    %6021 = vmatmul.bf16.gmra.mxu0 %v5214
    %v6022 = vpop.f32.mrf.mxu0
    %v6023 = vadd.f32 %v6009, %v6022
    %v6024 = vpop.f32.mrf.mxu0
    %v6025 = vadd.f32 %v6011, %v6024
    %6026 = vdwg.mxu0
    %6027 = vmatpush.bf16.msra.mxu0 %v5835
    %6028 = vmatpush.bf16.msra.mxu0 %v5831
    %6029 = vmatpush.bf16.msra.mxu0 %v5827
    %6030 = vmatpush.bf16.msra.mxu0 %v5823
    %6031 = vmatpush.bf16.msra.mxu0 %v5819
    %6032 = vmatpush.bf16.msra.mxu0 %v5815
    %6033 = vmatpush.bf16.msra.mxu0 %v5811
    %6034 = vmatpush.bf16.msra.mxu0 %v5807
    %6035 = vmatmul.bf16.gmra.mxu0 %v5215
    %v6036 = vpop.f32.mrf.mxu0
    %v6037 = vadd.f32 %v6023, %v6036
    %v6038 = vpop.f32.mrf.mxu0
    %v6039 = vadd.f32 %v6025, %v6038
    %6040 = vdwg.mxu0
    %6041 = vmatpush.bf16.msra.mxu0 %v5867
    %6042 = vmatpush.bf16.msra.mxu0 %v5863
    %6043 = vmatpush.bf16.msra.mxu0 %v5859
    %6044 = vmatpush.bf16.msra.mxu0 %v5855
    %6045 = vmatpush.bf16.msra.mxu0 %v5851
    %6046 = vmatpush.bf16.msra.mxu0 %v5847
    %6047 = vmatpush.bf16.msra.mxu0 %v5843
    %6048 = vmatpush.bf16.msra.mxu0 %v5839
    %6049 = vmatmul.bf16.gmra.mxu0 %v5216
    %v6050 = vpop.f32.mrf.mxu0
    %v6051 = vadd.f32 %v6037, %v6050
    %v6052 = vpop.f32.mrf.mxu0
    %v6053 = vadd.f32 %v6039, %v6052
    %6054 = vdwg.mxu0
    %6055 = vmatpush.bf16.msra.mxu0 %v5772
    %6056 = vmatpush.bf16.msra.mxu0 %v5768
    %6057 = vmatpush.bf16.msra.mxu0 %v5764
    %6058 = vmatpush.bf16.msra.mxu0 %v5760
    %6059 = vmatpush.bf16.msra.mxu0 %v5756
    %6060 = vmatpush.bf16.msra.mxu0 %v5752
    %6061 = vmatpush.bf16.msra.mxu0 %v5748
    %6062 = vmatpush.bf16.msra.mxu0 %v5744
    %6063 = vmatmul.bf16.gmra.mxu0 %v5213
    %v6064 = vpop.f32.mrf.mxu0
    %v6065 = vadd.f32 %v5352, %v6064
    %v6066 = vpop.f32.mrf.mxu0
    %v6067 = vadd.f32 %v5352, %v6066
    %6068 = vdwg.mxu0
    %6069 = vmatpush.bf16.msra.mxu0 %v5804
    %6070 = vmatpush.bf16.msra.mxu0 %v5800
    %6071 = vmatpush.bf16.msra.mxu0 %v5796
    %6072 = vmatpush.bf16.msra.mxu0 %v5792
    %6073 = vmatpush.bf16.msra.mxu0 %v5788
    %6074 = vmatpush.bf16.msra.mxu0 %v5784
    %6075 = vmatpush.bf16.msra.mxu0 %v5780
    %6076 = vmatpush.bf16.msra.mxu0 %v5776
    %6077 = vmatmul.bf16.gmra.mxu0 %v5214
    %v6078 = vpop.f32.mrf.mxu0
    %v6079 = vadd.f32 %v6065, %v6078
    %v6080 = vpop.f32.mrf.mxu0
    %v6081 = vadd.f32 %v6067, %v6080
    %6082 = vdwg.mxu0
    %6083 = vmatpush.bf16.msra.mxu0 %v5836
    %6084 = vmatpush.bf16.msra.mxu0 %v5832
    %6085 = vmatpush.bf16.msra.mxu0 %v5828
    %6086 = vmatpush.bf16.msra.mxu0 %v5824
    %6087 = vmatpush.bf16.msra.mxu0 %v5820
    %6088 = vmatpush.bf16.msra.mxu0 %v5816
    %6089 = vmatpush.bf16.msra.mxu0 %v5812
    %6090 = vmatpush.bf16.msra.mxu0 %v5808
    %6091 = vmatmul.bf16.gmra.mxu0 %v5215
    %v6092 = vpop.f32.mrf.mxu0
    %v6093 = vadd.f32 %v6079, %v6092
    %v6094 = vpop.f32.mrf.mxu0
    %v6095 = vadd.f32 %v6081, %v6094
    %6096 = vdwg.mxu0
    %6097 = vmatpush.bf16.msra.mxu0 %v5868
    %6098 = vmatpush.bf16.msra.mxu0 %v5864
    %6099 = vmatpush.bf16.msra.mxu0 %v5860
    %6100 = vmatpush.bf16.msra.mxu0 %v5856
    %6101 = vmatpush.bf16.msra.mxu0 %v5852
    %6102 = vmatpush.bf16.msra.mxu0 %v5848
    %6103 = vmatpush.bf16.msra.mxu0 %v5844
    %6104 = vmatpush.bf16.msra.mxu0 %v5840
    %6105 = vmatmul.bf16.gmra.mxu0 %v5216
    %v6106 = vpop.f32.mrf.mxu0
    %v6107 = vadd.f32 %v6093, %v6106
    %v6108 = vpop.f32.mrf.mxu0
    %v6109 = vadd.f32 %v6095, %v6108
    %6110 = vdwg.mxu0
    %6111 = vmatpush.bf16.msra.mxu0 %v5773
    %6112 = vmatpush.bf16.msra.mxu0 %v5769
    %6113 = vmatpush.bf16.msra.mxu0 %v5765
    %6114 = vmatpush.bf16.msra.mxu0 %v5761
    %6115 = vmatpush.bf16.msra.mxu0 %v5757
    %6116 = vmatpush.bf16.msra.mxu0 %v5753
    %6117 = vmatpush.bf16.msra.mxu0 %v5749
    %6118 = vmatpush.bf16.msra.mxu0 %v5745
    %6119 = vmatmul.bf16.gmra.mxu0 %v5213
    %v6120 = vpop.f32.mrf.mxu0
    %v6121 = vadd.f32 %v5353, %v6120
    %v6122 = vpop.f32.mrf.mxu0
    %v6123 = vadd.f32 %v5353, %v6122
    %6124 = vdwg.mxu0
    %6125 = vmatpush.bf16.msra.mxu0 %v5805
    %6126 = vmatpush.bf16.msra.mxu0 %v5801
    %6127 = vmatpush.bf16.msra.mxu0 %v5797
    %6128 = vmatpush.bf16.msra.mxu0 %v5793
    %6129 = vmatpush.bf16.msra.mxu0 %v5789
    %6130 = vmatpush.bf16.msra.mxu0 %v5785
    %6131 = vmatpush.bf16.msra.mxu0 %v5781
    %6132 = vmatpush.bf16.msra.mxu0 %v5777
    %6133 = vmatmul.bf16.gmra.mxu0 %v5214
    %v6134 = vpop.f32.mrf.mxu0
    %v6135 = vadd.f32 %v6121, %v6134
    %v6136 = vpop.f32.mrf.mxu0
    %v6137 = vadd.f32 %v6123, %v6136
    %6138 = vdwg.mxu0
    %6139 = vmatpush.bf16.msra.mxu0 %v5837
    %6140 = vmatpush.bf16.msra.mxu0 %v5833
    %6141 = vmatpush.bf16.msra.mxu0 %v5829
    %6142 = vmatpush.bf16.msra.mxu0 %v5825
    %6143 = vmatpush.bf16.msra.mxu0 %v5821
    %6144 = vmatpush.bf16.msra.mxu0 %v5817
    %6145 = vmatpush.bf16.msra.mxu0 %v5813
    %6146 = vmatpush.bf16.msra.mxu0 %v5809
    %6147 = vmatmul.bf16.gmra.mxu0 %v5215
    %v6148 = vpop.f32.mrf.mxu0
    %v6149 = vadd.f32 %v6135, %v6148
    %v6150 = vpop.f32.mrf.mxu0
    %v6151 = vadd.f32 %v6137, %v6150
    %6152 = vdwg.mxu0
    %6153 = vmatpush.bf16.msra.mxu0 %v5869
    %6154 = vmatpush.bf16.msra.mxu0 %v5865
    %6155 = vmatpush.bf16.msra.mxu0 %v5861
    %6156 = vmatpush.bf16.msra.mxu0 %v5857
    %6157 = vmatpush.bf16.msra.mxu0 %v5853
    %6158 = vmatpush.bf16.msra.mxu0 %v5849
    %6159 = vmatpush.bf16.msra.mxu0 %v5845
    %6160 = vmatpush.bf16.msra.mxu0 %v5841
    %6161 = vmatmul.bf16.gmra.mxu0 %v5216
    %v6162 = vpop.f32.mrf.mxu0
    %v6163 = vadd.f32 %v6149, %v6162
    %v6164 = vpop.f32.mrf.mxu0
    %v6165 = vadd.f32 %v6151, %v6164
    %6166 = vdwg.mxu0
    %6167 = vmatpush.bf16.msra.mxu0 %v5774
    %6168 = vmatpush.bf16.msra.mxu0 %v5770
    %6169 = vmatpush.bf16.msra.mxu0 %v5766
    %6170 = vmatpush.bf16.msra.mxu0 %v5762
    %6171 = vmatpush.bf16.msra.mxu0 %v5758
    %6172 = vmatpush.bf16.msra.mxu0 %v5754
    %6173 = vmatpush.bf16.msra.mxu0 %v5750
    %6174 = vmatpush.bf16.msra.mxu0 %v5746
    %6175 = vmatmul.bf16.gmra.mxu0 %v5213
    %v6176 = vpop.f32.mrf.mxu0
    %v6177 = vadd.f32 %v5354, %v6176
    %v6178 = vpop.f32.mrf.mxu0
    %v6179 = vadd.f32 %v5354, %v6178
    %6180 = vdwg.mxu0
    %6181 = vmatpush.bf16.msra.mxu0 %v5806
    %6182 = vmatpush.bf16.msra.mxu0 %v5802
    %6183 = vmatpush.bf16.msra.mxu0 %v5798
    %6184 = vmatpush.bf16.msra.mxu0 %v5794
    %6185 = vmatpush.bf16.msra.mxu0 %v5790
    %6186 = vmatpush.bf16.msra.mxu0 %v5786
    %6187 = vmatpush.bf16.msra.mxu0 %v5782
    %6188 = vmatpush.bf16.msra.mxu0 %v5778
    %6189 = vmatmul.bf16.gmra.mxu0 %v5214
    %v6190 = vpop.f32.mrf.mxu0
    %v6191 = vadd.f32 %v6177, %v6190
    %v6192 = vpop.f32.mrf.mxu0
    %v6193 = vadd.f32 %v6179, %v6192
    %6194 = vdwg.mxu0
    %6195 = vmatpush.bf16.msra.mxu0 %v5838
    %6196 = vmatpush.bf16.msra.mxu0 %v5834
    %6197 = vmatpush.bf16.msra.mxu0 %v5830
    %6198 = vmatpush.bf16.msra.mxu0 %v5826
    %6199 = vmatpush.bf16.msra.mxu0 %v5822
    %6200 = vmatpush.bf16.msra.mxu0 %v5818
    %6201 = vmatpush.bf16.msra.mxu0 %v5814
    %6202 = vmatpush.bf16.msra.mxu0 %v5810
    %6203 = vmatmul.bf16.gmra.mxu0 %v5215
    %v6204 = vpop.f32.mrf.mxu0
    %v6205 = vadd.f32 %v6191, %v6204
    %v6206 = vpop.f32.mrf.mxu0
    %v6207 = vadd.f32 %v6193, %v6206
    %6208 = vdwg.mxu0
    %6209 = vmatpush.bf16.msra.mxu0 %v5870
    %6210 = vmatpush.bf16.msra.mxu0 %v5866
    %6211 = vmatpush.bf16.msra.mxu0 %v5862
    %6212 = vmatpush.bf16.msra.mxu0 %v5858
    %6213 = vmatpush.bf16.msra.mxu0 %v5854
    %6214 = vmatpush.bf16.msra.mxu0 %v5850
    %6215 = vmatpush.bf16.msra.mxu0 %v5846
    %6216 = vmatpush.bf16.msra.mxu0 %v5842
    %6217 = vmatmul.bf16.gmra.mxu0 %v5216
    %v6218 = vpop.f32.mrf.mxu0
    %v6219 = vadd.f32 %v6205, %v6218
    %v6220 = vpop.f32.mrf.mxu0
    %v6221 = vadd.f32 %v6207, %v6220
    %6222 = vdwg.mxu0
    %v6223 = vmax.f32 %v6051, 0.0
    %v6224 = vmax.f32 %v6107, 0.0
    %v6225 = vmax.f32 %v6163, 0.0
    %v6226 = vmax.f32 %v6219, 0.0
    %v6227 = vmax.f32 %v6053, 0.0
    %v6228 = vmax.f32 %v6109, 0.0
    %v6229 = vmax.f32 %v6165, 0.0
    %v6230 = vmax.f32 %v6221, 0.0
    %v6231 = vpack.c.bf16 %v6227, %v6223
    %v6232 = vpack.c.bf16 %v6228, %v6224
    %v6233 = vpack.c.bf16 %v6229, %v6225
    %v6234 = vpack.c.bf16 %v6230, %v6226
    %s6235 = smul.u32 %s5217, 1
    %s6236 = sshll.u32 %s6235, 4
    %6237 = dma.done %s121, %s6236
    %v6238 = vld [vmem:[#allocation5] sm:$0xf]
    %v6239 = vld [vmem:[#allocation5 + $0x4] sm:$0xf]
    %v6240 = vld [vmem:[#allocation5 + $0x8] sm:$0xf]
    %v6241 = vld [vmem:[#allocation5 + $0xc] sm:$0xf]
    %v6242 = vld [vmem:[#allocation5 + $0x10] sm:$0xf]
    %v6243 = vld [vmem:[#allocation5 + $0x14] sm:$0xf]
    %v6244 = vld [vmem:[#allocation5 + $0x18] sm:$0xf]
    %v6245 = vld [vmem:[#allocation5 + $0x1c] sm:$0xf]
    %v6246 = vld [vmem:[#allocation5 + $0x20] sm:$0xf]
    %v6247 = vld [vmem:[#allocation5 + $0x24] sm:$0xf]
    %v6248 = vld [vmem:[#allocation5 + $0x28] sm:$0xf]
    %v6249 = vld [vmem:[#allocation5 + $0x2c] sm:$0xf]
    %v6250 = vld [vmem:[#allocation5 + $0x30] sm:$0xf]
    %v6251 = vld [vmem:[#allocation5 + $0x34] sm:$0xf]
    %v6252 = vld [vmem:[#allocation5 + $0x38] sm:$0xf]
    %v6253 = vld [vmem:[#allocation5 + $0x3c] sm:$0xf]
    %v6254 = vld [vmem:[#allocation5 + $0x40] sm:$0xf]
    %v6255 = vld [vmem:[#allocation5 + $0x44] sm:$0xf]
    %v6256 = vld [vmem:[#allocation5 + $0x48] sm:$0xf]
    %v6257 = vld [vmem:[#allocation5 + $0x4c] sm:$0xf]
    %v6258 = vld [vmem:[#allocation5 + $0x50] sm:$0xf]
    %v6259 = vld [vmem:[#allocation5 + $0x54] sm:$0xf]
    %v6260 = vld [vmem:[#allocation5 + $0x58] sm:$0xf]
    %v6261 = vld [vmem:[#allocation5 + $0x5c] sm:$0xf]
    %v6262 = vld [vmem:[#allocation5 + $0x60] sm:$0xf]
    %v6263 = vld [vmem:[#allocation5 + $0x64] sm:$0xf]
    %v6264 = vld [vmem:[#allocation5 + $0x68] sm:$0xf]
    %v6265 = vld [vmem:[#allocation5 + $0x6c] sm:$0xf]
    %v6266 = vld [vmem:[#allocation5 + $0x70] sm:$0xf]
    %v6267 = vld [vmem:[#allocation5 + $0x74] sm:$0xf]
    %v6268 = vld [vmem:[#allocation5 + $0x78] sm:$0xf]
    %v6269 = vld [vmem:[#allocation5 + $0x7c] sm:$0xf]
    %v6270 = vld [vmem:[#allocation5 + $0x80] sm:$0xf]
    %v6271 = vld [vmem:[#allocation5 + $0x84] sm:$0xf]
    %v6272 = vld [vmem:[#allocation5 + $0x88] sm:$0xf]
    %v6273 = vld [vmem:[#allocation5 + $0x8c] sm:$0xf]
    %v6274 = vld [vmem:[#allocation5 + $0x90] sm:$0xf]
    %v6275 = vld [vmem:[#allocation5 + $0x94] sm:$0xf]
    %v6276 = vld [vmem:[#allocation5 + $0x98] sm:$0xf]
    %v6277 = vld [vmem:[#allocation5 + $0x9c] sm:$0xf]
    %v6278 = vld [vmem:[#allocation5 + $0xa0] sm:$0xf]
    %v6279 = vld [vmem:[#allocation5 + $0xa4] sm:$0xf]
    %v6280 = vld [vmem:[#allocation5 + $0xa8] sm:$0xf]
    %v6281 = vld [vmem:[#allocation5 + $0xac] sm:$0xf]
    %v6282 = vld [vmem:[#allocation5 + $0xb0] sm:$0xf]
    %v6283 = vld [vmem:[#allocation5 + $0xb4] sm:$0xf]
    %v6284 = vld [vmem:[#allocation5 + $0xb8] sm:$0xf]
    %v6285 = vld [vmem:[#allocation5 + $0xbc] sm:$0xf]
    %v6286 = vld [vmem:[#allocation5 + $0xc0] sm:$0xf]
    %v6287 = vld [vmem:[#allocation5 + $0xc4] sm:$0xf]
    %v6288 = vld [vmem:[#allocation5 + $0xc8] sm:$0xf]
    %v6289 = vld [vmem:[#allocation5 + $0xcc] sm:$0xf]
    %v6290 = vld [vmem:[#allocation5 + $0xd0] sm:$0xf]
    %v6291 = vld [vmem:[#allocation5 + $0xd4] sm:$0xf]
    %v6292 = vld [vmem:[#allocation5 + $0xd8] sm:$0xf]
    %v6293 = vld [vmem:[#allocation5 + $0xdc] sm:$0xf]
    %v6294 = vld [vmem:[#allocation5 + $0xe0] sm:$0xf]
    %v6295 = vld [vmem:[#allocation5 + $0xe4] sm:$0xf]
    %v6296 = vld [vmem:[#allocation5 + $0xe8] sm:$0xf]
    %v6297 = vld [vmem:[#allocation5 + $0xec] sm:$0xf]
    %v6298 = vld [vmem:[#allocation5 + $0xf0] sm:$0xf]
    %v6299 = vld [vmem:[#allocation5 + $0xf4] sm:$0xf]
    %v6300 = vld [vmem:[#allocation5 + $0xf8] sm:$0xf]
    %v6301 = vld [vmem:[#allocation5 + $0xfc] sm:$0xf]
    %v6302 = vld [vmem:[#allocation13] sm:$0x1]
    %v6304 = vperm.slane %v6302, 0
    %v6370 = vunpack.c.l.b16 %v6238
    %v6371 = vunpack.c.l.b16 %v6239
    %v6372 = vunpack.c.l.b16 %v6240
    %v6373 = vunpack.c.l.b16 %v6241
    %v6374 = vunpack.c.l.b16 %v6242
    %v6375 = vunpack.c.l.b16 %v6243
    %v6376 = vunpack.c.l.b16 %v6244
    %v6377 = vunpack.c.l.b16 %v6245
    %v6378 = vunpack.c.l.b16 %v6246
    %v6379 = vunpack.c.l.b16 %v6247
    %v6380 = vunpack.c.l.b16 %v6248
    %v6381 = vunpack.c.l.b16 %v6249
    %v6382 = vunpack.c.l.b16 %v6250
    %v6383 = vunpack.c.l.b16 %v6251
    %v6384 = vunpack.c.l.b16 %v6252
    %v6385 = vunpack.c.l.b16 %v6253
    %v6386 = vunpack.c.l.b16 %v6254
    %v6387 = vunpack.c.l.b16 %v6255
    %v6388 = vunpack.c.l.b16 %v6256
    %v6389 = vunpack.c.l.b16 %v6257
    %v6390 = vunpack.c.l.b16 %v6258
    %v6391 = vunpack.c.l.b16 %v6259
    %v6392 = vunpack.c.l.b16 %v6260
    %v6393 = vunpack.c.l.b16 %v6261
    %v6394 = vunpack.c.l.b16 %v6262
    %v6395 = vunpack.c.l.b16 %v6263
    %v6396 = vunpack.c.l.b16 %v6264
    %v6397 = vunpack.c.l.b16 %v6265
    %v6398 = vunpack.c.l.b16 %v6266
    %v6399 = vunpack.c.l.b16 %v6267
    %v6400 = vunpack.c.l.b16 %v6268
    %v6401 = vunpack.c.l.b16 %v6269
    %v6402 = vunpack.c.l.b16 %v6270
    %v6403 = vunpack.c.l.b16 %v6271
    %v6404 = vunpack.c.l.b16 %v6272
    %v6405 = vunpack.c.l.b16 %v6273
    %v6406 = vunpack.c.l.b16 %v6274
    %v6407 = vunpack.c.l.b16 %v6275
    %v6408 = vunpack.c.l.b16 %v6276
    %v6409 = vunpack.c.l.b16 %v6277
    %v6410 = vunpack.c.l.b16 %v6278
    %v6411 = vunpack.c.l.b16 %v6279
    %v6412 = vunpack.c.l.b16 %v6280
    %v6413 = vunpack.c.l.b16 %v6281
    %v6414 = vunpack.c.l.b16 %v6282
    %v6415 = vunpack.c.l.b16 %v6283
    %v6416 = vunpack.c.l.b16 %v6284
    %v6417 = vunpack.c.l.b16 %v6285
    %v6418 = vunpack.c.l.b16 %v6286
    %v6419 = vunpack.c.l.b16 %v6287
    %v6420 = vunpack.c.l.b16 %v6288
    %v6421 = vunpack.c.l.b16 %v6289
    %v6422 = vunpack.c.l.b16 %v6290
    %v6423 = vunpack.c.l.b16 %v6291
    %v6424 = vunpack.c.l.b16 %v6292
    %v6425 = vunpack.c.l.b16 %v6293
    %v6426 = vunpack.c.l.b16 %v6294
    %v6427 = vunpack.c.l.b16 %v6295
    %v6428 = vunpack.c.l.b16 %v6296
    %v6429 = vunpack.c.l.b16 %v6297
    %v6430 = vunpack.c.l.b16 %v6298
    %v6431 = vunpack.c.l.b16 %v6299
    %v6432 = vunpack.c.l.b16 %v6300
    %v6433 = vunpack.c.l.b16 %v6301
    %v6434 = vpack.c.b16 %v6371, %v6370
    %v6435 = vpack.c.b16 %v6373, %v6372
    %v6436 = vpack.c.b16 %v6375, %v6374
    %v6437 = vpack.c.b16 %v6377, %v6376
    %v6438 = vpack.c.b16 %v6379, %v6378
    %v6439 = vpack.c.b16 %v6381, %v6380
    %v6440 = vpack.c.b16 %v6383, %v6382
    %v6441 = vpack.c.b16 %v6385, %v6384
    %v6442 = vpack.c.b16 %v6387, %v6386
    %v6443 = vpack.c.b16 %v6389, %v6388
    %v6444 = vpack.c.b16 %v6391, %v6390
    %v6445 = vpack.c.b16 %v6393, %v6392
    %v6446 = vpack.c.b16 %v6395, %v6394
    %v6447 = vpack.c.b16 %v6397, %v6396
    %v6448 = vpack.c.b16 %v6399, %v6398
    %v6449 = vpack.c.b16 %v6401, %v6400
    %v6450 = vpack.c.b16 %v6403, %v6402
    %v6451 = vpack.c.b16 %v6405, %v6404
    %v6452 = vpack.c.b16 %v6407, %v6406
    %v6453 = vpack.c.b16 %v6409, %v6408
    %v6454 = vpack.c.b16 %v6411, %v6410
    %v6455 = vpack.c.b16 %v6413, %v6412
    %v6456 = vpack.c.b16 %v6415, %v6414
    %v6457 = vpack.c.b16 %v6417, %v6416
    %v6458 = vpack.c.b16 %v6419, %v6418
    %v6459 = vpack.c.b16 %v6421, %v6420
    %v6460 = vpack.c.b16 %v6423, %v6422
    %v6461 = vpack.c.b16 %v6425, %v6424
    %v6462 = vpack.c.b16 %v6427, %v6426
    %v6463 = vpack.c.b16 %v6429, %v6428
    %v6464 = vpack.c.b16 %v6431, %v6430
    %v6465 = vpack.c.b16 %v6433, %v6432
    %6498 = vmatpush.bf16.msra.mxu0 %v6441
    %6499 = vmatpush.bf16.msra.mxu0 %v6440
    %6500 = vmatpush.bf16.msra.mxu0 %v6439
    %6501 = vmatpush.bf16.msra.mxu0 %v6438
    %6502 = vmatpush.bf16.msra.mxu0 %v6437
    %6503 = vmatpush.bf16.msra.mxu0 %v6436
    %6504 = vmatpush.bf16.msra.mxu0 %v6435
    %6505 = vmatpush.bf16.msra.mxu0 %v6434
    %6506 = vmatmul.bf16.gmra.mxu0 %v6231
    %v6507 = vpop.f32.mrf.mxu0
    %v6508 = vadd.f32 %v6304, %v6507
    %v6509 = vpop.f32.mrf.mxu0
    %v6510 = vadd.f32 %v6304, %v6509
    %6511 = vdwg.mxu0
    %6512 = vmatpush.bf16.msra.mxu0 %v6449
    %6513 = vmatpush.bf16.msra.mxu0 %v6448
    %6514 = vmatpush.bf16.msra.mxu0 %v6447
    %6515 = vmatpush.bf16.msra.mxu0 %v6446
    %6516 = vmatpush.bf16.msra.mxu0 %v6445
    %6517 = vmatpush.bf16.msra.mxu0 %v6444
    %6518 = vmatpush.bf16.msra.mxu0 %v6443
    %6519 = vmatpush.bf16.msra.mxu0 %v6442
    %6520 = vmatmul.bf16.gmra.mxu0 %v6232
    %v6521 = vpop.f32.mrf.mxu0
    %v6522 = vadd.f32 %v6508, %v6521
    %v6523 = vpop.f32.mrf.mxu0
    %v6524 = vadd.f32 %v6510, %v6523
    %6525 = vdwg.mxu0
    %6526 = vmatpush.bf16.msra.mxu0 %v6457
    %6527 = vmatpush.bf16.msra.mxu0 %v6456
    %6528 = vmatpush.bf16.msra.mxu0 %v6455
    %6529 = vmatpush.bf16.msra.mxu0 %v6454
    %6530 = vmatpush.bf16.msra.mxu0 %v6453
    %6531 = vmatpush.bf16.msra.mxu0 %v6452
    %6532 = vmatpush.bf16.msra.mxu0 %v6451
    %6533 = vmatpush.bf16.msra.mxu0 %v6450
    %6534 = vmatmul.bf16.gmra.mxu0 %v6233
    %v6535 = vpop.f32.mrf.mxu0
    %v6536 = vadd.f32 %v6522, %v6535
    %v6537 = vpop.f32.mrf.mxu0
    %v6538 = vadd.f32 %v6524, %v6537
    %6539 = vdwg.mxu0
    %6540 = vmatpush.bf16.msra.mxu0 %v6465
    %6541 = vmatpush.bf16.msra.mxu0 %v6464
    %6542 = vmatpush.bf16.msra.mxu0 %v6463
    %6543 = vmatpush.bf16.msra.mxu0 %v6462
    %6544 = vmatpush.bf16.msra.mxu0 %v6461
    %6545 = vmatpush.bf16.msra.mxu0 %v6460
    %6546 = vmatpush.bf16.msra.mxu0 %v6459
    %6547 = vmatpush.bf16.msra.mxu0 %v6458
    %6548 = vmatmul.bf16.gmra.mxu0 %v6234
    %v6549 = vpop.f32.mrf.mxu0
    %v6550 = vadd.f32 %v6536, %v6549
    %v6551 = vpop.f32.mrf.mxu0
    %v6552 = vadd.f32 %v6538, %v6551
    %6553 = vdwg.mxu0
    %6554 = vst [vmem:[#allocation15] sm:$0xff] %v6550
    %6555 = vst [vmem:[#allocation15 + $0x8] sm:$0xff] %v6552
    // Predicated region
    $region54: #{decoder_forward.1} parent=1 // pred_check
      _
    $region55: #{decoder_forward.1} parent=1 // pred_check_branch
      %6557 = sbr.rel (0) target = $region57
    $region56: #{decoder_forward.1} parent=1 // pred_region
      %6559 = vsyncadd [#allocation9], 0
      %s6560 = sshll.u32 [#allocation15], 4
      %s6561 = int_to_ptr.vmem [resolvable:$true] %s6560
      %s6562 = sshll.u32 %s9, 4
      %s6563 = int_to_ptr.hbm [resolvable:$true] %s6562
      %6568 = dma.vmem_to_hbm [thread:$0]  %s6561, 256, %s6563, [#allocation9], 128, 128, 8
    $region57: #{decoder_forward.1} parent=1 // pred_fallthru
      _
    // Predicated region
    $region58: #{decoder_forward.1} parent=1 // pred_check
      _
    $region59: #{decoder_forward.1} parent=1 // pred_check_branch
      %6570 = sbr.rel (0) target = $region61
    $region60: #{decoder_forward.1} parent=1 // pred_region
      %6572 = dma.done [#allocation9], 256
    $region61: #{decoder_forward.1} parent=1 // pred_fallthru
      _
    %6573 = vsyncpa [#allocation8], 1
    %6574 = vsyncpa [#allocation11], 1
    %6575 = vsyncpa [#allocation14], 1
    %6576 = vsyncpa [#allocation9], 1
  %6577 = vsyncmov [#allocation6]
  %s6578 = vpop.sfrf %6577
  %p6579 = scmp.eq.s32.totalorder %s6578, 0
  %p6580 = pneg %p6579
  %6582 = shalt.err (%p6580)
  %s6583 = scalar_lea.sflag [#allocation6], 1
  %6584 = vsyncmov %s6583
  %s6585 = vpop.sfrf %6584
  %p6586 = scmp.eq.s32.totalorder %s6585, 0
  %p6587 = pneg %p6586
  %6589 = shalt.err (%p6587)
  %s6590 = scalar_lea.sflag [#allocation6], 2
  %6591 = vsyncmov %s6590
  %s6592 = vpop.sfrf %6591
  %p6593 = scmp.eq.s32.totalorder %s6592, 0
  %p6594 = pneg %p6593
  %6596 = shalt.err (%p6594)
  %s6597 = scalar_lea.sflag [#allocation6], 3
  %6598 = vsyncmov %s6597
  %s6599 = vpop.sfrf %6598
  %p6600 = scmp.eq.s32.totalorder %s6599, 0
  %p6601 = pneg %p6600
  %6603 = shalt.err (%p6601)

</llo_original>
